<compile_context>
chip_gen: v7x
topology: tpu7x:2x2x1
jax: 0.10.0
libtpu: 0.0.40
codegen_flags: <defaults>
</compile_context>

<pallas_src>
import itertools
import math

import numpy as np
import jax
import jax.numpy as jnp
from jax.experimental import pallas as pl
from jax.experimental.pallas import tpu as pltpu

BN_EPS = 1e-5
VMEM_LIMIT = 48 * 1024 * 1024          # explicit scoped-VMEM limit (v5e/v6e/v7x safe)


def _round_up(x, m):
    return (x + m - 1) // m * m


def _choose_tn(kc_max, co_pad, budget=24 << 20):
    """Largest point tile whose (double-buffered) working set fits the VMEM budget."""
    for tn in (1024, 512, 256):
        need = (2 * tn * kc_max * 2        # gathered x tile, bf16, double-buffered
                + 2 * tn * co_pad * 2      # y tile, bf16, double-buffered
                + 2 * kc_max * co_pad * 2) # resident weights (double-buffered by default)
        if need <= budget:
            return tn
    return 256


# ---------------------------------------------------------------------------
# Pass 1: conv-as-matmul (pre-bias) + raw BN (sum, sumsq) accumulation.
# ---------------------------------------------------------------------------
def _conv_stats_kernel(x_ref, w_ref, y_ref, stat_ref):
    # x_ref    : [TN, KC] bf16   gathered neighbor features (tile)
    # w_ref    : [KC, CO] bf16   flattened conv weights (VMEM resident)
    # y_ref    : [TN, CO] bf16   pre-bias conv output tile
    # stat_ref : [8,  CO] f32    resident per-split accumulator (row0=sum, row1=sumsq)
    i = pl.program_id(1)

    @pl.when(i == 0)
    def _init():
        stat_ref[...] = jnp.zeros_like(stat_ref)

    y = jnp.dot(x_ref[...], w_ref[...], preferred_element_type=jnp.float32)
    y_ref[...] = y.astype(y_ref.dtype)

    # Padding rows of x are all-zero -> they contribute nothing; no mask needed.
    stat_ref[0:1, :] += jnp.sum(y, axis=0, keepdims=True)
    stat_ref[1:2, :] += jnp.sum(y * y, axis=0, keepdims=True)


# ---------------------------------------------------------------------------
# Pass 2: BN affine apply + SiLU (optionally fused with the residual branch).
# ---------------------------------------------------------------------------
def _bn_silu_kernel(y_ref, ss_ref, o_ref):
    z = y_ref[...].astype(jnp.float32) * ss_ref[0:1, :] + ss_ref[1:2, :]
    o_ref[...] = (z * pl.reciprocal(1.0 + jnp.exp(-z), approx=True)).astype(o_ref.dtype)


def _bn_silu_res_matmul_kernel(y_ref, ss_ref, xr_ref, wr_ref, o_ref):
    # ss_ref rows: 0=scale, 1=shift, 2=residual conv bias
    z = y_ref[...].astype(jnp.float32) * ss_ref[0:1, :] + ss_ref[1:2, :]
    act = z * pl.reciprocal(1.0 + jnp.exp(-z), approx=True)
    res = jnp.dot(xr_ref[...], wr_ref[...],
                  preferred_element_type=jnp.float32) + ss_ref[2:3, :]
    o_ref[...] = (act + res).astype(o_ref.dtype)


def _bn_silu_res_add_kernel(y_ref, ss_ref, xr_ref, o_ref):
    # Identity residual (dim == dim_out): add the f32 feats tile, no matmul, no bf16 round.
    z = y_ref[...].astype(jnp.float32) * ss_ref[0:1, :] + ss_ref[1:2, :]
    act = z * pl.reciprocal(1.0 + jnp.exp(-z), approx=True)
    o_ref[...] = (act + xr_ref[...]).astype(o_ref.dtype)


# ---------------------------------------------------------------------------
# Kernel-map construction (JAX glue): sort + searchsorted, O(N K log N).
# ---------------------------------------------------------------------------
def build_kernel_map(coords, D):
    """coords: [N, 1+D] int32 (unique).  Returns [N, 3**D] int32, -1 = missing."""
    N = coords.shape[0]
    K = 3 ** D
    spatial = np.array(list(itertools.product([-1, 0, 1], repeat=D)), np.int32)
    offs = jnp.asarray(np.concatenate(
        [np.zeros((K, 1), np.int32), spatial], axis=1))              # [K, 1+D]

    cmin = jnp.min(coords, axis=0)
    cmax = jnp.max(coords, axis=0)
    base = cmin - 1
    ranges = cmax - cmin + 3   # covers coords +/- 1 after the shift
    # TODO(synk): int32 spatial keys; overflows silently if prod(ranges) >= 2**31.

    def encode(c):
        key = c[..., 0]
        for d in range(1, coords.shape[1]):
            key = key * ranges[d] + c[..., d]
        return key

    keys = encode(coords - base)                                      # [N]
    order = jnp.argsort(keys)
    keys_sorted = keys[order]

    tgt = coords[:, None, :] + offs[None, :, :] - base                # [N, K, 1+D]
    tgt_keys = encode(tgt).reshape(-1)
    pos = jnp.clip(jnp.searchsorted(keys_sorted, tgt_keys), 0, N - 1)
    found = keys_sorted[pos] == tgt_keys
    nbr = jnp.where(found, order[pos], -1)
    return nbr.reshape(N, K).astype(jnp.int32)


# ---------------------------------------------------------------------------
# ResnetBlockME (concat_time_emb=True) with Pallas-fused blocks.
# ---------------------------------------------------------------------------
class ResnetBlockMEPallas:
    def __init__(self, dim, dim_out, *, D=3, time_emb_dim=None, key=None):
        self.dim, self.dim_out, self.D = dim, dim_out, D
        self.time_emb_dim = time_emb_dim or 0
        self.K = 3 ** D
        cin1 = dim + self.time_emb_dim      # block1 input channels (after time concat)

        key = jax.random.PRNGKey(0) if key is None else key
        ks = jax.random.split(key, 6)
        self.W1 = jax.random.normal(ks[0], (self.K, cin1, dim_out), jnp.float32) / np.sqrt(self.K * cin1)
        self.b1 = 0.05 * jax.random.normal(ks[1], (dim_out,), jnp.float32)
        self.W2 = jax.random.normal(ks[2], (self.K, dim_out, dim_out), jnp.float32) / np.sqrt(self.K * dim_out)
        self.b2 = 0.05 * jax.random.normal(ks[3], (dim_out,), jnp.float32)
        self.gamma1 = jnp.ones((dim_out,), jnp.float32); self.beta1 = jnp.zeros((dim_out,), jnp.float32)
        self.gamma2 = jnp.ones((dim_out,), jnp.float32); self.beta2 = jnp.zeros((dim_out,), jnp.float32)
        if dim != dim_out:
            self.Wres = jax.random.normal(ks[4], (dim, dim_out), jnp.float32) / np.sqrt(dim)
            self.bres = 0.05 * jax.random.normal(ks[5], (dim_out,), jnp.float32)

        # ---- pre-padded device parameters (computed once) -----------------
        self.co_pad = _round_up(dim_out, 128)

        def pad_conv(W, cin_pad):
            K, cin, dout = W.shape
            k_mult = 128 // math.gcd(cin_pad, 128)       # K_pad*Cin must be a 128-multiple
            k_pad = _round_up(K, k_mult)
            w = jnp.zeros((k_pad, cin_pad, self.co_pad), jnp.float32)
            w = w.at[:K, :cin, :dout].set(W)
            return w.reshape(k_pad * cin_pad, self.co_pad).astype(jnp.bfloat16), k_pad

        def pad_vec(v):
            return jnp.zeros((self.co_pad,), jnp.float32).at[:dim_out].set(v)

        # Block2 consumes block1's h in its padded [*, co_pad] lane layout directly
        # (padded channels of h are exactly zero), so W2 is padded on the input axis.
        self.W1p, self.k_pad1 = pad_conv(self.W1, cin1)
        self.W2p, self.k_pad2 = pad_conv(self.W2, self.co_pad)
        self.kc1 = self.k_pad1 * cin1
        self.kc2 = self.k_pad2 * self.co_pad
        assert self.kc1 % 128 == 0 and self.kc2 % 128 == 0

        # NOTE: conv biases b1/b2 cancel under training-mode BatchNorm, so the kernels
        # never see them; gamma/beta only enter the tiny scale/shift epilogue.
        self.g1p, self.be1p = pad_vec(self.gamma1), pad_vec(self.beta1)
        self.g2p, self.be2p = pad_vec(self.gamma2), pad_vec(self.beta2)

        if dim != dim_out:
            self.cin_res_pad = _round_up(dim, 128)
            self.Wresp = (jnp.zeros((self.cin_res_pad, self.co_pad), jnp.float32)
                          .at[:dim, :dim_out].set(self.Wres).astype(jnp.bfloat16))
            self.bresp = pad_vec(self.bres)

        # Point-tile size from the largest K*Cin extent and the VMEM budget.
        self.tn = _choose_tn(max(self.kc1, self.kc2), self.co_pad)

    # -------------------- pallas_call wrappers --------------------
    def _conv_stats(self, x_g, w_p, n_split, inner):
        n_pad, kc = x_g.shape
        co, tn = self.co_pad, self.tn
        return pl.pallas_call(
            _conv_stats_kernel,
            out_shape=(jax.ShapeDtypeStruct((n_pad, co), jnp.bfloat16),
                       jax.ShapeDtypeStruct((n_split * 8, co), jnp.float32)),
            grid=(n_split, inner),
            in_specs=[pl.BlockSpec((tn, kc), lambda s, i: (s * inner + i, 0)),
                      pl.BlockSpec((kc, co), lambda s, i: (0, 0))],
            out_specs=(pl.BlockSpec((tn, co), lambda s, i: (s * inner + i, 0)),
                       pl.BlockSpec((8, co), lambda s, i: (s, 0))),
            compiler_params=pltpu.CompilerParams(
                dimension_semantics=("parallel", "arbitrary"),
                vmem_limit_bytes=VMEM_LIMIT),
        )(x_g, w_p)

    def _finalize_stats(self, st, n, gamma, beta):
        """Combine per-split raw sums into per-channel (scale, shift).  Tiny XLA glue."""
        s = st.reshape(-1, 8, self.co_pad).sum(axis=0)          # rows 2..7 are zero
        inv_n = 1.0 / jnp.float32(n)
        mean = s[0] * inv_n
        var = jnp.maximum(s[1] * inv_n - mean * mean, 0.0)
        scale = gamma * jax.lax.rsqrt(var + BN_EPS)
        shift = beta - mean * scale                             # conv bias cancels
        return jnp.stack([scale, shift], axis=0)                # (2, co_pad) f32

    def _bn_silu(self, y, ss, out_dtype):
        n_pad, co = y.shape
        tn = self.tn
        return pl.pallas_call(
            _bn_silu_kernel,
            out_shape=jax.ShapeDtypeStruct((n_pad, co), out_dtype),
            grid=(n_pad // tn,),
            in_specs=[pl.BlockSpec((tn, co), lambda i: (i, 0)),
                      pl.BlockSpec((2, co), lambda i: (0, 0))],
            out_specs=pl.BlockSpec((tn, co), lambda i: (i, 0)),
            compiler_params=pltpu.CompilerParams(
                dimension_semantics=("parallel",), vmem_limit_bytes=VMEM_LIMIT),
        )(y, ss)

    def _bn_silu_res_matmul(self, y, ss3, xres, wres):
        n_pad, co = y.shape
        tn = self.tn
        cr = xres.shape[1]
        return pl.pallas_call(
            _bn_silu_res_matmul_kernel,
            out_shape=jax.ShapeDtypeStruct((n_pad, co), jnp.float32),
            grid=(n_pad // tn,),
            in_specs=[pl.BlockSpec((tn, co), lambda i: (i, 0)),
                      pl.BlockSpec((3, co), lambda i: (0, 0)),
                      pl.BlockSpec((tn, cr), lambda i: (i, 0)),
                      pl.BlockSpec((cr, co), lambda i: (0, 0))],
            out_specs=pl.BlockSpec((tn, co), lambda i: (i, 0)),
            compiler_params=pltpu.CompilerParams(
                dimension_semantics=("parallel",), vmem_limit_bytes=VMEM_LIMIT),
        )(y, ss3, xres, wres)

    def _bn_silu_res_add(self, y, ss, xres):
        n_pad, co = y.shape
        tn = self.tn
        return pl.pallas_call(
            _bn_silu_res_add_kernel,
            out_shape=jax.ShapeDtypeStruct((n_pad, co), jnp.float32),
            grid=(n_pad // tn,),
            in_specs=[pl.BlockSpec((tn, co), lambda i: (i, 0)),
                      pl.BlockSpec((2, co), lambda i: (0, 0)),
                      pl.BlockSpec((tn, co), lambda i: (i, 0))],
            out_specs=pl.BlockSpec((tn, co), lambda i: (i, 0)),
            compiler_params=pltpu.CompilerParams(
                dimension_semantics=("parallel",), vmem_limit_bytes=VMEM_LIMIT),
        )(y, ss, xres)

    # -------------------- forward --------------------
    def __call__(self, feats, coords, time_emb=None):
        n = feats.shape[0]
        tn = self.tn
        n_tiles = -(-n // tn)
        n_split = 2 if n_tiles >= 2 else 1        # lets v7x shard pass 1 over both TCs
        n_pad = _round_up(n, n_split * tn)
        inner = n_pad // (tn * n_split)

        nbr = build_kernel_map(coords, self.D)                        # [N, K]

        def pad_nbr(k_pad):
            return (jnp.full((n_pad, k_pad), -1, jnp.int32)
                    .at[:n, :self.K].set(nbr))

        def gather_bf16(src_bf16, nbr_p):
            # TODO(synk): still materialized in HBM by XLA (bf16); see header note.
            safe = jnp.maximum(nbr_p, 0)
            g = jnp.where(nbr_p[..., None] >= 0, src_bf16[safe],
                          jnp.zeros((), jnp.bfloat16))
            return g.reshape(n_pad, -1)

        # ---- block 1: concat(time_emb) -> conv3 -> BN -> SiLU ----
        if time_emb is not None:
            f1 = jnp.concatenate([feats, time_emb[coords[:, 0]]], axis=1)
        else:
            f1 = feats
        x1 = gather_bf16(f1.astype(jnp.bfloat16), pad_nbr(self.k_pad1))
        y1, st1 = self._conv_stats(x1, self.W1p, n_split, inner)
        ss1 = self._finalize_stats(st1, n, self.g1p, self.be1p)
        h = self._bn_silu(y1, ss1, jnp.bfloat16)          # [n_pad, co_pad] bf16, padded cols = 0

        # ---- block 2: conv3 -> BN -> SiLU, fused with the residual branch ----
        x2 = gather_bf16(h, pad_nbr(self.k_pad2))
        y2, st2 = self._conv_stats(x2, self.W2p, n_split, inner)
        ss2 = self._finalize_stats(st2, n, self.g2p, self.be2p)

        if self.dim != self.dim_out:
            ss2b = jnp.concatenate([ss2, self.bresp[None, :]], axis=0)    # (3, co_pad)
            xres = (jnp.zeros((n_pad, self.cin_res_pad), jnp.bfloat16)
                    .at[:n, :self.dim].set(feats.astype(jnp.bfloat16)))
            out = self._bn_silu_res_matmul(y2, ss2b, xres, self.Wresp)
        else:
            xres = (jnp.zeros((n_pad, self.co_pad), jnp.float32)
                    .at[:n, :self.dim].set(feats))
            out = self._bn_silu_res_add(y2, ss2, xres)
        return out[:n, :self.dim_out]

    # Pure-JAX reference (same math; conv inputs cast to bf16 to mirror the kernels).
    def reference(self, feats, coords, time_emb=None):
        nbr = build_kernel_map(coords, self.D)
        safe = jnp.maximum(nbr, 0)

        def gather(f):
            return jnp.where(nbr[..., None] >= 0, f[safe], 0.0)

        def block(f, W, b, gamma, beta):
            g = gather(f).astype(jnp.bfloat16)
            y = jnp.einsum('nkc,kcd->nd', g, W.astype(jnp.bfloat16),
                           preferred_element_type=jnp.float32) + b
            mean = jnp.mean(y, axis=0, keepdims=True)
            var = jnp.mean((y - mean) ** 2, axis=0, keepdims=True)
            z = (y - mean) * jax.lax.rsqrt(var + BN_EPS) * gamma + beta
            return z * jax.nn.sigmoid(z)

        f1 = (jnp.concatenate([feats, time_emb[coords[:, 0]]], axis=1)
              if time_emb is not None else feats)
        h = block(f1, self.W1, self.b1, self.gamma1, self.beta1)
        h = block(h, self.W2, self.b2, self.gamma2, self.beta2)
        if self.dim != self.dim_out:
            res = jnp.dot(feats.astype(jnp.bfloat16), self.Wres.astype(jnp.bfloat16),
                          preferred_element_type=jnp.float32) + self.bres
        else:
            res = feats
        return h + res


if __name__ == "__main__":
    key = jax.random.PRNGKey(0)
    k_feat, k_time, k_param = jax.random.split(key, 3)

    # Small sparse point cloud: B=2 fully-occupied 12x12x12 voxel grids -> N=3456 points
    # (multiple point tiles -> exercises the split/accumulate BN-stat path + padding rows).
    B, side, D = 2, 12, 3
    dim, dim_out, time_emb_dim = 4, 16, 8

    grid_pts = np.stack(np.meshgrid(np.arange(side), np.arange(side), np.arange(side),
                                    indexing="ij"), axis=-1).reshape(-1, 3)
    coords = np.concatenate([
        np.concatenate([np.full((grid_pts.shape[0], 1), b, np.int32),
                        grid_pts.astype(np.int32)], axis=1)
        for b in range(B)], axis=0)                                   # [N, 1+D]
    coords = jnp.asarray(coords, jnp.int32)
    N = coords.shape[0]                                               # 3456

    feats = jax.random.normal(k_feat, (N, dim), jnp.float32)
    time_emb = jax.random.normal(k_time, (B, time_emb_dim), jnp.float32)

    block = ResnetBlockMEPallas(dim, dim_out, D=D, time_emb_dim=time_emb_dim, key=k_param)

    out = jax.block_until_ready(block(feats, coords, time_emb=time_emb))
    assert out.shape == (N, dim_out)

    ref = jax.block_until_ready(block.reference(feats, coords, time_emb=time_emb))
    # Loose tolerance: bf16 gather/intermediates + approximate EUP reciprocal in SiLU.
    np.testing.assert_allclose(np.asarray(out), np.asarray(ref), rtol=5e-2, atol=5e-2)

    print("KERNEL_OK")
</pallas_src>

<mosaic_0001>
module attributes {stable_mosaic.version = 11 : i64} {
  func.func @_conv_stats_kernel(%arg0: i32, %arg1: i32, %arg2: memref<1024x384xbf16, #tpu.memory_space<vmem>>, %arg3: memref<384x128xbf16, #tpu.memory_space<vmem>>, %arg4: memref<1024x128xbf16, #tpu.memory_space<vmem>>, %arg5: memref<8x128xf32, #tpu.memory_space<vmem>>) attributes {dimension_semantics = [#tpu.dimension_semantics<parallel>, #tpu.dimension_semantics<arbitrary>], iteration_bounds = array<i64: 2, 2>, scalar_prefetch = 0 : i64, scratch_operands = 0 : i64, tpu.core_type = #tpu.core_type<tc>, window_params = [{transform_indices = @transform_0, window_bounds = array<i64: 1024, 384>}, {pipeline_mode = #tpu.pipeline_mode<synchronous>, transform_indices = @transform_1, window_bounds = array<i64: 384, 128>}, {transform_indices = @transform_2, window_bounds = array<i64: 1024, 128>}, {transform_indices = @transform_3, window_bounds = array<i64: 8, 128>}]} {
    %c0_i32 = arith.constant 0 : i32
    %0 = arith.cmpi eq, %arg1, %c0_i32 : i32
    %1 = arith.extui %0 : i1 to i32
    %c0_i32_0 = arith.constant 0 : i32
    %2 = arith.cmpi ne, %1, %c0_i32_0 : i32
    scf.if %2 {
      %cst_15 = arith.constant 0.000000e+00 : f32
      %19 = vector.broadcast %cst_15 : f32 to vector<8x128xf32>
      %c0_16 = arith.constant 0 : index
      %c0_17 = arith.constant 0 : index
      %20 = vector.load %arg5[%c0_16, %c0_17] : memref<8x128xf32, #tpu.memory_space<vmem>>, vector<8x128xf32>
      tpu.vector_store %arg5[%c0_16, %c0_17], %19 {strides = array<i32>} : memref<8x128xf32, #tpu.memory_space<vmem>>, vector<8x128xf32>,
    } else {
    }
    %c0 = arith.constant 0 : index
    %c0_1 = arith.constant 0 : index
    %3 = vector.load %arg2[%c0, %c0_1] : memref<1024x384xbf16, #tpu.memory_space<vmem>>, vector<1024x384xbf16>
    %c0_2 = arith.constant 0 : index
    %c0_3 = arith.constant 0 : index
    %4 = vector.load %arg3[%c0_2, %c0_3] : memref<384x128xbf16, #tpu.memory_space<vmem>>, vector<384x128xbf16>
    %cst = arith.constant dense<0.000000e+00> : vector<1024x128xf32>
    %5 = tpu.matmul %3, %4, %cst {dimension_numbers = #tpu.dot_dimension_numbers<[1], [0], [0], [1], [0, 0, 1, 1], [], []>} : vector<1024x384xbf16>, vector<384x128xbf16>, vector<1024x128xf32> -> vector<1024x128xf32>
    %6 = arith.truncf %5 : vector<1024x128xf32> to vector<1024x128xbf16>
    %c0_4 = arith.constant 0 : index
    %c0_5 = arith.constant 0 : index
    %7 = vector.load %arg4[%c0_4, %c0_5] : memref<1024x128xbf16, #tpu.memory_space<vmem>>, vector<1024x128xbf16>
    tpu.vector_store %arg4[%c0_4, %c0_5], %6 {strides = array<i32>} : memref<1024x128xbf16, #tpu.memory_space<vmem>>, vector<1024x128xbf16>,
    %c0_6 = arith.constant 0 : index
    %c0_7 = arith.constant 0 : index
    %8 = vector.load %arg5[%c0_6, %c0_7] : memref<8x128xf32, #tpu.memory_space<vmem>>, vector<1x128xf32>
    %cst_8 = arith.constant dense<0.000000e+00> : vector<128xf32>
    %9 = vector.multi_reduction <add>, %5, %cst_8 [0] : vector<1024x128xf32> to vector<128xf32>
    %10 = vector.shape_cast %9 : vector<128xf32> to vector<1x128xf32>
    %11 = arith.addf %8, %10 : vector<1x128xf32>
    %c0_9 = arith.constant 0 : index
    %c0_10 = arith.constant 0 : index
    %12 = vector.load %arg5[%c0_9, %c0_10] : memref<8x128xf32, #tpu.memory_space<vmem>>, vector<1x128xf32>
    tpu.vector_store %arg5[%c0_9, %c0_10], %11 {strides = array<i32>} : memref<8x128xf32, #tpu.memory_space<vmem>>, vector<1x128xf32>,
    %c1 = arith.constant 1 : index
    %c0_11 = arith.constant 0 : index
    %13 = vector.load %arg5[%c1, %c0_11] : memref<8x128xf32, #tpu.memory_space<vmem>>, vector<1x128xf32>
    %14 = arith.mulf %5, %5 : vector<1024x128xf32>
    %cst_12 = arith.constant dense<0.000000e+00> : vector<128xf32>
    %15 = vector.multi_reduction <add>, %14, %cst_12 [0] : vector<1024x128xf32> to vector<128xf32>
    %16 = vector.shape_cast %15 : vector<128xf32> to vector<1x128xf32>
    %17 = arith.addf %13, %16 : vector<1x128xf32>
    %c1_13 = arith.constant 1 : index
    %c0_14 = arith.constant 0 : index
    %18 = vector.load %arg5[%c1_13, %c0_14] : memref<8x128xf32, #tpu.memory_space<vmem>>, vector<1x128xf32>
    tpu.vector_store %arg5[%c1_13, %c0_14], %17 {strides = array<i32>} : memref<8x128xf32, #tpu.memory_space<vmem>>, vector<1x128xf32>,
    return
  }
  func.func @transform_0(%arg0: i32, %arg1: i32) -> (i32, i32) {
    %c2_i32 = arith.constant 2 : i32
    %0 = arith.muli %arg0, %c2_i32 : i32
    %1 = arith.addi %0, %arg1 : i32
    %c0_i32 = arith.constant 0 : i32
    %c0_i32_0 = arith.constant 0 : i32
    return %1, %c0_i32 : i32, i32
  }
  func.func @transform_1(%arg0: i32, %arg1: i32) -> (i32, i32) {
    %c0_i32 = arith.constant 0 : i32
    %c0_i32_0 = arith.constant 0 : i32
    %c0_i32_1 = arith.constant 0 : i32
    return %c0_i32, %c0_i32_0 : i32, i32
  }
  func.func @transform_2(%arg0: i32, %arg1: i32) -> (i32, i32) {
    %c2_i32 = arith.constant 2 : i32
    %0 = arith.muli %arg0, %c2_i32 : i32
    %1 = arith.addi %0, %arg1 : i32
    %c0_i32 = arith.constant 0 : i32
    %c0_i32_0 = arith.constant 0 : i32
    return %1, %c0_i32 : i32, i32
  }
  func.func @transform_3(%arg0: i32, %arg1: i32) -> (i32, i32) {
    %c0_i32 = arith.constant 0 : i32
    %c0_i32_0 = arith.constant 0 : i32
    return %arg0, %c0_i32 : i32, i32
  }
}

</mosaic_0001>

<llo_original>
// kernel: tpu_custom_call.1
$region0: #{tpu_custom_call.1}
  #allocation0 [shape = 'u32[]', space=smem, size = 0x4, offset = 0x4, fixed_abs, tag = 'smem constant byte address 0x4 - core index']
  #allocation1 [shape = 'u32[144,128]{1,0:T(1,128)}', space=vmem, size = 0x12000, scoped, tag = 'internal scratch']
  %s0 = inlined_call_operand.hbm [shape: bf16[4096,384], index: 0, kind: input, shape index: {}]
  %s1 = inlined_call_operand.hbm [shape: bf16[384,128], index: 1, kind: input, shape index: {}]
  %s2 = inlined_call_operand.hbm [shape: bf16[4096,128], index: 2, kind: output, shape index: {0}]
  %s3 = inlined_call_operand.hbm [shape: f32[16,128], index: 3, kind: output, shape index: {1}]
  %4 = xla_tuple %s2, %s3
  %s5 = sld [smem:[#allocation0]]
  $region61: #{tpu_custom_call.1} parent=0
    _
  %s7 = ssub.s32 1, %s5
  %s8 = scalar_select 0, %s7, %s5
  $region1: #{tpu_custom_call.1} parent=0
    #allocation2 [shape = 'u8[1572864]{0}', space=vmem, size = 0x180000, scoped, tag = 'input window, operand 0']
    #allocation3 [shape = 's32[2]{0}', space=sflag, size = 0x8, scoped, tag = 'scoped memory for tpu_custom_call.1']
    #allocation4 [shape = 's32[2]{0}', space=sflag, size = 0x8, scoped, tag = 'scoped memory for tpu_custom_call.1']
    #allocation5 [shape = 'u8[98304]{0}', space=vmem, size = 0x18000, scoped, tag = 'input window, operand 1, single buffered']
    #allocation6 [shape = 's32[1]{0}', space=sflag, size = 0x4, scoped, tag = 'scoped memory for tpu_custom_call.1']
    #allocation7 [shape = 'u8[524288]{0}', space=vmem, size = 0x80000, scoped, tag = 'output window, operand 0']
    #allocation8 [shape = 'u8[8192]{0}', space=vmem, size = 0x2000, scoped, tag = 'output window, operand 1']
    #allocation9 [shape = 's32[2]{0}', space=sflag, size = 0x8, scoped, tag = 'scoped memory for tpu_custom_call.1']
    %9 = vsyncpa [#allocation3], 0
    %s10 = scalar_lea.sflag [#allocation3], 1
    %11 = vsyncpa %s10, 0
    %12 = vsyncpa [#allocation6], 0
    %13 = vsyncpa [#allocation4], 0
    %s14 = scalar_lea.sflag [#allocation4], 1
    %15 = vsyncpa %s14, 0
    %16 = vsyncpa [#allocation9], 0
    %s17 = scalar_lea.sflag [#allocation9], 1
    %18 = vsyncpa %s17, 0
    loop: start=0, step=1, limit=6
    $region2: #{tpu_custom_call.1} parent=1 // loop_pre_header
      _
    $region3: #{tpu_custom_call.1} parent=1 // loop_header
      %s20 = sphi 0, %s24
      %p21 = scmp.ge.s32.totalorder %s20, 6
      %s27 = sphi 0, %s39
      %s28 = sphi 0, %s35
      %s29 = sphi 0, %s27
      %s30 = sphi 0, %s28
      %s31 = sphi 0, %s29
      %s32 = sphi 0, %s30
      %s46 = sphi 0, %s48
      %s49 = sphi 0, %s46
      %s50 = sphi 0, %s49
      %s66 = sphi 0, %s50
      %s70 = sphi 0, %s70
      %s72 = sphi 0, %s70
      %s73 = sphi 0, %s72
      %s87 = sphi 0, %s73
      %s97 = sphi 0, %s99
      %s100 = sphi 0, %s97
      %s101 = sphi 0, %s100
      %s117 = sphi 0, %s101
      %s123 = sphi 0, %s125
      %s126 = sphi 0, %s123
      %s127 = sphi 0, %s126
      %s143 = sphi 0, %s127
    $region4: #{tpu_custom_call.1} parent=1 // loop_header_branch
      %23 = sbr.rel (%p21) target = $region8
    $region5: #{tpu_custom_call.1} parent=1 // loop_body
      %s25 = ssub.s32 %s20, 1
      %s26 = ssub.s32 %s20, 2
      %s33 = sadd.s32 1, %s28
      %p34 = scmp.ge.s32.totalorder %s33, 2
      %s35 = scalar_select %p34, 0, %s33
      %s36 = sadd.s32 1, %s27
      %s37 = scalar_select %p34, %s36, %s27
      %p38 = scmp.ge.s32.totalorder %s37, 2
      %s39 = scalar_select %p38, 0, %s37
      %s40 = smul.u32 %s27, 2
      %s41 = sadd.s32 %s40, %s28
      %s42 = smul.u32 %s39, 2
      %s43 = sadd.s32 %s42, %s35
      %s44 = ssub.s32 %s41, %s43
      %p45 = scmp.eq.s32.totalorder %s44, 0
      %s47 = sadd.s32 %s46, 1
      %s48 = scalar_select %p45, %s46, %s47
      %p51 = pneg %p45
      %p52 = scmp.eq.s32.totalorder %s20, 3
      %p53 = por %p51, %p52
      %p54 = scmp.ne.s32.totalorder %s46, %s49
      %p55 = scmp.eq.s32.totalorder %s20, 0
      %p56 = por %p54, %p55
      %p57 = scmp.ne.s32.totalorder %s46, %s49
      %p58 = scmp.eq.s32.totalorder %s25, 3
      %p59 = por %p57, %p58
      %p60 = scmp.ne.s32.totalorder %s49, %s50
      %p61 = scmp.eq.s32.totalorder %s25, 0
      %p62 = por %p60, %p61
      %p63 = scmp.ne.s32.totalorder %s49, %s50
      %p64 = scmp.eq.s32.totalorder %s26, 3
      %p65 = por %p63, %p64
      %p67 = scmp.ne.s32.totalorder %s50, %s66
      %p68 = scmp.eq.s32.totalorder %s26, 0
      %p69 = por %p67, %p68
      %s71 = sadd.s32 %s70, 1
      %p74 = scmp.eq.s32.totalorder %s20, 3
      %p75 = scmp.ne.s32.totalorder %s70, %s72
      %p76 = scmp.eq.s32.totalorder %s20, 0
      %p77 = por %p75, %p76
      %p78 = scmp.ne.s32.totalorder %s70, %s72
      %p79 = scmp.eq.s32.totalorder %s25, 3
      %p80 = por %p78, %p79
      %p81 = scmp.ne.s32.totalorder %s72, %s73
      %p82 = scmp.eq.s32.totalorder %s25, 0
      %p83 = por %p81, %p82
      %p84 = scmp.ne.s32.totalorder %s72, %s73
      %p85 = scmp.eq.s32.totalorder %s26, 3
      %p86 = por %p84, %p85
      %p88 = scmp.ne.s32.totalorder %s73, %s87
      %p89 = scmp.eq.s32.totalorder %s26, 0
      %p90 = por %p88, %p89
      %s91 = smul.u32 %s27, 2
      %s92 = sadd.s32 %s91, %s28
      %s93 = smul.u32 %s39, 2
      %s94 = sadd.s32 %s93, %s35
      %s95 = ssub.s32 %s92, %s94
      %p96 = scmp.eq.s32.totalorder %s95, 0
      %s98 = sadd.s32 %s97, 1
      %s99 = scalar_select %p96, %s97, %s98
      %p102 = pneg %p96
      %p103 = scmp.eq.s32.totalorder %s20, 3
      %p104 = por %p102, %p103
      %p105 = scmp.ne.s32.totalorder %s97, %s100
      %p106 = scmp.eq.s32.totalorder %s20, 0
      %p107 = por %p105, %p106
      %p108 = scmp.ne.s32.totalorder %s97, %s100
      %p109 = scmp.eq.s32.totalorder %s25, 3
      %p110 = por %p108, %p109
      %p111 = scmp.ne.s32.totalorder %s100, %s101
      %p112 = scmp.eq.s32.totalorder %s25, 0
      %p113 = por %p111, %p112
      %p114 = scmp.ne.s32.totalorder %s100, %s101
      %p115 = scmp.eq.s32.totalorder %s26, 3
      %p116 = por %p114, %p115
      %p118 = scmp.ne.s32.totalorder %s101, %s117
      %p119 = scmp.eq.s32.totalorder %s26, 0
      %p120 = por %p118, %p119
      %s121 = ssub.s32 %s27, %s39
      %p122 = scmp.eq.s32.totalorder %s121, 0
      %s124 = sadd.s32 %s123, 1
      %s125 = scalar_select %p122, %s123, %s124
      %p128 = pneg %p122
      %p129 = scmp.eq.s32.totalorder %s20, 3
      %p130 = por %p128, %p129
      %p131 = scmp.ne.s32.totalorder %s123, %s126
      %p132 = scmp.eq.s32.totalorder %s20, 0
      %p133 = por %p131, %p132
      %p134 = scmp.ne.s32.totalorder %s123, %s126
      %p135 = scmp.eq.s32.totalorder %s25, 3
      %p136 = por %p134, %p135
      %p137 = scmp.ne.s32.totalorder %s126, %s127
      %p138 = scmp.eq.s32.totalorder %s25, 0
      %p139 = por %p137, %p138
      %p140 = scmp.ne.s32.totalorder %s126, %s127
      %p141 = scmp.eq.s32.totalorder %s26, 3
      %p142 = por %p140, %p141
      %p144 = scmp.ne.s32.totalorder %s127, %s143
      %p145 = scmp.eq.s32.totalorder %s26, 0
      %p146 = por %p144, %p145
      %p147 = scmp.le.s32.totalorder 1, %s20
      %p148 = scmp.lt.s32.totalorder %s20, 5
      %p149 = pnand %p147, %p148
      %p150 = pneg %p149
      // Predicated region
      $region9: #{tpu_custom_call.1} parent=5 // pred_check
        _
      $region10: #{tpu_custom_call.1} parent=5 // pred_check_branch
        %152 = sbr.rel (%p149) target = $region12
      $region11: #{tpu_custom_call.1} parent=5 // pred_region
        %s153 = ssub.s32 %s20, 1
        // Predicated region
        $region13: #{tpu_custom_call.1} parent=11 // pred_check
          %p154 = pneg %p83
        $region14: #{tpu_custom_call.1} parent=11 // pred_check_branch
          %156 = sbr.rel (%p154) target = $region16
        $region15: #{tpu_custom_call.1} parent=11 // pred_region
          %s158 = ssub.s32 3072, 3072
          %159 = vsyncadd [#allocation6], %s158
          %s160 = sshll.u32 [#allocation5], 4
          %s161 = int_to_ptr.vmem [resolvable:$true] %s160
          %166 = dma.hbm_to_vmem [thread:$0]  %s1, 3072, %s161, [#allocation6], 64, 64, 4
        $region16: #{tpu_custom_call.1} parent=11 // pred_fallthru
          _
      $region12: #{tpu_custom_call.1} parent=5 // pred_fallthru
        _
      %p167 = scmp.lt.s32.totalorder %s20, 4
      // Predicated region
      $region17: #{tpu_custom_call.1} parent=5 // pred_check
        %p168 = pneg %p167
      $region18: #{tpu_custom_call.1} parent=5 // pred_check_branch
        %170 = sbr.rel (%p168) target = $region20
      $region19: #{tpu_custom_call.1} parent=5 // pred_region
        // Predicated region
        $region21: #{tpu_custom_call.1} parent=19 // pred_check
          %p171 = pneg %p56
        $region22: #{tpu_custom_call.1} parent=19 // pred_check_branch
          %173 = sbr.rel (%p171) target = $region24
        $region23: #{tpu_custom_call.1} parent=19 // pred_region
          %s174 = sand.u32 %s46, 1
          %s175 = scalar_lea.sflag [#allocation3], %s174
          %s176 = sand.u32 %s46, 1
          %s177 = smul.addr %s176, 1536
          %s178 = scalar_lea.vmem [#allocation2], %s177
          %s179 = smul.u32 %s27, 2
          %s180 = sadd.s32 %s179, %s28
          %s181 = smul.u32 128, %s180
          %s183 = ssub.s32 24576, 24576
          %184 = vsyncadd %s175, %s183
          %s185 = smul.addr %s181, 3
          %s186 = smul.addr %s185, 64
          %s187 = scalar_lea.hbm %s0, %s186
          %s188 = sshll.u32 %s178, 4
          %s189 = int_to_ptr.vmem [resolvable:$true] %s188
          %194 = dma.hbm_to_vmem [thread:$0]  %s187, 24576, %s189, %s175, 192, 192, 12
        $region24: #{tpu_custom_call.1} parent=19 // pred_fallthru
          _
      $region20: #{tpu_custom_call.1} parent=5 // pred_fallthru
        _
      %p195 = scmp.le.s32.totalorder 1, %s20
      %p196 = scmp.lt.s32.totalorder %s20, 5
      %p197 = pnand %p195, %p196
      %p198 = pneg %p197
      // Predicated region
      $region25: #{tpu_custom_call.1} parent=5 // pred_check
        _
      $region26: #{tpu_custom_call.1} parent=5 // pred_check_branch
        %200 = sbr.rel (%p197) target = $region28
      $region27: #{tpu_custom_call.1} parent=5 // pred_region
        %s201 = ssub.s32 %s20, 1
        %s202 = sand.u32 %s49, 1
        %s203 = scalar_lea.sflag [#allocation3], %s202
        %s204 = sand.u32 %s49, 1
        %s205 = smul.addr %s204, 1536
        %s206 = scalar_lea.vmem [#allocation2], %s205
        // Predicated region
        $region29: #{tpu_custom_call.1} parent=27 // pred_check
          %p207 = pneg %p62
        $region30: #{tpu_custom_call.1} parent=27 // pred_check_branch
          %209 = sbr.rel (%p207) target = $region32
        $region31: #{tpu_custom_call.1} parent=27 // pred_region
          %210 = dma.done %s203, 24576
        $region32: #{tpu_custom_call.1} parent=27 // pred_fallthru
          _
        // Predicated region
        $region33: #{tpu_custom_call.1} parent=27 // pred_check
          %p211 = pneg %p83
        $region34: #{tpu_custom_call.1} parent=27 // pred_check_branch
          %213 = sbr.rel (%p211) target = $region36
        $region35: #{tpu_custom_call.1} parent=27 // pred_region
          %214 = dma.done [#allocation6], 3072
        $region36: #{tpu_custom_call.1} parent=27 // pred_fallthru
          _
        %s215 = sand.u32 %s49, 1
        %s216 = scalar_lea.sflag [#allocation3], %s215
        %s217 = sand.u32 %s49, 1
        %s218 = smul.addr %s217, 1536
        %s219 = scalar_lea.vmem [#allocation2], %s218
        %p220 = pneg %p62
        %p221 = pneg %p59
        %p222 = pneg %p83
        %p223 = pneg %p80
        %p224 = pneg %p113
        %p225 = pneg %p110
        %s226 = sand.u32 %s100, 1
        %s227 = scalar_lea.sflag [#allocation4], %s226
        %s228 = sand.u32 %s100, 1
        %s229 = smul.addr %s228, 512
        %s230 = scalar_lea.vmem [#allocation7], %s229
        %p231 = pneg %p139
        %p232 = pneg %p136
        %s233 = sand.u32 %s126, 1
        %s234 = scalar_lea.sflag [#allocation9], %s233
        %s235 = sand.u32 %s126, 1
        %s236 = smul.addr %s235, 8
        %s237 = scalar_lea.vmem [#allocation8], %s236
        %s238 = smul.u32 %s29, 2
        %s239 = sadd.s32 %s238, %s30
        %s240 = smul.u32 128, %s239
        %s241 = smul.u32 %s29, 2
        %s242 = sadd.s32 %s241, %s30
        %s243 = smul.u32 128, %s242
        %p245 = scmp.eq.s32.totalorder %s30, 0
        // Predicated region
        $region37: #{tpu_custom_call.1} parent=27 // pred_check
          %p246 = pneg %p245
        $region38: #{tpu_custom_call.1} parent=27 // pred_check_branch
          %248 = sbr.rel (%p246) target = $region40
        $region39: #{tpu_custom_call.1} parent=27 // pred_region
          %249 = vst [vmem:[%s237] sm:$0xff] 0.0
        $region40: #{tpu_custom_call.1} parent=27 // pred_fallthru
          _
        %v250 = vld [vmem:[%s206] sm:$0xff]
        %v251 = vld [vmem:[%s206 + $0x8] sm:$0xf]
        %v252 = vld [vmem:[%s206 + $0xc] sm:$0xff]
        %v253 = vld [vmem:[%s206 + $0x14] sm:$0xf]
        %v254 = vld [vmem:[%s206 + $0x18] sm:$0xff]
        %v255 = vld [vmem:[%s206 + $0x20] sm:$0xf]
        %v256 = vld [vmem:[%s206 + $0x24] sm:$0xff]
        %v257 = vld [vmem:[%s206 + $0x2c] sm:$0xf]
        %v258 = vld [vmem:[%s206 + $0x30] sm:$0xff]
        %v259 = vld [vmem:[%s206 + $0x38] sm:$0xf]
        %v260 = vld [vmem:[%s206 + $0x3c] sm:$0xff]
        %v261 = vld [vmem:[%s206 + $0x44] sm:$0xf]
        %v262 = vld [vmem:[%s206 + $0x48] sm:$0xff]
        %v263 = vld [vmem:[%s206 + $0x50] sm:$0xf]
        %v264 = vld [vmem:[%s206 + $0x54] sm:$0xff]
        %v265 = vld [vmem:[%s206 + $0x5c] sm:$0xf]
        %v266 = vld [vmem:[%s206 + $0x60] sm:$0xff]
        %v267 = vld [vmem:[%s206 + $0x68] sm:$0xf]
        %v268 = vld [vmem:[%s206 + $0x6c] sm:$0xff]
        %v269 = vld [vmem:[%s206 + $0x74] sm:$0xf]
        %v270 = vld [vmem:[%s206 + $0x78] sm:$0xff]
        %v271 = vld [vmem:[%s206 + $0x80] sm:$0xf]
        %v272 = vld [vmem:[%s206 + $0x84] sm:$0xff]
        %v273 = vld [vmem:[%s206 + $0x8c] sm:$0xf]
        %v274 = vld [vmem:[%s206 + $0x90] sm:$0xff]
        %v275 = vld [vmem:[%s206 + $0x98] sm:$0xf]
        %v276 = vld [vmem:[%s206 + $0x9c] sm:$0xff]
        %v277 = vld [vmem:[%s206 + $0xa4] sm:$0xf]
        %v278 = vld [vmem:[%s206 + $0xa8] sm:$0xff]
        %v279 = vld [vmem:[%s206 + $0xb0] sm:$0xf]
        %v280 = vld [vmem:[%s206 + $0xb4] sm:$0xff]
        %v281 = vld [vmem:[%s206 + $0xbc] sm:$0xf]
        %v282 = vld [vmem:[%s206 + $0xc0] sm:$0xff]
        %v283 = vld [vmem:[%s206 + $0xc8] sm:$0xf]
        %v284 = vld [vmem:[%s206 + $0xcc] sm:$0xff]
        %v285 = vld [vmem:[%s206 + $0xd4] sm:$0xf]
        %v286 = vld [vmem:[%s206 + $0xd8] sm:$0xff]
        %v287 = vld [vmem:[%s206 + $0xe0] sm:$0xf]
        %v288 = vld [vmem:[%s206 + $0xe4] sm:$0xff]
        %v289 = vld [vmem:[%s206 + $0xec] sm:$0xf]
        %v290 = vld [vmem:[%s206 + $0xf0] sm:$0xff]
        %v291 = vld [vmem:[%s206 + $0xf8] sm:$0xf]
        %v292 = vld [vmem:[%s206 + $0xfc] sm:$0xff]
        %v293 = vld [vmem:[%s206 + $0x104] sm:$0xf]
        %v294 = vld [vmem:[%s206 + $0x108] sm:$0xff]
        %v295 = vld [vmem:[%s206 + $0x110] sm:$0xf]
        %v296 = vld [vmem:[%s206 + $0x114] sm:$0xff]
        %v297 = vld [vmem:[%s206 + $0x11c] sm:$0xf]
        %v298 = vld [vmem:[%s206 + $0x120] sm:$0xff]
        %v299 = vld [vmem:[%s206 + $0x128] sm:$0xf]
        %v300 = vld [vmem:[%s206 + $0x12c] sm:$0xff]
        %v301 = vld [vmem:[%s206 + $0x134] sm:$0xf]
        %v302 = vld [vmem:[%s206 + $0x138] sm:$0xff]
        %v303 = vld [vmem:[%s206 + $0x140] sm:$0xf]
        %v304 = vld [vmem:[%s206 + $0x144] sm:$0xff]
        %v305 = vld [vmem:[%s206 + $0x14c] sm:$0xf]
        %v306 = vld [vmem:[%s206 + $0x150] sm:$0xff]
        %v307 = vld [vmem:[%s206 + $0x158] sm:$0xf]
        %v308 = vld [vmem:[%s206 + $0x15c] sm:$0xff]
        %v309 = vld [vmem:[%s206 + $0x164] sm:$0xf]
        %v310 = vld [vmem:[%s206 + $0x168] sm:$0xff]
        %v311 = vld [vmem:[%s206 + $0x170] sm:$0xf]
        %v312 = vld [vmem:[%s206 + $0x174] sm:$0xff]
        %v313 = vld [vmem:[%s206 + $0x17c] sm:$0xf]
        %v314 = vld [vmem:[%s206 + $0x180] sm:$0xff]
        %v315 = vld [vmem:[%s206 + $0x188] sm:$0xf]
        %v316 = vld [vmem:[%s206 + $0x18c] sm:$0xff]
        %v317 = vld [vmem:[%s206 + $0x194] sm:$0xf]
        %v318 = vld [vmem:[%s206 + $0x198] sm:$0xff]
        %v319 = vld [vmem:[%s206 + $0x1a0] sm:$0xf]
        %v320 = vld [vmem:[%s206 + $0x1a4] sm:$0xff]
        %v321 = vld [vmem:[%s206 + $0x1ac] sm:$0xf]
        %v322 = vld [vmem:[%s206 + $0x1b0] sm:$0xff]
        %v323 = vld [vmem:[%s206 + $0x1b8] sm:$0xf]
        %v324 = vld [vmem:[%s206 + $0x1bc] sm:$0xff]
        %v325 = vld [vmem:[%s206 + $0x1c4] sm:$0xf]
        %v326 = vld [vmem:[%s206 + $0x1c8] sm:$0xff]
        %v327 = vld [vmem:[%s206 + $0x1d0] sm:$0xf]
        %v328 = vld [vmem:[%s206 + $0x1d4] sm:$0xff]
        %v329 = vld [vmem:[%s206 + $0x1dc] sm:$0xf]
        %v330 = vld [vmem:[%s206 + $0x1e0] sm:$0xff]
        %v331 = vld [vmem:[%s206 + $0x1e8] sm:$0xf]
        %v332 = vld [vmem:[%s206 + $0x1ec] sm:$0xff]
        %v333 = vld [vmem:[%s206 + $0x1f4] sm:$0xf]
        %v334 = vld [vmem:[%s206 + $0x1f8] sm:$0xff]
        %v335 = vld [vmem:[%s206 + $0x200] sm:$0xf]
        %v336 = vld [vmem:[%s206 + $0x204] sm:$0xff]
        %v337 = vld [vmem:[%s206 + $0x20c] sm:$0xf]
        %v338 = vld [vmem:[%s206 + $0x210] sm:$0xff]
        %v339 = vld [vmem:[%s206 + $0x218] sm:$0xf]
        %v340 = vld [vmem:[%s206 + $0x21c] sm:$0xff]
        %v341 = vld [vmem:[%s206 + $0x224] sm:$0xf]
        %v342 = vld [vmem:[%s206 + $0x228] sm:$0xff]
        %v343 = vld [vmem:[%s206 + $0x230] sm:$0xf]
        %v344 = vld [vmem:[%s206 + $0x234] sm:$0xff]
        %v345 = vld [vmem:[%s206 + $0x23c] sm:$0xf]
        %v346 = vld [vmem:[%s206 + $0x240] sm:$0xff]
        %v347 = vld [vmem:[%s206 + $0x248] sm:$0xf]
        %v348 = vld [vmem:[%s206 + $0x24c] sm:$0xff]
        %v349 = vld [vmem:[%s206 + $0x254] sm:$0xf]
        %v350 = vld [vmem:[%s206 + $0x258] sm:$0xff]
        %v351 = vld [vmem:[%s206 + $0x260] sm:$0xf]
        %v352 = vld [vmem:[%s206 + $0x264] sm:$0xff]
        %v353 = vld [vmem:[%s206 + $0x26c] sm:$0xf]
        %v354 = vld [vmem:[%s206 + $0x270] sm:$0xff]
        %v355 = vld [vmem:[%s206 + $0x278] sm:$0xf]
        %v356 = vld [vmem:[%s206 + $0x27c] sm:$0xff]
        %v357 = vld [vmem:[%s206 + $0x284] sm:$0xf]
        %v358 = vld [vmem:[%s206 + $0x288] sm:$0xff]
        %v359 = vld [vmem:[%s206 + $0x290] sm:$0xf]
        %v360 = vld [vmem:[%s206 + $0x294] sm:$0xff]
        %v361 = vld [vmem:[%s206 + $0x29c] sm:$0xf]
        %v362 = vld [vmem:[%s206 + $0x2a0] sm:$0xff]
        %v363 = vld [vmem:[%s206 + $0x2a8] sm:$0xf]
        %v364 = vld [vmem:[%s206 + $0x2ac] sm:$0xff]
        %v365 = vld [vmem:[%s206 + $0x2b4] sm:$0xf]
        %v366 = vld [vmem:[%s206 + $0x2b8] sm:$0xff]
        %v367 = vld [vmem:[%s206 + $0x2c0] sm:$0xf]
        %v368 = vld [vmem:[%s206 + $0x2c4] sm:$0xff]
        %v369 = vld [vmem:[%s206 + $0x2cc] sm:$0xf]
        %v370 = vld [vmem:[%s206 + $0x2d0] sm:$0xff]
        %v371 = vld [vmem:[%s206 + $0x2d8] sm:$0xf]
        %v372 = vld [vmem:[%s206 + $0x2dc] sm:$0xff]
        %v373 = vld [vmem:[%s206 + $0x2e4] sm:$0xf]
        %v374 = vld [vmem:[%s206 + $0x2e8] sm:$0xff]
        %v375 = vld [vmem:[%s206 + $0x2f0] sm:$0xf]
        %v376 = vld [vmem:[%s206 + $0x2f4] sm:$0xff]
        %v377 = vld [vmem:[%s206 + $0x2fc] sm:$0xf]
        %v378 = vld [vmem:[%s206 + $0x300] sm:$0xff]
        %v379 = vld [vmem:[%s206 + $0x308] sm:$0xf]
        %v380 = vld [vmem:[%s206 + $0x30c] sm:$0xff]
        %v381 = vld [vmem:[%s206 + $0x314] sm:$0xf]
        %v382 = vld [vmem:[%s206 + $0x318] sm:$0xff]
        %v383 = vld [vmem:[%s206 + $0x320] sm:$0xf]
        %v384 = vld [vmem:[%s206 + $0x324] sm:$0xff]
        %v385 = vld [vmem:[%s206 + $0x32c] sm:$0xf]
        %v386 = vld [vmem:[%s206 + $0x330] sm:$0xff]
        %v387 = vld [vmem:[%s206 + $0x338] sm:$0xf]
        %v388 = vld [vmem:[%s206 + $0x33c] sm:$0xff]
        %v389 = vld [vmem:[%s206 + $0x344] sm:$0xf]
        %v390 = vld [vmem:[%s206 + $0x348] sm:$0xff]
        %v391 = vld [vmem:[%s206 + $0x350] sm:$0xf]
        %v392 = vld [vmem:[%s206 + $0x354] sm:$0xff]
        %v393 = vld [vmem:[%s206 + $0x35c] sm:$0xf]
        %v394 = vld [vmem:[%s206 + $0x360] sm:$0xff]
        %v395 = vld [vmem:[%s206 + $0x368] sm:$0xf]
        %v396 = vld [vmem:[%s206 + $0x36c] sm:$0xff]
        %v397 = vld [vmem:[%s206 + $0x374] sm:$0xf]
        %v398 = vld [vmem:[%s206 + $0x378] sm:$0xff]
        %v399 = vld [vmem:[%s206 + $0x380] sm:$0xf]
        %v400 = vld [vmem:[%s206 + $0x384] sm:$0xff]
        %v401 = vld [vmem:[%s206 + $0x38c] sm:$0xf]
        %v402 = vld [vmem:[%s206 + $0x390] sm:$0xff]
        %v403 = vld [vmem:[%s206 + $0x398] sm:$0xf]
        %v404 = vld [vmem:[%s206 + $0x39c] sm:$0xff]
        %v405 = vld [vmem:[%s206 + $0x3a4] sm:$0xf]
        %v406 = vld [vmem:[%s206 + $0x3a8] sm:$0xff]
        %v407 = vld [vmem:[%s206 + $0x3b0] sm:$0xf]
        %v408 = vld [vmem:[%s206 + $0x3b4] sm:$0xff]
        %v409 = vld [vmem:[%s206 + $0x3bc] sm:$0xf]
        %v410 = vld [vmem:[%s206 + $0x3c0] sm:$0xff]
        %v411 = vld [vmem:[%s206 + $0x3c8] sm:$0xf]
        %v412 = vld [vmem:[%s206 + $0x3cc] sm:$0xff]
        %v413 = vld [vmem:[%s206 + $0x3d4] sm:$0xf]
        %v414 = vld [vmem:[%s206 + $0x3d8] sm:$0xff]
        %v415 = vld [vmem:[%s206 + $0x3e0] sm:$0xf]
        %v416 = vld [vmem:[%s206 + $0x3e4] sm:$0xff]
        %v417 = vld [vmem:[%s206 + $0x3ec] sm:$0xf]
        %v418 = vld [vmem:[%s206 + $0x3f0] sm:$0xff]
        %v419 = vld [vmem:[%s206 + $0x3f8] sm:$0xf]
        %v420 = vld [vmem:[%s206 + $0x3fc] sm:$0xff]
        %v421 = vld [vmem:[%s206 + $0x404] sm:$0xf]
        %v422 = vld [vmem:[%s206 + $0x408] sm:$0xff]
        %v423 = vld [vmem:[%s206 + $0x410] sm:$0xf]
        %v424 = vld [vmem:[%s206 + $0x414] sm:$0xff]
        %v425 = vld [vmem:[%s206 + $0x41c] sm:$0xf]
        %v426 = vld [vmem:[%s206 + $0x420] sm:$0xff]
        %v427 = vld [vmem:[%s206 + $0x428] sm:$0xf]
        %v428 = vld [vmem:[%s206 + $0x42c] sm:$0xff]
        %v429 = vld [vmem:[%s206 + $0x434] sm:$0xf]
        %v430 = vld [vmem:[%s206 + $0x438] sm:$0xff]
        %v431 = vld [vmem:[%s206 + $0x440] sm:$0xf]
        %v432 = vld [vmem:[%s206 + $0x444] sm:$0xff]
        %v433 = vld [vmem:[%s206 + $0x44c] sm:$0xf]
        %v434 = vld [vmem:[%s206 + $0x450] sm:$0xff]
        %v435 = vld [vmem:[%s206 + $0x458] sm:$0xf]
        %v436 = vld [vmem:[%s206 + $0x45c] sm:$0xff]
        %v437 = vld [vmem:[%s206 + $0x464] sm:$0xf]
        %v438 = vld [vmem:[%s206 + $0x468] sm:$0xff]
        %v439 = vld [vmem:[%s206 + $0x470] sm:$0xf]
        %v440 = vld [vmem:[%s206 + $0x474] sm:$0xff]
        %v441 = vld [vmem:[%s206 + $0x47c] sm:$0xf]
        %v442 = vld [vmem:[%s206 + $0x480] sm:$0xff]
        %v443 = vld [vmem:[%s206 + $0x488] sm:$0xf]
        %v444 = vld [vmem:[%s206 + $0x48c] sm:$0xff]
        %v445 = vld [vmem:[%s206 + $0x494] sm:$0xf]
        %v446 = vld [vmem:[%s206 + $0x498] sm:$0xff]
        %v447 = vld [vmem:[%s206 + $0x4a0] sm:$0xf]
        %v448 = vld [vmem:[%s206 + $0x4a4] sm:$0xff]
        %v449 = vld [vmem:[%s206 + $0x4ac] sm:$0xf]
        %v450 = vld [vmem:[%s206 + $0x4b0] sm:$0xff]
        %v451 = vld [vmem:[%s206 + $0x4b8] sm:$0xf]
        %v452 = vld [vmem:[%s206 + $0x4bc] sm:$0xff]
        %v453 = vld [vmem:[%s206 + $0x4c4] sm:$0xf]
        %v454 = vld [vmem:[%s206 + $0x4c8] sm:$0xff]
        %v455 = vld [vmem:[%s206 + $0x4d0] sm:$0xf]
        %v456 = vld [vmem:[%s206 + $0x4d4] sm:$0xff]
        %v457 = vld [vmem:[%s206 + $0x4dc] sm:$0xf]
        %v458 = vld [vmem:[%s206 + $0x4e0] sm:$0xff]
        %v459 = vld [vmem:[%s206 + $0x4e8] sm:$0xf]
        %v460 = vld [vmem:[%s206 + $0x4ec] sm:$0xff]
        %v461 = vld [vmem:[%s206 + $0x4f4] sm:$0xf]
        %v462 = vld [vmem:[%s206 + $0x4f8] sm:$0xff]
        %v463 = vld [vmem:[%s206 + $0x500] sm:$0xf]
        %v464 = vld [vmem:[%s206 + $0x504] sm:$0xff]
        %v465 = vld [vmem:[%s206 + $0x50c] sm:$0xf]
        %v466 = vld [vmem:[%s206 + $0x510] sm:$0xff]
        %v467 = vld [vmem:[%s206 + $0x518] sm:$0xf]
        %v468 = vld [vmem:[%s206 + $0x51c] sm:$0xff]
        %v469 = vld [vmem:[%s206 + $0x524] sm:$0xf]
        %v470 = vld [vmem:[%s206 + $0x528] sm:$0xff]
        %v471 = vld [vmem:[%s206 + $0x530] sm:$0xf]
        %v472 = vld [vmem:[%s206 + $0x534] sm:$0xff]
        %v473 = vld [vmem:[%s206 + $0x53c] sm:$0xf]
        %v474 = vld [vmem:[%s206 + $0x540] sm:$0xff]
        %v475 = vld [vmem:[%s206 + $0x548] sm:$0xf]
        %v476 = vld [vmem:[%s206 + $0x54c] sm:$0xff]
        %v477 = vld [vmem:[%s206 + $0x554] sm:$0xf]
        %v478 = vld [vmem:[%s206 + $0x558] sm:$0xff]
        %v479 = vld [vmem:[%s206 + $0x560] sm:$0xf]
        %v480 = vld [vmem:[%s206 + $0x564] sm:$0xff]
        %v481 = vld [vmem:[%s206 + $0x56c] sm:$0xf]
        %v482 = vld [vmem:[%s206 + $0x570] sm:$0xff]
        %v483 = vld [vmem:[%s206 + $0x578] sm:$0xf]
        %v484 = vld [vmem:[%s206 + $0x57c] sm:$0xff]
        %v485 = vld [vmem:[%s206 + $0x584] sm:$0xf]
        %v486 = vld [vmem:[%s206 + $0x588] sm:$0xff]
        %v487 = vld [vmem:[%s206 + $0x590] sm:$0xf]
        %v488 = vld [vmem:[%s206 + $0x594] sm:$0xff]
        %v489 = vld [vmem:[%s206 + $0x59c] sm:$0xf]
        %v490 = vld [vmem:[%s206 + $0x5a0] sm:$0xff]
        %v491 = vld [vmem:[%s206 + $0x5a8] sm:$0xf]
        %v492 = vld [vmem:[%s206 + $0x5ac] sm:$0xff]
        %v493 = vld [vmem:[%s206 + $0x5b4] sm:$0xf]
        %v494 = vld [vmem:[%s206 + $0x5b8] sm:$0xff]
        %v495 = vld [vmem:[%s206 + $0x5c0] sm:$0xf]
        %v496 = vld [vmem:[%s206 + $0x5c4] sm:$0xff]
        %v497 = vld [vmem:[%s206 + $0x5cc] sm:$0xf]
        %v498 = vld [vmem:[%s206 + $0x5d0] sm:$0xff]
        %v499 = vld [vmem:[%s206 + $0x5d8] sm:$0xf]
        %v500 = vld [vmem:[%s206 + $0x5dc] sm:$0xff]
        %v501 = vld [vmem:[%s206 + $0x5e4] sm:$0xf]
        %v502 = vld [vmem:[%s206 + $0x5e8] sm:$0xff]
        %v503 = vld [vmem:[%s206 + $0x5f0] sm:$0xf]
        %v504 = vld [vmem:[%s206 + $0x5f4] sm:$0xff]
        %v505 = vld [vmem:[%s206 + $0x5fc] sm:$0xf]
        %v506 = vld [vmem:[#allocation5] sm:$0xf]
        %v507 = vld [vmem:[#allocation5 + $0x4] sm:$0xf]
        %v508 = vld [vmem:[#allocation5 + $0x8] sm:$0xf]
        %v509 = vld [vmem:[#allocation5 + $0xc] sm:$0xf]
        %v510 = vld [vmem:[#allocation5 + $0x10] sm:$0xf]
        %v511 = vld [vmem:[#allocation5 + $0x14] sm:$0xf]
        %v512 = vld [vmem:[#allocation5 + $0x18] sm:$0xf]
        %v513 = vld [vmem:[#allocation5 + $0x1c] sm:$0xf]
        %v514 = vld [vmem:[#allocation5 + $0x20] sm:$0xf]
        %v515 = vld [vmem:[#allocation5 + $0x24] sm:$0xf]
        %v516 = vld [vmem:[#allocation5 + $0x28] sm:$0xf]
        %v517 = vld [vmem:[#allocation5 + $0x2c] sm:$0xf]
        %v518 = vld [vmem:[#allocation5 + $0x30] sm:$0xf]
        %v519 = vld [vmem:[#allocation5 + $0x34] sm:$0xf]
        %v520 = vld [vmem:[#allocation5 + $0x38] sm:$0xf]
        %v521 = vld [vmem:[#allocation5 + $0x3c] sm:$0xf]
        %v522 = vld [vmem:[#allocation5 + $0x40] sm:$0xf]
        %v523 = vld [vmem:[#allocation5 + $0x44] sm:$0xf]
        %v524 = vld [vmem:[#allocation5 + $0x48] sm:$0xf]
        %v525 = vld [vmem:[#allocation5 + $0x4c] sm:$0xf]
        %v526 = vld [vmem:[#allocation5 + $0x50] sm:$0xf]
        %v527 = vld [vmem:[#allocation5 + $0x54] sm:$0xf]
        %v528 = vld [vmem:[#allocation5 + $0x58] sm:$0xf]
        %v529 = vld [vmem:[#allocation5 + $0x5c] sm:$0xf]
        %v530 = vld [vmem:[#allocation5 + $0x60] sm:$0xf]
        %v531 = vld [vmem:[#allocation5 + $0x64] sm:$0xf]
        %v532 = vld [vmem:[#allocation5 + $0x68] sm:$0xf]
        %v533 = vld [vmem:[#allocation5 + $0x6c] sm:$0xf]
        %v534 = vld [vmem:[#allocation5 + $0x70] sm:$0xf]
        %v535 = vld [vmem:[#allocation5 + $0x74] sm:$0xf]
        %v536 = vld [vmem:[#allocation5 + $0x78] sm:$0xf]
        %v537 = vld [vmem:[#allocation5 + $0x7c] sm:$0xf]
        %v538 = vld [vmem:[#allocation5 + $0x80] sm:$0xf]
        %v539 = vld [vmem:[#allocation5 + $0x84] sm:$0xf]
        %v540 = vld [vmem:[#allocation5 + $0x88] sm:$0xf]
        %v541 = vld [vmem:[#allocation5 + $0x8c] sm:$0xf]
        %v542 = vld [vmem:[#allocation5 + $0x90] sm:$0xf]
        %v543 = vld [vmem:[#allocation5 + $0x94] sm:$0xf]
        %v544 = vld [vmem:[#allocation5 + $0x98] sm:$0xf]
        %v545 = vld [vmem:[#allocation5 + $0x9c] sm:$0xf]
        %v546 = vld [vmem:[#allocation5 + $0xa0] sm:$0xf]
        %v547 = vld [vmem:[#allocation5 + $0xa4] sm:$0xf]
        %v548 = vld [vmem:[#allocation5 + $0xa8] sm:$0xf]
        %v549 = vld [vmem:[#allocation5 + $0xac] sm:$0xf]
        %v550 = vld [vmem:[#allocation5 + $0xb0] sm:$0xf]
        %v551 = vld [vmem:[#allocation5 + $0xb4] sm:$0xf]
        %v552 = vld [vmem:[#allocation5 + $0xb8] sm:$0xf]
        %v553 = vld [vmem:[#allocation5 + $0xbc] sm:$0xf]
        %v810 = vunpack.c.l.b16 %v250
        %v811 = vunpack.c.h.b16 %v250
        %v812 = vunpack.c.l.b16 %v251
        %v813 = vunpack.c.l.b16 %v252
        %v814 = vunpack.c.h.b16 %v252
        %v815 = vunpack.c.l.b16 %v253
        %v816 = vunpack.c.l.b16 %v254
        %v817 = vunpack.c.h.b16 %v254
        %v818 = vunpack.c.l.b16 %v255
        %v819 = vunpack.c.l.b16 %v256
        %v820 = vunpack.c.h.b16 %v256
        %v821 = vunpack.c.l.b16 %v257
        %v822 = vunpack.c.l.b16 %v258
        %v823 = vunpack.c.h.b16 %v258
        %v824 = vunpack.c.l.b16 %v259
        %v825 = vunpack.c.l.b16 %v260
        %v826 = vunpack.c.h.b16 %v260
        %v827 = vunpack.c.l.b16 %v261
        %v828 = vunpack.c.l.b16 %v262
        %v829 = vunpack.c.h.b16 %v262
        %v830 = vunpack.c.l.b16 %v263
        %v831 = vunpack.c.l.b16 %v264
        %v832 = vunpack.c.h.b16 %v264
        %v833 = vunpack.c.l.b16 %v265
        %v834 = vunpack.c.l.b16 %v266
        %v835 = vunpack.c.h.b16 %v266
        %v836 = vunpack.c.l.b16 %v267
        %v837 = vunpack.c.l.b16 %v268
        %v838 = vunpack.c.h.b16 %v268
        %v839 = vunpack.c.l.b16 %v269
        %v840 = vunpack.c.l.b16 %v270
        %v841 = vunpack.c.h.b16 %v270
        %v842 = vunpack.c.l.b16 %v271
        %v843 = vunpack.c.l.b16 %v272
        %v844 = vunpack.c.h.b16 %v272
        %v845 = vunpack.c.l.b16 %v273
        %v846 = vunpack.c.l.b16 %v274
        %v847 = vunpack.c.h.b16 %v274
        %v848 = vunpack.c.l.b16 %v275
        %v849 = vunpack.c.l.b16 %v276
        %v850 = vunpack.c.h.b16 %v276
        %v851 = vunpack.c.l.b16 %v277
        %v852 = vunpack.c.l.b16 %v278
        %v853 = vunpack.c.h.b16 %v278
        %v854 = vunpack.c.l.b16 %v279
        %v855 = vunpack.c.l.b16 %v280
        %v856 = vunpack.c.h.b16 %v280
        %v857 = vunpack.c.l.b16 %v281
        %v858 = vunpack.c.l.b16 %v282
        %v859 = vunpack.c.h.b16 %v282
        %v860 = vunpack.c.l.b16 %v283
        %v861 = vunpack.c.l.b16 %v284
        %v862 = vunpack.c.h.b16 %v284
        %v863 = vunpack.c.l.b16 %v285
        %v864 = vunpack.c.l.b16 %v286
        %v865 = vunpack.c.h.b16 %v286
        %v866 = vunpack.c.l.b16 %v287
        %v867 = vunpack.c.l.b16 %v288
        %v868 = vunpack.c.h.b16 %v288
        %v869 = vunpack.c.l.b16 %v289
        %v870 = vunpack.c.l.b16 %v290
        %v871 = vunpack.c.h.b16 %v290
        %v872 = vunpack.c.l.b16 %v291
        %v873 = vunpack.c.l.b16 %v292
        %v874 = vunpack.c.h.b16 %v292
        %v875 = vunpack.c.l.b16 %v293
        %v876 = vunpack.c.l.b16 %v294
        %v877 = vunpack.c.h.b16 %v294
        %v878 = vunpack.c.l.b16 %v295
        %v879 = vunpack.c.l.b16 %v296
        %v880 = vunpack.c.h.b16 %v296
        %v881 = vunpack.c.l.b16 %v297
        %v882 = vunpack.c.l.b16 %v298
        %v883 = vunpack.c.h.b16 %v298
        %v884 = vunpack.c.l.b16 %v299
        %v885 = vunpack.c.l.b16 %v300
        %v886 = vunpack.c.h.b16 %v300
        %v887 = vunpack.c.l.b16 %v301
        %v888 = vunpack.c.l.b16 %v302
        %v889 = vunpack.c.h.b16 %v302
        %v890 = vunpack.c.l.b16 %v303
        %v891 = vunpack.c.l.b16 %v304
        %v892 = vunpack.c.h.b16 %v304
        %v893 = vunpack.c.l.b16 %v305
        %v894 = vunpack.c.l.b16 %v306
        %v895 = vunpack.c.h.b16 %v306
        %v896 = vunpack.c.l.b16 %v307
        %v897 = vunpack.c.l.b16 %v308
        %v898 = vunpack.c.h.b16 %v308
        %v899 = vunpack.c.l.b16 %v309
        %v900 = vunpack.c.l.b16 %v310
        %v901 = vunpack.c.h.b16 %v310
        %v902 = vunpack.c.l.b16 %v311
        %v903 = vunpack.c.l.b16 %v312
        %v904 = vunpack.c.h.b16 %v312
        %v905 = vunpack.c.l.b16 %v313
        %v906 = vunpack.c.l.b16 %v314
        %v907 = vunpack.c.h.b16 %v314
        %v908 = vunpack.c.l.b16 %v315
        %v909 = vunpack.c.l.b16 %v316
        %v910 = vunpack.c.h.b16 %v316
        %v911 = vunpack.c.l.b16 %v317
        %v912 = vunpack.c.l.b16 %v318
        %v913 = vunpack.c.h.b16 %v318
        %v914 = vunpack.c.l.b16 %v319
        %v915 = vunpack.c.l.b16 %v320
        %v916 = vunpack.c.h.b16 %v320
        %v917 = vunpack.c.l.b16 %v321
        %v918 = vunpack.c.l.b16 %v322
        %v919 = vunpack.c.h.b16 %v322
        %v920 = vunpack.c.l.b16 %v323
        %v921 = vunpack.c.l.b16 %v324
        %v922 = vunpack.c.h.b16 %v324
        %v923 = vunpack.c.l.b16 %v325
        %v924 = vunpack.c.l.b16 %v326
        %v925 = vunpack.c.h.b16 %v326
        %v926 = vunpack.c.l.b16 %v327
        %v927 = vunpack.c.l.b16 %v328
        %v928 = vunpack.c.h.b16 %v328
        %v929 = vunpack.c.l.b16 %v329
        %v930 = vunpack.c.l.b16 %v330
        %v931 = vunpack.c.h.b16 %v330
        %v932 = vunpack.c.l.b16 %v331
        %v933 = vunpack.c.l.b16 %v332
        %v934 = vunpack.c.h.b16 %v332
        %v935 = vunpack.c.l.b16 %v333
        %v936 = vunpack.c.l.b16 %v334
        %v937 = vunpack.c.h.b16 %v334
        %v938 = vunpack.c.l.b16 %v335
        %v939 = vunpack.c.l.b16 %v336
        %v940 = vunpack.c.h.b16 %v336
        %v941 = vunpack.c.l.b16 %v337
        %v942 = vunpack.c.l.b16 %v338
        %v943 = vunpack.c.h.b16 %v338
        %v944 = vunpack.c.l.b16 %v339
        %v945 = vunpack.c.l.b16 %v340
        %v946 = vunpack.c.h.b16 %v340
        %v947 = vunpack.c.l.b16 %v341
        %v948 = vunpack.c.l.b16 %v342
        %v949 = vunpack.c.h.b16 %v342
        %v950 = vunpack.c.l.b16 %v343
        %v951 = vunpack.c.l.b16 %v344
        %v952 = vunpack.c.h.b16 %v344
        %v953 = vunpack.c.l.b16 %v345
        %v954 = vunpack.c.l.b16 %v346
        %v955 = vunpack.c.h.b16 %v346
        %v956 = vunpack.c.l.b16 %v347
        %v957 = vunpack.c.l.b16 %v348
        %v958 = vunpack.c.h.b16 %v348
        %v959 = vunpack.c.l.b16 %v349
        %v960 = vunpack.c.l.b16 %v350
        %v961 = vunpack.c.h.b16 %v350
        %v962 = vunpack.c.l.b16 %v351
        %v963 = vunpack.c.l.b16 %v352
        %v964 = vunpack.c.h.b16 %v352
        %v965 = vunpack.c.l.b16 %v353
        %v966 = vunpack.c.l.b16 %v354
        %v967 = vunpack.c.h.b16 %v354
        %v968 = vunpack.c.l.b16 %v355
        %v969 = vunpack.c.l.b16 %v356
        %v970 = vunpack.c.h.b16 %v356
        %v971 = vunpack.c.l.b16 %v357
        %v972 = vunpack.c.l.b16 %v358
        %v973 = vunpack.c.h.b16 %v358
        %v974 = vunpack.c.l.b16 %v359
        %v975 = vunpack.c.l.b16 %v360
        %v976 = vunpack.c.h.b16 %v360
        %v977 = vunpack.c.l.b16 %v361
        %v978 = vunpack.c.l.b16 %v362
        %v979 = vunpack.c.h.b16 %v362
        %v980 = vunpack.c.l.b16 %v363
        %v981 = vunpack.c.l.b16 %v364
        %v982 = vunpack.c.h.b16 %v364
        %v983 = vunpack.c.l.b16 %v365
        %v984 = vunpack.c.l.b16 %v366
        %v985 = vunpack.c.h.b16 %v366
        %v986 = vunpack.c.l.b16 %v367
        %v987 = vunpack.c.l.b16 %v368
        %v988 = vunpack.c.h.b16 %v368
        %v989 = vunpack.c.l.b16 %v369
        %v990 = vunpack.c.l.b16 %v370
        %v991 = vunpack.c.h.b16 %v370
        %v992 = vunpack.c.l.b16 %v371
        %v993 = vunpack.c.l.b16 %v372
        %v994 = vunpack.c.h.b16 %v372
        %v995 = vunpack.c.l.b16 %v373
        %v996 = vunpack.c.l.b16 %v374
        %v997 = vunpack.c.h.b16 %v374
        %v998 = vunpack.c.l.b16 %v375
        %v999 = vunpack.c.l.b16 %v376
        %v1000 = vunpack.c.h.b16 %v376
        %v1001 = vunpack.c.l.b16 %v377
        %v1002 = vunpack.c.l.b16 %v378
        %v1003 = vunpack.c.h.b16 %v378
        %v1004 = vunpack.c.l.b16 %v379
        %v1005 = vunpack.c.l.b16 %v380
        %v1006 = vunpack.c.h.b16 %v380
        %v1007 = vunpack.c.l.b16 %v381
        %v1008 = vunpack.c.l.b16 %v382
        %v1009 = vunpack.c.h.b16 %v382
        %v1010 = vunpack.c.l.b16 %v383
        %v1011 = vunpack.c.l.b16 %v384
        %v1012 = vunpack.c.h.b16 %v384
        %v1013 = vunpack.c.l.b16 %v385
        %v1014 = vunpack.c.l.b16 %v386
        %v1015 = vunpack.c.h.b16 %v386
        %v1016 = vunpack.c.l.b16 %v387
        %v1017 = vunpack.c.l.b16 %v388
        %v1018 = vunpack.c.h.b16 %v388
        %v1019 = vunpack.c.l.b16 %v389
        %v1020 = vunpack.c.l.b16 %v390
        %v1021 = vunpack.c.h.b16 %v390
        %v1022 = vunpack.c.l.b16 %v391
        %v1023 = vunpack.c.l.b16 %v392
        %v1024 = vunpack.c.h.b16 %v392
        %v1025 = vunpack.c.l.b16 %v393
        %v1026 = vunpack.c.l.b16 %v394
        %v1027 = vunpack.c.h.b16 %v394
        %v1028 = vunpack.c.l.b16 %v395
        %v1029 = vunpack.c.l.b16 %v396
        %v1030 = vunpack.c.h.b16 %v396
        %v1031 = vunpack.c.l.b16 %v397
        %v1032 = vunpack.c.l.b16 %v398
        %v1033 = vunpack.c.h.b16 %v398
        %v1034 = vunpack.c.l.b16 %v399
        %v1035 = vunpack.c.l.b16 %v400
        %v1036 = vunpack.c.h.b16 %v400
        %v1037 = vunpack.c.l.b16 %v401
        %v1038 = vunpack.c.l.b16 %v402
        %v1039 = vunpack.c.h.b16 %v402
        %v1040 = vunpack.c.l.b16 %v403
        %v1041 = vunpack.c.l.b16 %v404
        %v1042 = vunpack.c.h.b16 %v404
        %v1043 = vunpack.c.l.b16 %v405
        %v1044 = vunpack.c.l.b16 %v406
        %v1045 = vunpack.c.h.b16 %v406
        %v1046 = vunpack.c.l.b16 %v407
        %v1047 = vunpack.c.l.b16 %v408
        %v1048 = vunpack.c.h.b16 %v408
        %v1049 = vunpack.c.l.b16 %v409
        %v1050 = vunpack.c.l.b16 %v410
        %v1051 = vunpack.c.h.b16 %v410
        %v1052 = vunpack.c.l.b16 %v411
        %v1053 = vunpack.c.l.b16 %v412
        %v1054 = vunpack.c.h.b16 %v412
        %v1055 = vunpack.c.l.b16 %v413
        %v1056 = vunpack.c.l.b16 %v414
        %v1057 = vunpack.c.h.b16 %v414
        %v1058 = vunpack.c.l.b16 %v415
        %v1059 = vunpack.c.l.b16 %v416
        %v1060 = vunpack.c.h.b16 %v416
        %v1061 = vunpack.c.l.b16 %v417
        %v1062 = vunpack.c.l.b16 %v418
        %v1063 = vunpack.c.h.b16 %v418
        %v1064 = vunpack.c.l.b16 %v419
        %v1065 = vunpack.c.l.b16 %v420
        %v1066 = vunpack.c.h.b16 %v420
        %v1067 = vunpack.c.l.b16 %v421
        %v1068 = vunpack.c.l.b16 %v422
        %v1069 = vunpack.c.h.b16 %v422
        %v1070 = vunpack.c.l.b16 %v423
        %v1071 = vunpack.c.l.b16 %v424
        %v1072 = vunpack.c.h.b16 %v424
        %v1073 = vunpack.c.l.b16 %v425
        %v1074 = vunpack.c.l.b16 %v426
        %v1075 = vunpack.c.h.b16 %v426
        %v1076 = vunpack.c.l.b16 %v427
        %v1077 = vunpack.c.l.b16 %v428
        %v1078 = vunpack.c.h.b16 %v428
        %v1079 = vunpack.c.l.b16 %v429
        %v1080 = vunpack.c.l.b16 %v430
        %v1081 = vunpack.c.h.b16 %v430
        %v1082 = vunpack.c.l.b16 %v431
        %v1083 = vunpack.c.l.b16 %v432
        %v1084 = vunpack.c.h.b16 %v432
        %v1085 = vunpack.c.l.b16 %v433
        %v1086 = vunpack.c.l.b16 %v434
        %v1087 = vunpack.c.h.b16 %v434
        %v1088 = vunpack.c.l.b16 %v435
        %v1089 = vunpack.c.l.b16 %v436
        %v1090 = vunpack.c.h.b16 %v436
        %v1091 = vunpack.c.l.b16 %v437
        %v1092 = vunpack.c.l.b16 %v438
        %v1093 = vunpack.c.h.b16 %v438
        %v1094 = vunpack.c.l.b16 %v439
        %v1095 = vunpack.c.l.b16 %v440
        %v1096 = vunpack.c.h.b16 %v440
        %v1097 = vunpack.c.l.b16 %v441
        %v1098 = vunpack.c.l.b16 %v442
        %v1099 = vunpack.c.h.b16 %v442
        %v1100 = vunpack.c.l.b16 %v443
        %v1101 = vunpack.c.l.b16 %v444
        %v1102 = vunpack.c.h.b16 %v444
        %v1103 = vunpack.c.l.b16 %v445
        %v1104 = vunpack.c.l.b16 %v446
        %v1105 = vunpack.c.h.b16 %v446
        %v1106 = vunpack.c.l.b16 %v447
        %v1107 = vunpack.c.l.b16 %v448
        %v1108 = vunpack.c.h.b16 %v448
        %v1109 = vunpack.c.l.b16 %v449
        %v1110 = vunpack.c.l.b16 %v450
        %v1111 = vunpack.c.h.b16 %v450
        %v1112 = vunpack.c.l.b16 %v451
        %v1113 = vunpack.c.l.b16 %v452
        %v1114 = vunpack.c.h.b16 %v452
        %v1115 = vunpack.c.l.b16 %v453
        %v1116 = vunpack.c.l.b16 %v454
        %v1117 = vunpack.c.h.b16 %v454
        %v1118 = vunpack.c.l.b16 %v455
        %v1119 = vunpack.c.l.b16 %v456
        %v1120 = vunpack.c.h.b16 %v456
        %v1121 = vunpack.c.l.b16 %v457
        %v1122 = vunpack.c.l.b16 %v458
        %v1123 = vunpack.c.h.b16 %v458
        %v1124 = vunpack.c.l.b16 %v459
        %v1125 = vunpack.c.l.b16 %v460
        %v1126 = vunpack.c.h.b16 %v460
        %v1127 = vunpack.c.l.b16 %v461
        %v1128 = vunpack.c.l.b16 %v462
        %v1129 = vunpack.c.h.b16 %v462
        %v1130 = vunpack.c.l.b16 %v463
        %v1131 = vunpack.c.l.b16 %v464
        %v1132 = vunpack.c.h.b16 %v464
        %v1133 = vunpack.c.l.b16 %v465
        %v1134 = vunpack.c.l.b16 %v466
        %v1135 = vunpack.c.h.b16 %v466
        %v1136 = vunpack.c.l.b16 %v467
        %v1137 = vunpack.c.l.b16 %v468
        %v1138 = vunpack.c.h.b16 %v468
        %v1139 = vunpack.c.l.b16 %v469
        %v1140 = vunpack.c.l.b16 %v470
        %v1141 = vunpack.c.h.b16 %v470
        %v1142 = vunpack.c.l.b16 %v471
        %v1143 = vunpack.c.l.b16 %v472
        %v1144 = vunpack.c.h.b16 %v472
        %v1145 = vunpack.c.l.b16 %v473
        %v1146 = vunpack.c.l.b16 %v474
        %v1147 = vunpack.c.h.b16 %v474
        %v1148 = vunpack.c.l.b16 %v475
        %v1149 = vunpack.c.l.b16 %v476
        %v1150 = vunpack.c.h.b16 %v476
        %v1151 = vunpack.c.l.b16 %v477
        %v1152 = vunpack.c.l.b16 %v478
        %v1153 = vunpack.c.h.b16 %v478
        %v1154 = vunpack.c.l.b16 %v479
        %v1155 = vunpack.c.l.b16 %v480
        %v1156 = vunpack.c.h.b16 %v480
        %v1157 = vunpack.c.l.b16 %v481
        %v1158 = vunpack.c.l.b16 %v482
        %v1159 = vunpack.c.h.b16 %v482
        %v1160 = vunpack.c.l.b16 %v483
        %v1161 = vunpack.c.l.b16 %v484
        %v1162 = vunpack.c.h.b16 %v484
        %v1163 = vunpack.c.l.b16 %v485
        %v1164 = vunpack.c.l.b16 %v486
        %v1165 = vunpack.c.h.b16 %v486
        %v1166 = vunpack.c.l.b16 %v487
        %v1167 = vunpack.c.l.b16 %v488
        %v1168 = vunpack.c.h.b16 %v488
        %v1169 = vunpack.c.l.b16 %v489
        %v1170 = vunpack.c.l.b16 %v490
        %v1171 = vunpack.c.h.b16 %v490
        %v1172 = vunpack.c.l.b16 %v491
        %v1173 = vunpack.c.l.b16 %v492
        %v1174 = vunpack.c.h.b16 %v492
        %v1175 = vunpack.c.l.b16 %v493
        %v1176 = vunpack.c.l.b16 %v494
        %v1177 = vunpack.c.h.b16 %v494
        %v1178 = vunpack.c.l.b16 %v495
        %v1179 = vunpack.c.l.b16 %v496
        %v1180 = vunpack.c.h.b16 %v496
        %v1181 = vunpack.c.l.b16 %v497
        %v1182 = vunpack.c.l.b16 %v498
        %v1183 = vunpack.c.h.b16 %v498
        %v1184 = vunpack.c.l.b16 %v499
        %v1185 = vunpack.c.l.b16 %v500
        %v1186 = vunpack.c.h.b16 %v500
        %v1187 = vunpack.c.l.b16 %v501
        %v1188 = vunpack.c.l.b16 %v502
        %v1189 = vunpack.c.h.b16 %v502
        %v1190 = vunpack.c.l.b16 %v503
        %v1191 = vunpack.c.l.b16 %v504
        %v1192 = vunpack.c.h.b16 %v504
        %v1193 = vunpack.c.l.b16 %v505
        %v1194 = vpack.c.b16 %v813, %v810
        %v1195 = vpack.c.b16 %v814, %v811
        %v1196 = vpack.c.b16 %v815, %v812
        %v1197 = vpack.c.b16 %v819, %v816
        %v1198 = vpack.c.b16 %v820, %v817
        %v1199 = vpack.c.b16 %v821, %v818
        %v1200 = vpack.c.b16 %v825, %v822
        %v1201 = vpack.c.b16 %v826, %v823
        %v1202 = vpack.c.b16 %v827, %v824
        %v1203 = vpack.c.b16 %v831, %v828
        %v1204 = vpack.c.b16 %v832, %v829
        %v1205 = vpack.c.b16 %v833, %v830
        %v1206 = vpack.c.b16 %v837, %v834
        %v1207 = vpack.c.b16 %v838, %v835
        %v1208 = vpack.c.b16 %v839, %v836
        %v1209 = vpack.c.b16 %v843, %v840
        %v1210 = vpack.c.b16 %v844, %v841
        %v1211 = vpack.c.b16 %v845, %v842
        %v1212 = vpack.c.b16 %v849, %v846
        %v1213 = vpack.c.b16 %v850, %v847
        %v1214 = vpack.c.b16 %v851, %v848
        %v1215 = vpack.c.b16 %v855, %v852
        %v1216 = vpack.c.b16 %v856, %v853
        %v1217 = vpack.c.b16 %v857, %v854
        %v1218 = vpack.c.b16 %v861, %v858
        %v1219 = vpack.c.b16 %v862, %v859
        %v1220 = vpack.c.b16 %v863, %v860
        %v1221 = vpack.c.b16 %v867, %v864
        %v1222 = vpack.c.b16 %v868, %v865
        %v1223 = vpack.c.b16 %v869, %v866
        %v1224 = vpack.c.b16 %v873, %v870
        %v1225 = vpack.c.b16 %v874, %v871
        %v1226 = vpack.c.b16 %v875, %v872
        %v1227 = vpack.c.b16 %v879, %v876
        %v1228 = vpack.c.b16 %v880, %v877
        %v1229 = vpack.c.b16 %v881, %v878
        %v1230 = vpack.c.b16 %v885, %v882
        %v1231 = vpack.c.b16 %v886, %v883
        %v1232 = vpack.c.b16 %v887, %v884
        %v1233 = vpack.c.b16 %v891, %v888
        %v1234 = vpack.c.b16 %v892, %v889
        %v1235 = vpack.c.b16 %v893, %v890
        %v1236 = vpack.c.b16 %v897, %v894
        %v1237 = vpack.c.b16 %v898, %v895
        %v1238 = vpack.c.b16 %v899, %v896
        %v1239 = vpack.c.b16 %v903, %v900
        %v1240 = vpack.c.b16 %v904, %v901
        %v1241 = vpack.c.b16 %v905, %v902
        %v1242 = vpack.c.b16 %v909, %v906
        %v1243 = vpack.c.b16 %v910, %v907
        %v1244 = vpack.c.b16 %v911, %v908
        %v1245 = vpack.c.b16 %v915, %v912
        %v1246 = vpack.c.b16 %v916, %v913
        %v1247 = vpack.c.b16 %v917, %v914
        %v1248 = vpack.c.b16 %v921, %v918
        %v1249 = vpack.c.b16 %v922, %v919
        %v1250 = vpack.c.b16 %v923, %v920
        %v1251 = vpack.c.b16 %v927, %v924
        %v1252 = vpack.c.b16 %v928, %v925
        %v1253 = vpack.c.b16 %v929, %v926
        %v1254 = vpack.c.b16 %v933, %v930
        %v1255 = vpack.c.b16 %v934, %v931
        %v1256 = vpack.c.b16 %v935, %v932
        %v1257 = vpack.c.b16 %v939, %v936
        %v1258 = vpack.c.b16 %v940, %v937
        %v1259 = vpack.c.b16 %v941, %v938
        %v1260 = vpack.c.b16 %v945, %v942
        %v1261 = vpack.c.b16 %v946, %v943
        %v1262 = vpack.c.b16 %v947, %v944
        %v1263 = vpack.c.b16 %v951, %v948
        %v1264 = vpack.c.b16 %v952, %v949
        %v1265 = vpack.c.b16 %v953, %v950
        %v1266 = vpack.c.b16 %v957, %v954
        %v1267 = vpack.c.b16 %v958, %v955
        %v1268 = vpack.c.b16 %v959, %v956
        %v1269 = vpack.c.b16 %v963, %v960
        %v1270 = vpack.c.b16 %v964, %v961
        %v1271 = vpack.c.b16 %v965, %v962
        %v1272 = vpack.c.b16 %v969, %v966
        %v1273 = vpack.c.b16 %v970, %v967
        %v1274 = vpack.c.b16 %v971, %v968
        %v1275 = vpack.c.b16 %v975, %v972
        %v1276 = vpack.c.b16 %v976, %v973
        %v1277 = vpack.c.b16 %v977, %v974
        %v1278 = vpack.c.b16 %v981, %v978
        %v1279 = vpack.c.b16 %v982, %v979
        %v1280 = vpack.c.b16 %v983, %v980
        %v1281 = vpack.c.b16 %v987, %v984
        %v1282 = vpack.c.b16 %v988, %v985
        %v1283 = vpack.c.b16 %v989, %v986
        %v1284 = vpack.c.b16 %v993, %v990
        %v1285 = vpack.c.b16 %v994, %v991
        %v1286 = vpack.c.b16 %v995, %v992
        %v1287 = vpack.c.b16 %v999, %v996
        %v1288 = vpack.c.b16 %v1000, %v997
        %v1289 = vpack.c.b16 %v1001, %v998
        %v1290 = vpack.c.b16 %v1005, %v1002
        %v1291 = vpack.c.b16 %v1006, %v1003
        %v1292 = vpack.c.b16 %v1007, %v1004
        %v1293 = vpack.c.b16 %v1011, %v1008
        %v1294 = vpack.c.b16 %v1012, %v1009
        %v1295 = vpack.c.b16 %v1013, %v1010
        %v1296 = vpack.c.b16 %v1017, %v1014
        %v1297 = vpack.c.b16 %v1018, %v1015
        %v1298 = vpack.c.b16 %v1019, %v1016
        %v1299 = vpack.c.b16 %v1023, %v1020
        %v1300 = vpack.c.b16 %v1024, %v1021
        %v1301 = vpack.c.b16 %v1025, %v1022
        %v1302 = vpack.c.b16 %v1029, %v1026
        %v1303 = vpack.c.b16 %v1030, %v1027
        %v1304 = vpack.c.b16 %v1031, %v1028
        %v1305 = vpack.c.b16 %v1035, %v1032
        %v1306 = vpack.c.b16 %v1036, %v1033
        %v1307 = vpack.c.b16 %v1037, %v1034
        %v1308 = vpack.c.b16 %v1041, %v1038
        %v1309 = vpack.c.b16 %v1042, %v1039
        %v1310 = vpack.c.b16 %v1043, %v1040
        %v1311 = vpack.c.b16 %v1047, %v1044
        %v1312 = vpack.c.b16 %v1048, %v1045
        %v1313 = vpack.c.b16 %v1049, %v1046
        %v1314 = vpack.c.b16 %v1053, %v1050
        %v1315 = vpack.c.b16 %v1054, %v1051
        %v1316 = vpack.c.b16 %v1055, %v1052
        %v1317 = vpack.c.b16 %v1059, %v1056
        %v1318 = vpack.c.b16 %v1060, %v1057
        %v1319 = vpack.c.b16 %v1061, %v1058
        %v1320 = vpack.c.b16 %v1065, %v1062
        %v1321 = vpack.c.b16 %v1066, %v1063
        %v1322 = vpack.c.b16 %v1067, %v1064
        %v1323 = vpack.c.b16 %v1071, %v1068
        %v1324 = vpack.c.b16 %v1072, %v1069
        %v1325 = vpack.c.b16 %v1073, %v1070
        %v1326 = vpack.c.b16 %v1077, %v1074
        %v1327 = vpack.c.b16 %v1078, %v1075
        %v1328 = vpack.c.b16 %v1079, %v1076
        %v1329 = vpack.c.b16 %v1083, %v1080
        %v1330 = vpack.c.b16 %v1084, %v1081
        %v1331 = vpack.c.b16 %v1085, %v1082
        %v1332 = vpack.c.b16 %v1089, %v1086
        %v1333 = vpack.c.b16 %v1090, %v1087
        %v1334 = vpack.c.b16 %v1091, %v1088
        %v1335 = vpack.c.b16 %v1095, %v1092
        %v1336 = vpack.c.b16 %v1096, %v1093
        %v1337 = vpack.c.b16 %v1097, %v1094
        %v1338 = vpack.c.b16 %v1101, %v1098
        %v1339 = vpack.c.b16 %v1102, %v1099
        %v1340 = vpack.c.b16 %v1103, %v1100
        %v1341 = vpack.c.b16 %v1107, %v1104
        %v1342 = vpack.c.b16 %v1108, %v1105
        %v1343 = vpack.c.b16 %v1109, %v1106
        %v1344 = vpack.c.b16 %v1113, %v1110
        %v1345 = vpack.c.b16 %v1114, %v1111
        %v1346 = vpack.c.b16 %v1115, %v1112
        %v1347 = vpack.c.b16 %v1119, %v1116
        %v1348 = vpack.c.b16 %v1120, %v1117
        %v1349 = vpack.c.b16 %v1121, %v1118
        %v1350 = vpack.c.b16 %v1125, %v1122
        %v1351 = vpack.c.b16 %v1126, %v1123
        %v1352 = vpack.c.b16 %v1127, %v1124
        %v1353 = vpack.c.b16 %v1131, %v1128
        %v1354 = vpack.c.b16 %v1132, %v1129
        %v1355 = vpack.c.b16 %v1133, %v1130
        %v1356 = vpack.c.b16 %v1137, %v1134
        %v1357 = vpack.c.b16 %v1138, %v1135
        %v1358 = vpack.c.b16 %v1139, %v1136
        %v1359 = vpack.c.b16 %v1143, %v1140
        %v1360 = vpack.c.b16 %v1144, %v1141
        %v1361 = vpack.c.b16 %v1145, %v1142
        %v1362 = vpack.c.b16 %v1149, %v1146
        %v1363 = vpack.c.b16 %v1150, %v1147
        %v1364 = vpack.c.b16 %v1151, %v1148
        %v1365 = vpack.c.b16 %v1155, %v1152
        %v1366 = vpack.c.b16 %v1156, %v1153
        %v1367 = vpack.c.b16 %v1157, %v1154
        %v1368 = vpack.c.b16 %v1161, %v1158
        %v1369 = vpack.c.b16 %v1162, %v1159
        %v1370 = vpack.c.b16 %v1163, %v1160
        %v1371 = vpack.c.b16 %v1167, %v1164
        %v1372 = vpack.c.b16 %v1168, %v1165
        %v1373 = vpack.c.b16 %v1169, %v1166
        %v1374 = vpack.c.b16 %v1173, %v1170
        %v1375 = vpack.c.b16 %v1174, %v1171
        %v1376 = vpack.c.b16 %v1175, %v1172
        %v1377 = vpack.c.b16 %v1179, %v1176
        %v1378 = vpack.c.b16 %v1180, %v1177
        %v1379 = vpack.c.b16 %v1181, %v1178
        %v1380 = vpack.c.b16 %v1185, %v1182
        %v1381 = vpack.c.b16 %v1186, %v1183
        %v1382 = vpack.c.b16 %v1187, %v1184
        %v1383 = vpack.c.b16 %v1191, %v1188
        %v1384 = vpack.c.b16 %v1192, %v1189
        %v1385 = vpack.c.b16 %v1193, %v1190
        %v1626 = vunpack.c.l.b16 %v506
        %v1627 = vunpack.c.l.b16 %v507
        %v1628 = vunpack.c.l.b16 %v508
        %v1629 = vunpack.c.l.b16 %v509
        %v1630 = vunpack.c.l.b16 %v510
        %v1631 = vunpack.c.l.b16 %v511
        %v1632 = vunpack.c.l.b16 %v512
        %v1633 = vunpack.c.l.b16 %v513
        %v1634 = vunpack.c.l.b16 %v514
        %v1635 = vunpack.c.l.b16 %v515
        %v1636 = vunpack.c.l.b16 %v516
        %v1637 = vunpack.c.l.b16 %v517
        %v1638 = vunpack.c.l.b16 %v518
        %v1639 = vunpack.c.l.b16 %v519
        %v1640 = vunpack.c.l.b16 %v520
        %v1641 = vunpack.c.l.b16 %v521
        %v1642 = vunpack.c.l.b16 %v522
        %v1643 = vunpack.c.l.b16 %v523
        %v1644 = vunpack.c.l.b16 %v524
        %v1645 = vunpack.c.l.b16 %v525
        %v1646 = vunpack.c.l.b16 %v526
        %v1647 = vunpack.c.l.b16 %v527
        %v1648 = vunpack.c.l.b16 %v528
        %v1649 = vunpack.c.l.b16 %v529
        %v1650 = vunpack.c.l.b16 %v530
        %v1651 = vunpack.c.l.b16 %v531
        %v1652 = vunpack.c.l.b16 %v532
        %v1653 = vunpack.c.l.b16 %v533
        %v1654 = vunpack.c.l.b16 %v534
        %v1655 = vunpack.c.l.b16 %v535
        %v1656 = vunpack.c.l.b16 %v536
        %v1657 = vunpack.c.l.b16 %v537
        %v1658 = vunpack.c.l.b16 %v538
        %v1659 = vunpack.c.l.b16 %v539
        %v1660 = vunpack.c.l.b16 %v540
        %v1661 = vunpack.c.l.b16 %v541
        %v1662 = vunpack.c.l.b16 %v542
        %v1663 = vunpack.c.l.b16 %v543
        %v1664 = vunpack.c.l.b16 %v544
        %v1665 = vunpack.c.l.b16 %v545
        %v1666 = vunpack.c.l.b16 %v546
        %v1667 = vunpack.c.l.b16 %v547
        %v1668 = vunpack.c.l.b16 %v548
        %v1669 = vunpack.c.l.b16 %v549
        %v1670 = vunpack.c.l.b16 %v550
        %v1671 = vunpack.c.l.b16 %v551
        %v1672 = vunpack.c.l.b16 %v552
        %v1673 = vunpack.c.l.b16 %v553
        %v1674 = vpack.c.b16 %v1627, %v1626
        %v1675 = vpack.c.b16 %v1629, %v1628
        %v1676 = vpack.c.b16 %v1631, %v1630
        %v1677 = vpack.c.b16 %v1633, %v1632
        %v1678 = vpack.c.b16 %v1635, %v1634
        %v1679 = vpack.c.b16 %v1637, %v1636
        %v1680 = vpack.c.b16 %v1639, %v1638
        %v1681 = vpack.c.b16 %v1641, %v1640
        %v1682 = vpack.c.b16 %v1643, %v1642
        %v1683 = vpack.c.b16 %v1645, %v1644
        %v1684 = vpack.c.b16 %v1647, %v1646
        %v1685 = vpack.c.b16 %v1649, %v1648
        %v1686 = vpack.c.b16 %v1651, %v1650
        %v1687 = vpack.c.b16 %v1653, %v1652
        %v1688 = vpack.c.b16 %v1655, %v1654
        %v1689 = vpack.c.b16 %v1657, %v1656
        %v1690 = vpack.c.b16 %v1659, %v1658
        %v1691 = vpack.c.b16 %v1661, %v1660
        %v1692 = vpack.c.b16 %v1663, %v1662
        %v1693 = vpack.c.b16 %v1665, %v1664
        %v1694 = vpack.c.b16 %v1667, %v1666
        %v1695 = vpack.c.b16 %v1669, %v1668
        %v1696 = vpack.c.b16 %v1671, %v1670
        %v1697 = vpack.c.b16 %v1673, %v1672
        %1722 = vmatprep.subr.bf16.mxu0 0
        %1723 = vmatpush1.bf16.msra.mxu0 %v1674
        %1724 = vmatprep.subr.bf16.mxu0 0
        %1725 = vmatpush1.bf16.msra.mxu0 %v1675
        %1726 = vmatprep.subr.bf16.mxu0 0
        %1727 = vmatpush1.bf16.msra.mxu0 %v1676
        %1728 = vmatprep.subr.bf16.mxu0 0
        %1729 = vmatpush1.bf16.msra.mxu0 %v1677
        %1730 = vmatprep.subr.bf16.mxu0 0
        %1731 = vmatpush1.bf16.msra.mxu0 %v1678
        %1732 = vmatprep.subr.bf16.mxu0 0
        %1733 = vmatpush1.bf16.msra.mxu0 %v1679
        %1734 = vmatprep.subr.bf16.mxu0 0
        %1735 = vmatpush1.bf16.msra.mxu0 %v1680
        %1736 = vmatprep.subr.bf16.mxu0 0
        %1737 = vmatpush1.bf16.msra.mxu0 %v1681
        %1738 = vmatprep.subr.bf16.mxu0 0
        %1739 = vmatpush1.bf16.msra.mxu0 %v1682
        %1740 = vmatprep.subr.bf16.mxu0 0
        %1741 = vmatpush1.bf16.msra.mxu0 %v1683
        %1742 = vmatprep.subr.bf16.mxu0 0
        %1743 = vmatpush1.bf16.msra.mxu0 %v1684
        %1744 = vmatprep.subr.bf16.mxu0 0
        %1745 = vmatpush1.bf16.msra.mxu0 %v1685
        %1746 = vmatprep.subr.bf16.mxu0 0
        %1747 = vmatpush1.bf16.msra.mxu0 %v1686
        %1748 = vmatprep.subr.bf16.mxu0 0
        %1749 = vmatpush1.bf16.msra.mxu0 %v1687
        %1750 = vmatprep.subr.bf16.mxu0 0
        %1751 = vmatpush1.bf16.msra.mxu0 %v1688
        %1752 = vmatprep.subr.bf16.mxu0 0
        %1753 = vmatpush1.bf16.msra.mxu0 %v1689
        %1754 = vmatprep.mubr.bf16.mxu0 %v1195
        %1755 = vmatmul.mubr.bf16.gmra.mrb[0].mxu0 %v1194
        %v1756 = vpop.f32.mrb[0].mxu0
        %v1757 = vadd.f32 0.0, %v1756
        %v1758 = vpop.f32.mrb[0].mxu0
        %v1759 = vpop.f32.mrb[0].mxu0
        %v1760 = vadd.f32 0.0, %v1759
        %v1761 = vpop.f32.mrb[0].mxu0
        %1762 = vmatprep.mubr.bf16.mxu0 %v1198
        %1763 = vmatmul.mubr.bf16.gmra.mrb[0].mxu0 %v1197
        %v1764 = vpop.f32.mrb[0].mxu0
        %v1765 = vadd.f32 0.0, %v1764
        %v1766 = vpop.f32.mrb[0].mxu0
        %v1767 = vpop.f32.mrb[0].mxu0
        %v1768 = vadd.f32 0.0, %v1767
        %v1769 = vpop.f32.mrb[0].mxu0
        %1770 = vmatprep.mubr.bf16.mxu0 %v1201
        %1771 = vmatmul.mubr.bf16.gmra.mrb[0].mxu0 %v1200
        %v1772 = vpop.f32.mrb[0].mxu0
        %v1773 = vadd.f32 0.0, %v1772
        %v1774 = vpop.f32.mrb[0].mxu0
        %v1775 = vpop.f32.mrb[0].mxu0
        %v1776 = vadd.f32 0.0, %v1775
        %v1777 = vpop.f32.mrb[0].mxu0
        %1778 = vmatprep.mubr.bf16.mxu0 %v1204
        %1779 = vmatmul.mubr.bf16.gmra.mrb[0].mxu0 %v1203
        %v1780 = vpop.f32.mrb[0].mxu0
        %v1781 = vadd.f32 0.0, %v1780
        %v1782 = vpop.f32.mrb[0].mxu0
        %v1783 = vpop.f32.mrb[0].mxu0
        %v1784 = vadd.f32 0.0, %v1783
        %v1785 = vpop.f32.mrb[0].mxu0
        %1786 = vmatprep.mubr.bf16.mxu0 %v1207
        %1787 = vmatmul.mubr.bf16.gmra.mrb[0].mxu0 %v1206
        %v1788 = vpop.f32.mrb[0].mxu0
        %v1789 = vadd.f32 0.0, %v1788
        %v1790 = vpop.f32.mrb[0].mxu0
        %v1791 = vpop.f32.mrb[0].mxu0
        %v1792 = vadd.f32 0.0, %v1791
        %v1793 = vpop.f32.mrb[0].mxu0
        %1794 = vmatprep.mubr.bf16.mxu0 %v1210
        %1795 = vmatmul.mubr.bf16.gmra.mrb[0].mxu0 %v1209
        %v1796 = vpop.f32.mrb[0].mxu0
        %v1797 = vadd.f32 0.0, %v1796
        %v1798 = vpop.f32.mrb[0].mxu0
        %v1799 = vpop.f32.mrb[0].mxu0
        %v1800 = vadd.f32 0.0, %v1799
        %v1801 = vpop.f32.mrb[0].mxu0
        %1802 = vmatprep.mubr.bf16.mxu0 %v1213
        %1803 = vmatmul.mubr.bf16.gmra.mrb[0].mxu0 %v1212
        %v1804 = vpop.f32.mrb[0].mxu0
        %v1805 = vadd.f32 0.0, %v1804
        %v1806 = vpop.f32.mrb[0].mxu0
        %v1807 = vpop.f32.mrb[0].mxu0
        %v1808 = vadd.f32 0.0, %v1807
        %v1809 = vpop.f32.mrb[0].mxu0
        %1810 = vmatprep.mubr.bf16.mxu0 %v1216
        %1811 = vmatmul.mubr.bf16.gmra.mrb[0].mxu0 %v1215
        %v1812 = vpop.f32.mrb[0].mxu0
        %v1813 = vadd.f32 0.0, %v1812
        %v1814 = vpop.f32.mrb[0].mxu0
        %v1815 = vpop.f32.mrb[0].mxu0
        %v1816 = vadd.f32 0.0, %v1815
        %v1817 = vpop.f32.mrb[0].mxu0
        %1818 = vmatprep.mubr.bf16.mxu0 %v1219
        %1819 = vmatmul.mubr.bf16.gmra.mrb[0].mxu0 %v1218
        %v1820 = vpop.f32.mrb[0].mxu0
        %v1821 = vadd.f32 0.0, %v1820
        %v1822 = vpop.f32.mrb[0].mxu0
        %v1823 = vpop.f32.mrb[0].mxu0
        %v1824 = vadd.f32 0.0, %v1823
        %v1825 = vpop.f32.mrb[0].mxu0
        %1826 = vmatprep.mubr.bf16.mxu0 %v1222
        %1827 = vmatmul.mubr.bf16.gmra.mrb[0].mxu0 %v1221
        %v1828 = vpop.f32.mrb[0].mxu0
        %v1829 = vadd.f32 0.0, %v1828
        %v1830 = vpop.f32.mrb[0].mxu0
        %v1831 = vpop.f32.mrb[0].mxu0
        %v1832 = vadd.f32 0.0, %v1831
        %v1833 = vpop.f32.mrb[0].mxu0
        %1834 = vmatprep.mubr.bf16.mxu0 %v1225
        %1835 = vmatmul.mubr.bf16.gmra.mrb[0].mxu0 %v1224
        %v1836 = vpop.f32.mrb[0].mxu0
        %v1837 = vadd.f32 0.0, %v1836
        %v1838 = vpop.f32.mrb[0].mxu0
        %v1839 = vpop.f32.mrb[0].mxu0
        %v1840 = vadd.f32 0.0, %v1839
        %v1841 = vpop.f32.mrb[0].mxu0
        %1842 = vmatprep.mubr.bf16.mxu0 %v1228
        %1843 = vmatmul.mubr.bf16.gmra.mrb[0].mxu0 %v1227
        %v1844 = vpop.f32.mrb[0].mxu0
        %v1845 = vadd.f32 0.0, %v1844
        %v1846 = vpop.f32.mrb[0].mxu0
        %v1847 = vpop.f32.mrb[0].mxu0
        %v1848 = vadd.f32 0.0, %v1847
        %v1849 = vpop.f32.mrb[0].mxu0
        %1850 = vmatprep.mubr.bf16.mxu0 %v1231
        %1851 = vmatmul.mubr.bf16.gmra.mrb[0].mxu0 %v1230
        %v1852 = vpop.f32.mrb[0].mxu0
        %v1853 = vadd.f32 0.0, %v1852
        %v1854 = vpop.f32.mrb[0].mxu0
        %v1855 = vpop.f32.mrb[0].mxu0
        %v1856 = vadd.f32 0.0, %v1855
        %v1857 = vpop.f32.mrb[0].mxu0
        %1858 = vmatprep.mubr.bf16.mxu0 %v1234
        %1859 = vmatmul.mubr.bf16.gmra.mrb[0].mxu0 %v1233
        %v1860 = vpop.f32.mrb[0].mxu0
        %v1861 = vadd.f32 0.0, %v1860
        %v1862 = vpop.f32.mrb[0].mxu0
        %v1863 = vpop.f32.mrb[0].mxu0
        %v1864 = vadd.f32 0.0, %v1863
        %v1865 = vpop.f32.mrb[0].mxu0
        %1866 = vmatprep.mubr.bf16.mxu0 %v1237
        %1867 = vmatmul.mubr.bf16.gmra.mrb[0].mxu0 %v1236
        %v1868 = vpop.f32.mrb[0].mxu0
        %v1869 = vadd.f32 0.0, %v1868
        %v1870 = vpop.f32.mrb[0].mxu0
        %v1871 = vpop.f32.mrb[0].mxu0
        %v1872 = vadd.f32 0.0, %v1871
        %v1873 = vpop.f32.mrb[0].mxu0
        %1874 = vmatprep.mubr.bf16.mxu0 %v1240
        %1875 = vmatmul.mubr.bf16.gmra.mrb[0].mxu0 %v1239
        %v1876 = vpop.f32.mrb[0].mxu0
        %v1877 = vadd.f32 0.0, %v1876
        %v1878 = vpop.f32.mrb[0].mxu0
        %v1879 = vpop.f32.mrb[0].mxu0
        %v1880 = vadd.f32 0.0, %v1879
        %v1881 = vpop.f32.mrb[0].mxu0
        %1882 = vmatprep.mubr.bf16.mxu0 %v1243
        %1883 = vmatmul.mubr.bf16.gmra.mrb[0].mxu0 %v1242
        %v1884 = vpop.f32.mrb[0].mxu0
        %v1885 = vadd.f32 0.0, %v1884
        %v1886 = vpop.f32.mrb[0].mxu0
        %v1887 = vpop.f32.mrb[0].mxu0
        %v1888 = vadd.f32 0.0, %v1887
        %v1889 = vpop.f32.mrb[0].mxu0
        %1890 = vmatprep.mubr.bf16.mxu0 %v1246
        %1891 = vmatmul.mubr.bf16.gmra.mrb[0].mxu0 %v1245
        %v1892 = vpop.f32.mrb[0].mxu0
        %v1893 = vadd.f32 0.0, %v1892
        %v1894 = vpop.f32.mrb[0].mxu0
        %v1895 = vpop.f32.mrb[0].mxu0
        %v1896 = vadd.f32 0.0, %v1895
        %v1897 = vpop.f32.mrb[0].mxu0
        %1898 = vmatprep.mubr.bf16.mxu0 %v1249
        %1899 = vmatmul.mubr.bf16.gmra.mrb[0].mxu0 %v1248
        %v1900 = vpop.f32.mrb[0].mxu0
        %v1901 = vadd.f32 0.0, %v1900
        %v1902 = vpop.f32.mrb[0].mxu0
        %v1903 = vpop.f32.mrb[0].mxu0
        %v1904 = vadd.f32 0.0, %v1903
        %v1905 = vpop.f32.mrb[0].mxu0
        %1906 = vmatprep.mubr.bf16.mxu0 %v1252
        %1907 = vmatmul.mubr.bf16.gmra.mrb[0].mxu0 %v1251
        %v1908 = vpop.f32.mrb[0].mxu0
        %v1909 = vadd.f32 0.0, %v1908
        %v1910 = vpop.f32.mrb[0].mxu0
        %v1911 = vpop.f32.mrb[0].mxu0
        %v1912 = vadd.f32 0.0, %v1911
        %v1913 = vpop.f32.mrb[0].mxu0
        %1914 = vmatprep.mubr.bf16.mxu0 %v1255
        %1915 = vmatmul.mubr.bf16.gmra.mrb[0].mxu0 %v1254
        %v1916 = vpop.f32.mrb[0].mxu0
        %v1917 = vadd.f32 0.0, %v1916
        %v1918 = vpop.f32.mrb[0].mxu0
        %v1919 = vpop.f32.mrb[0].mxu0
        %v1920 = vadd.f32 0.0, %v1919
        %v1921 = vpop.f32.mrb[0].mxu0
        %1922 = vmatprep.mubr.bf16.mxu0 %v1258
        %1923 = vmatmul.mubr.bf16.gmra.mrb[0].mxu0 %v1257
        %v1924 = vpop.f32.mrb[0].mxu0
        %v1925 = vadd.f32 0.0, %v1924
        %v1926 = vpop.f32.mrb[0].mxu0
        %v1927 = vpop.f32.mrb[0].mxu0
        %v1928 = vadd.f32 0.0, %v1927
        %v1929 = vpop.f32.mrb[0].mxu0
        %1930 = vmatprep.mubr.bf16.mxu0 %v1261
        %1931 = vmatmul.mubr.bf16.gmra.mrb[0].mxu0 %v1260
        %v1932 = vpop.f32.mrb[0].mxu0
        %v1933 = vadd.f32 0.0, %v1932
        %v1934 = vpop.f32.mrb[0].mxu0
        %v1935 = vpop.f32.mrb[0].mxu0
        %v1936 = vadd.f32 0.0, %v1935
        %v1937 = vpop.f32.mrb[0].mxu0
        %1938 = vmatprep.mubr.bf16.mxu0 %v1264
        %1939 = vmatmul.mubr.bf16.gmra.mrb[0].mxu0 %v1263
        %v1940 = vpop.f32.mrb[0].mxu0
        %v1941 = vadd.f32 0.0, %v1940
        %v1942 = vpop.f32.mrb[0].mxu0
        %v1943 = vpop.f32.mrb[0].mxu0
        %v1944 = vadd.f32 0.0, %v1943
        %v1945 = vpop.f32.mrb[0].mxu0
        %1946 = vmatprep.mubr.bf16.mxu0 %v1267
        %1947 = vmatmul.mubr.bf16.gmra.mrb[0].mxu0 %v1266
        %v1948 = vpop.f32.mrb[0].mxu0
        %v1949 = vadd.f32 0.0, %v1948
        %v1950 = vpop.f32.mrb[0].mxu0
        %v1951 = vpop.f32.mrb[0].mxu0
        %v1952 = vadd.f32 0.0, %v1951
        %v1953 = vpop.f32.mrb[0].mxu0
        %1954 = vmatprep.mubr.bf16.mxu0 %v1270
        %1955 = vmatmul.mubr.bf16.gmra.mrb[0].mxu0 %v1269
        %v1956 = vpop.f32.mrb[0].mxu0
        %v1957 = vadd.f32 0.0, %v1956
        %v1958 = vpop.f32.mrb[0].mxu0
        %v1959 = vpop.f32.mrb[0].mxu0
        %v1960 = vadd.f32 0.0, %v1959
        %v1961 = vpop.f32.mrb[0].mxu0
        %1962 = vmatprep.mubr.bf16.mxu0 %v1273
        %1963 = vmatmul.mubr.bf16.gmra.mrb[0].mxu0 %v1272
        %v1964 = vpop.f32.mrb[0].mxu0
        %v1965 = vadd.f32 0.0, %v1964
        %v1966 = vpop.f32.mrb[0].mxu0
        %v1967 = vpop.f32.mrb[0].mxu0
        %v1968 = vadd.f32 0.0, %v1967
        %v1969 = vpop.f32.mrb[0].mxu0
        %1970 = vmatprep.mubr.bf16.mxu0 %v1276
        %1971 = vmatmul.mubr.bf16.gmra.mrb[0].mxu0 %v1275
        %v1972 = vpop.f32.mrb[0].mxu0
        %v1973 = vadd.f32 0.0, %v1972
        %v1974 = vpop.f32.mrb[0].mxu0
        %v1975 = vpop.f32.mrb[0].mxu0
        %v1976 = vadd.f32 0.0, %v1975
        %v1977 = vpop.f32.mrb[0].mxu0
        %1978 = vmatprep.mubr.bf16.mxu0 %v1279
        %1979 = vmatmul.mubr.bf16.gmra.mrb[0].mxu0 %v1278
        %v1980 = vpop.f32.mrb[0].mxu0
        %v1981 = vadd.f32 0.0, %v1980
        %v1982 = vpop.f32.mrb[0].mxu0
        %v1983 = vpop.f32.mrb[0].mxu0
        %v1984 = vadd.f32 0.0, %v1983
        %v1985 = vpop.f32.mrb[0].mxu0
        %1986 = vmatprep.mubr.bf16.mxu0 %v1282
        %1987 = vmatmul.mubr.bf16.gmra.mrb[0].mxu0 %v1281
        %v1988 = vpop.f32.mrb[0].mxu0
        %v1989 = vadd.f32 0.0, %v1988
        %v1990 = vpop.f32.mrb[0].mxu0
        %v1991 = vpop.f32.mrb[0].mxu0
        %v1992 = vadd.f32 0.0, %v1991
        %v1993 = vpop.f32.mrb[0].mxu0
        %1994 = vmatprep.mubr.bf16.mxu0 %v1285
        %1995 = vmatmul.mubr.bf16.gmra.mrb[0].mxu0 %v1284
        %v1996 = vpop.f32.mrb[0].mxu0
        %v1997 = vadd.f32 0.0, %v1996
        %v1998 = vpop.f32.mrb[0].mxu0
        %v1999 = vpop.f32.mrb[0].mxu0
        %v2000 = vadd.f32 0.0, %v1999
        %v2001 = vpop.f32.mrb[0].mxu0
        %2002 = vmatprep.mubr.bf16.mxu0 %v1288
        %2003 = vmatmul.mubr.bf16.gmra.mrb[0].mxu0 %v1287
        %v2004 = vpop.f32.mrb[0].mxu0
        %v2005 = vadd.f32 0.0, %v2004
        %v2006 = vpop.f32.mrb[0].mxu0
        %v2007 = vpop.f32.mrb[0].mxu0
        %v2008 = vadd.f32 0.0, %v2007
        %v2009 = vpop.f32.mrb[0].mxu0
        %2010 = vmatprep.mubr.bf16.mxu0 %v1291
        %2011 = vmatmul.mubr.bf16.gmra.mrb[0].mxu0 %v1290
        %v2012 = vpop.f32.mrb[0].mxu0
        %v2013 = vadd.f32 0.0, %v2012
        %v2014 = vpop.f32.mrb[0].mxu0
        %v2015 = vpop.f32.mrb[0].mxu0
        %v2016 = vadd.f32 0.0, %v2015
        %v2017 = vpop.f32.mrb[0].mxu0
        %2018 = vmatprep.mubr.bf16.mxu0 %v1294
        %2019 = vmatmul.mubr.bf16.gmra.mrb[0].mxu0 %v1293
        %v2020 = vpop.f32.mrb[0].mxu0
        %v2021 = vadd.f32 0.0, %v2020
        %v2022 = vpop.f32.mrb[0].mxu0
        %v2023 = vpop.f32.mrb[0].mxu0
        %v2024 = vadd.f32 0.0, %v2023
        %v2025 = vpop.f32.mrb[0].mxu0
        %2026 = vmatprep.mubr.bf16.mxu0 %v1297
        %2027 = vmatmul.mubr.bf16.gmra.mrb[0].mxu0 %v1296
        %v2028 = vpop.f32.mrb[0].mxu0
        %v2029 = vadd.f32 0.0, %v2028
        %v2030 = vpop.f32.mrb[0].mxu0
        %v2031 = vpop.f32.mrb[0].mxu0
        %v2032 = vadd.f32 0.0, %v2031
        %v2033 = vpop.f32.mrb[0].mxu0
        %2034 = vmatprep.mubr.bf16.mxu0 %v1300
        %2035 = vmatmul.mubr.bf16.gmra.mrb[0].mxu0 %v1299
        %v2036 = vpop.f32.mrb[0].mxu0
        %v2037 = vadd.f32 0.0, %v2036
        %v2038 = vpop.f32.mrb[0].mxu0
        %v2039 = vpop.f32.mrb[0].mxu0
        %v2040 = vadd.f32 0.0, %v2039
        %v2041 = vpop.f32.mrb[0].mxu0
        %2042 = vmatprep.mubr.bf16.mxu0 %v1303
        %2043 = vmatmul.mubr.bf16.gmra.mrb[0].mxu0 %v1302
        %v2044 = vpop.f32.mrb[0].mxu0
        %v2045 = vadd.f32 0.0, %v2044
        %v2046 = vpop.f32.mrb[0].mxu0
        %v2047 = vpop.f32.mrb[0].mxu0
        %v2048 = vadd.f32 0.0, %v2047
        %v2049 = vpop.f32.mrb[0].mxu0
        %2050 = vmatprep.mubr.bf16.mxu0 %v1306
        %2051 = vmatmul.mubr.bf16.gmra.mrb[0].mxu0 %v1305
        %v2052 = vpop.f32.mrb[0].mxu0
        %v2053 = vadd.f32 0.0, %v2052
        %v2054 = vpop.f32.mrb[0].mxu0
        %v2055 = vpop.f32.mrb[0].mxu0
        %v2056 = vadd.f32 0.0, %v2055
        %v2057 = vpop.f32.mrb[0].mxu0
        %2058 = vmatprep.mubr.bf16.mxu0 %v1309
        %2059 = vmatmul.mubr.bf16.gmra.mrb[0].mxu0 %v1308
        %v2060 = vpop.f32.mrb[0].mxu0
        %v2061 = vadd.f32 0.0, %v2060
        %v2062 = vpop.f32.mrb[0].mxu0
        %v2063 = vpop.f32.mrb[0].mxu0
        %v2064 = vadd.f32 0.0, %v2063
        %v2065 = vpop.f32.mrb[0].mxu0
        %2066 = vmatprep.mubr.bf16.mxu0 %v1312
        %2067 = vmatmul.mubr.bf16.gmra.mrb[0].mxu0 %v1311
        %v2068 = vpop.f32.mrb[0].mxu0
        %v2069 = vadd.f32 0.0, %v2068
        %v2070 = vpop.f32.mrb[0].mxu0
        %v2071 = vpop.f32.mrb[0].mxu0
        %v2072 = vadd.f32 0.0, %v2071
        %v2073 = vpop.f32.mrb[0].mxu0
        %2074 = vmatprep.mubr.bf16.mxu0 %v1315
        %2075 = vmatmul.mubr.bf16.gmra.mrb[0].mxu0 %v1314
        %v2076 = vpop.f32.mrb[0].mxu0
        %v2077 = vadd.f32 0.0, %v2076
        %v2078 = vpop.f32.mrb[0].mxu0
        %v2079 = vpop.f32.mrb[0].mxu0
        %v2080 = vadd.f32 0.0, %v2079
        %v2081 = vpop.f32.mrb[0].mxu0
        %2082 = vmatprep.mubr.bf16.mxu0 %v1318
        %2083 = vmatmul.mubr.bf16.gmra.mrb[0].mxu0 %v1317
        %v2084 = vpop.f32.mrb[0].mxu0
        %v2085 = vadd.f32 0.0, %v2084
        %v2086 = vpop.f32.mrb[0].mxu0
        %v2087 = vpop.f32.mrb[0].mxu0
        %v2088 = vadd.f32 0.0, %v2087
        %v2089 = vpop.f32.mrb[0].mxu0
        %2090 = vmatprep.mubr.bf16.mxu0 %v1321
        %2091 = vmatmul.mubr.bf16.gmra.mrb[0].mxu0 %v1320
        %v2092 = vpop.f32.mrb[0].mxu0
        %v2093 = vadd.f32 0.0, %v2092
        %v2094 = vpop.f32.mrb[0].mxu0
        %v2095 = vpop.f32.mrb[0].mxu0
        %v2096 = vadd.f32 0.0, %v2095
        %v2097 = vpop.f32.mrb[0].mxu0
        %2098 = vmatprep.mubr.bf16.mxu0 %v1324
        %2099 = vmatmul.mubr.bf16.gmra.mrb[0].mxu0 %v1323
        %v2100 = vpop.f32.mrb[0].mxu0
        %v2101 = vadd.f32 0.0, %v2100
        %v2102 = vpop.f32.mrb[0].mxu0
        %v2103 = vpop.f32.mrb[0].mxu0
        %v2104 = vadd.f32 0.0, %v2103
        %v2105 = vpop.f32.mrb[0].mxu0
        %2106 = vmatprep.mubr.bf16.mxu0 %v1327
        %2107 = vmatmul.mubr.bf16.gmra.mrb[0].mxu0 %v1326
        %v2108 = vpop.f32.mrb[0].mxu0
        %v2109 = vadd.f32 0.0, %v2108
        %v2110 = vpop.f32.mrb[0].mxu0
        %v2111 = vpop.f32.mrb[0].mxu0
        %v2112 = vadd.f32 0.0, %v2111
        %v2113 = vpop.f32.mrb[0].mxu0
        %2114 = vmatprep.mubr.bf16.mxu0 %v1330
        %2115 = vmatmul.mubr.bf16.gmra.mrb[0].mxu0 %v1329
        %v2116 = vpop.f32.mrb[0].mxu0
        %v2117 = vadd.f32 0.0, %v2116
        %v2118 = vpop.f32.mrb[0].mxu0
        %v2119 = vpop.f32.mrb[0].mxu0
        %v2120 = vadd.f32 0.0, %v2119
        %v2121 = vpop.f32.mrb[0].mxu0
        %2122 = vmatprep.mubr.bf16.mxu0 %v1333
        %2123 = vmatmul.mubr.bf16.gmra.mrb[0].mxu0 %v1332
        %v2124 = vpop.f32.mrb[0].mxu0
        %v2125 = vadd.f32 0.0, %v2124
        %v2126 = vpop.f32.mrb[0].mxu0
        %v2127 = vpop.f32.mrb[0].mxu0
        %v2128 = vadd.f32 0.0, %v2127
        %v2129 = vpop.f32.mrb[0].mxu0
        %2130 = vmatprep.mubr.bf16.mxu0 %v1336
        %2131 = vmatmul.mubr.bf16.gmra.mrb[0].mxu0 %v1335
        %v2132 = vpop.f32.mrb[0].mxu0
        %v2133 = vadd.f32 0.0, %v2132
        %v2134 = vpop.f32.mrb[0].mxu0
        %v2135 = vpop.f32.mrb[0].mxu0
        %v2136 = vadd.f32 0.0, %v2135
        %v2137 = vpop.f32.mrb[0].mxu0
        %2138 = vmatprep.mubr.bf16.mxu0 %v1339
        %2139 = vmatmul.mubr.bf16.gmra.mrb[0].mxu0 %v1338
        %v2140 = vpop.f32.mrb[0].mxu0
        %v2141 = vadd.f32 0.0, %v2140
        %v2142 = vpop.f32.mrb[0].mxu0
        %v2143 = vpop.f32.mrb[0].mxu0
        %v2144 = vadd.f32 0.0, %v2143
        %v2145 = vpop.f32.mrb[0].mxu0
        %2146 = vmatprep.mubr.bf16.mxu0 %v1342
        %2147 = vmatmul.mubr.bf16.gmra.mrb[0].mxu0 %v1341
        %v2148 = vpop.f32.mrb[0].mxu0
        %v2149 = vadd.f32 0.0, %v2148
        %v2150 = vpop.f32.mrb[0].mxu0
        %v2151 = vpop.f32.mrb[0].mxu0
        %v2152 = vadd.f32 0.0, %v2151
        %v2153 = vpop.f32.mrb[0].mxu0
        %2154 = vmatprep.mubr.bf16.mxu0 %v1345
        %2155 = vmatmul.mubr.bf16.gmra.mrb[0].mxu0 %v1344
        %v2156 = vpop.f32.mrb[0].mxu0
        %v2157 = vadd.f32 0.0, %v2156
        %v2158 = vpop.f32.mrb[0].mxu0
        %v2159 = vpop.f32.mrb[0].mxu0
        %v2160 = vadd.f32 0.0, %v2159
        %v2161 = vpop.f32.mrb[0].mxu0
        %2162 = vmatprep.mubr.bf16.mxu0 %v1348
        %2163 = vmatmul.mubr.bf16.gmra.mrb[0].mxu0 %v1347
        %v2164 = vpop.f32.mrb[0].mxu0
        %v2165 = vadd.f32 0.0, %v2164
        %v2166 = vpop.f32.mrb[0].mxu0
        %v2167 = vpop.f32.mrb[0].mxu0
        %v2168 = vadd.f32 0.0, %v2167
        %v2169 = vpop.f32.mrb[0].mxu0
        %2170 = vmatprep.mubr.bf16.mxu0 %v1351
        %2171 = vmatmul.mubr.bf16.gmra.mrb[0].mxu0 %v1350
        %v2172 = vpop.f32.mrb[0].mxu0
        %v2173 = vadd.f32 0.0, %v2172
        %v2174 = vpop.f32.mrb[0].mxu0
        %v2175 = vpop.f32.mrb[0].mxu0
        %v2176 = vadd.f32 0.0, %v2175
        %v2177 = vpop.f32.mrb[0].mxu0
        %2178 = vmatprep.mubr.bf16.mxu0 %v1354
        %2179 = vmatmul.mubr.bf16.gmra.mrb[0].mxu0 %v1353
        %v2180 = vpop.f32.mrb[0].mxu0
        %v2181 = vadd.f32 0.0, %v2180
        %v2182 = vpop.f32.mrb[0].mxu0
        %v2183 = vpop.f32.mrb[0].mxu0
        %v2184 = vadd.f32 0.0, %v2183
        %v2185 = vpop.f32.mrb[0].mxu0
        %2186 = vmatprep.mubr.bf16.mxu0 %v1357
        %2187 = vmatmul.mubr.bf16.gmra.mrb[0].mxu0 %v1356
        %v2188 = vpop.f32.mrb[0].mxu0
        %v2189 = vadd.f32 0.0, %v2188
        %v2190 = vpop.f32.mrb[0].mxu0
        %v2191 = vpop.f32.mrb[0].mxu0
        %v2192 = vadd.f32 0.0, %v2191
        %v2193 = vpop.f32.mrb[0].mxu0
        %2194 = vmatprep.mubr.bf16.mxu0 %v1360
        %2195 = vmatmul.mubr.bf16.gmra.mrb[0].mxu0 %v1359
        %v2196 = vpop.f32.mrb[0].mxu0
        %v2197 = vadd.f32 0.0, %v2196
        %v2198 = vpop.f32.mrb[0].mxu0
        %v2199 = vpop.f32.mrb[0].mxu0
        %v2200 = vadd.f32 0.0, %v2199
        %v2201 = vpop.f32.mrb[0].mxu0
        %2202 = vmatprep.mubr.bf16.mxu0 %v1363
        %2203 = vmatmul.mubr.bf16.gmra.mrb[0].mxu0 %v1362
        %v2204 = vpop.f32.mrb[0].mxu0
        %v2205 = vadd.f32 0.0, %v2204
        %v2206 = vpop.f32.mrb[0].mxu0
        %v2207 = vpop.f32.mrb[0].mxu0
        %v2208 = vadd.f32 0.0, %v2207
        %v2209 = vpop.f32.mrb[0].mxu0
        %2210 = vmatprep.mubr.bf16.mxu0 %v1366
        %2211 = vmatmul.mubr.bf16.gmra.mrb[0].mxu0 %v1365
        %v2212 = vpop.f32.mrb[0].mxu0
        %v2213 = vadd.f32 0.0, %v2212
        %v2214 = vpop.f32.mrb[0].mxu0
        %v2215 = vpop.f32.mrb[0].mxu0
        %v2216 = vadd.f32 0.0, %v2215
        %v2217 = vpop.f32.mrb[0].mxu0
        %2218 = vmatprep.mubr.bf16.mxu0 %v1369
        %2219 = vmatmul.mubr.bf16.gmra.mrb[0].mxu0 %v1368
        %v2220 = vpop.f32.mrb[0].mxu0
        %v2221 = vadd.f32 0.0, %v2220
        %v2222 = vpop.f32.mrb[0].mxu0
        %v2223 = vpop.f32.mrb[0].mxu0
        %v2224 = vadd.f32 0.0, %v2223
        %v2225 = vpop.f32.mrb[0].mxu0
        %2226 = vmatprep.mubr.bf16.mxu0 %v1372
        %2227 = vmatmul.mubr.bf16.gmra.mrb[0].mxu0 %v1371
        %v2228 = vpop.f32.mrb[0].mxu0
        %v2229 = vadd.f32 0.0, %v2228
        %v2230 = vpop.f32.mrb[0].mxu0
        %v2231 = vpop.f32.mrb[0].mxu0
        %v2232 = vadd.f32 0.0, %v2231
        %v2233 = vpop.f32.mrb[0].mxu0
        %2234 = vmatprep.mubr.bf16.mxu0 %v1375
        %2235 = vmatmul.mubr.bf16.gmra.mrb[0].mxu0 %v1374
        %v2236 = vpop.f32.mrb[0].mxu0
        %v2237 = vadd.f32 0.0, %v2236
        %v2238 = vpop.f32.mrb[0].mxu0
        %v2239 = vpop.f32.mrb[0].mxu0
        %v2240 = vadd.f32 0.0, %v2239
        %v2241 = vpop.f32.mrb[0].mxu0
        %2242 = vmatprep.mubr.bf16.mxu0 %v1378
        %2243 = vmatmul.mubr.bf16.gmra.mrb[0].mxu0 %v1377
        %v2244 = vpop.f32.mrb[0].mxu0
        %v2245 = vadd.f32 0.0, %v2244
        %v2246 = vpop.f32.mrb[0].mxu0
        %v2247 = vpop.f32.mrb[0].mxu0
        %v2248 = vadd.f32 0.0, %v2247
        %v2249 = vpop.f32.mrb[0].mxu0
        %2250 = vmatprep.mubr.bf16.mxu0 %v1381
        %2251 = vmatmul.mubr.bf16.gmra.mrb[0].mxu0 %v1380
        %v2252 = vpop.f32.mrb[0].mxu0
        %v2253 = vadd.f32 0.0, %v2252
        %v2254 = vpop.f32.mrb[0].mxu0
        %v2255 = vpop.f32.mrb[0].mxu0
        %v2256 = vadd.f32 0.0, %v2255
        %v2257 = vpop.f32.mrb[0].mxu0
        %2258 = vmatprep.mubr.bf16.mxu0 %v1384
        %2259 = vmatmul.mubr.bf16.gmra.mrb[0].mxu0 %v1383
        %v2260 = vpop.f32.mrb[0].mxu0
        %v2261 = vadd.f32 0.0, %v2260
        %v2262 = vpop.f32.mrb[0].mxu0
        %v2263 = vpop.f32.mrb[0].mxu0
        %v2264 = vadd.f32 0.0, %v2263
        %v2265 = vpop.f32.mrb[0].mxu0
        %2266 = vdwg.mxu0
        %2267 = vmatprep.subr.bf16.mxu0 0
        %2268 = vmatpush1.bf16.msra.mxu0 %v1690
        %2269 = vmatprep.subr.bf16.mxu0 0
        %2270 = vmatpush1.bf16.msra.mxu0 %v1691
        %2271 = vmatprep.subr.bf16.mxu0 0
        %2272 = vmatpush1.bf16.msra.mxu0 %v1692
        %2273 = vmatprep.subr.bf16.mxu0 0
        %2274 = vmatpush1.bf16.msra.mxu0 %v1693
        %2275 = vmatprep.subr.bf16.mxu0 0
        %2276 = vmatpush1.bf16.msra.mxu0 %v1694
        %2277 = vmatprep.subr.bf16.mxu0 0
        %2278 = vmatpush1.bf16.msra.mxu0 %v1695
        %2279 = vmatprep.subr.bf16.mxu0 0
        %2280 = vmatpush1.bf16.msra.mxu0 %v1696
        %2281 = vmatprep.subr.bf16.mxu0 0
        %2282 = vmatpush1.bf16.msra.mxu0 %v1697
        %2283 = vmatprep.subr.bf16.mxu0 0
        %2284 = vmatpush1.bf16.msra.mxu0 0
        %2285 = vmatprep.subr.bf16.mxu0 0
        %2286 = vmatpush1.bf16.msra.mxu0 0
        %2287 = vmatprep.subr.bf16.mxu0 0
        %2288 = vmatpush1.bf16.msra.mxu0 0
        %2289 = vmatprep.subr.bf16.mxu0 0
        %2290 = vmatpush1.bf16.msra.mxu0 0
        %2291 = vmatprep.subr.bf16.mxu0 0
        %2292 = vmatpush1.bf16.msra.mxu0 0
        %2293 = vmatprep.subr.bf16.mxu0 0
        %2294 = vmatpush1.bf16.msra.mxu0 0
        %2295 = vmatprep.subr.bf16.mxu0 0
        %2296 = vmatpush1.bf16.msra.mxu0 0
        %2297 = vmatprep.subr.bf16.mxu0 0
        %2298 = vmatpush1.bf16.msra.mxu0 0
        %2299 = vmatprep.mubr.bf16.mxu0 0
        %2300 = vmatmul.mubr.bf16.gmra.mrb[0].mxu0 %v1196
        %v2301 = vpop.f32.mrb[0].mxu0
        %v2302 = vadd.f32 %v1757, %v2301
        %v2303 = vpop.f32.mrb[0].mxu0
        %v2304 = vpop.f32.mrb[0].mxu0
        %v2305 = vadd.f32 %v1760, %v2304
        %v2306 = vpop.f32.mrb[0].mxu0
        %2307 = vmatprep.mubr.bf16.mxu0 0
        %2308 = vmatmul.mubr.bf16.gmra.mrb[0].mxu0 %v1199
        %v2309 = vpop.f32.mrb[0].mxu0
        %v2310 = vadd.f32 %v1765, %v2309
        %v2311 = vpop.f32.mrb[0].mxu0
        %v2312 = vpop.f32.mrb[0].mxu0
        %v2313 = vadd.f32 %v1768, %v2312
        %v2314 = vpop.f32.mrb[0].mxu0
        %2315 = vmatprep.mubr.bf16.mxu0 0
        %2316 = vmatmul.mubr.bf16.gmra.mrb[0].mxu0 %v1202
        %v2317 = vpop.f32.mrb[0].mxu0
        %v2318 = vadd.f32 %v1773, %v2317
        %v2319 = vpop.f32.mrb[0].mxu0
        %v2320 = vpop.f32.mrb[0].mxu0
        %v2321 = vadd.f32 %v1776, %v2320
        %v2322 = vpop.f32.mrb[0].mxu0
        %2323 = vmatprep.mubr.bf16.mxu0 0
        %2324 = vmatmul.mubr.bf16.gmra.mrb[0].mxu0 %v1205
        %v2325 = vpop.f32.mrb[0].mxu0
        %v2326 = vadd.f32 %v1781, %v2325
        %v2327 = vpop.f32.mrb[0].mxu0
        %v2328 = vpop.f32.mrb[0].mxu0
        %v2329 = vadd.f32 %v1784, %v2328
        %v2330 = vpop.f32.mrb[0].mxu0
        %2331 = vmatprep.mubr.bf16.mxu0 0
        %2332 = vmatmul.mubr.bf16.gmra.mrb[0].mxu0 %v1208
        %v2333 = vpop.f32.mrb[0].mxu0
        %v2334 = vadd.f32 %v1789, %v2333
        %v2335 = vpop.f32.mrb[0].mxu0
        %v2336 = vpop.f32.mrb[0].mxu0
        %v2337 = vadd.f32 %v1792, %v2336
        %v2338 = vpop.f32.mrb[0].mxu0
        %2339 = vmatprep.mubr.bf16.mxu0 0
        %2340 = vmatmul.mubr.bf16.gmra.mrb[0].mxu0 %v1211
        %v2341 = vpop.f32.mrb[0].mxu0
        %v2342 = vadd.f32 %v1797, %v2341
        %v2343 = vpop.f32.mrb[0].mxu0
        %v2344 = vpop.f32.mrb[0].mxu0
        %v2345 = vadd.f32 %v1800, %v2344
        %v2346 = vpop.f32.mrb[0].mxu0
        %2347 = vmatprep.mubr.bf16.mxu0 0
        %2348 = vmatmul.mubr.bf16.gmra.mrb[0].mxu0 %v1214
        %v2349 = vpop.f32.mrb[0].mxu0
        %v2350 = vadd.f32 %v1805, %v2349
        %v2351 = vpop.f32.mrb[0].mxu0
        %v2352 = vpop.f32.mrb[0].mxu0
        %v2353 = vadd.f32 %v1808, %v2352
        %v2354 = vpop.f32.mrb[0].mxu0
        %2355 = vmatprep.mubr.bf16.mxu0 0
        %2356 = vmatmul.mubr.bf16.gmra.mrb[0].mxu0 %v1217
        %v2357 = vpop.f32.mrb[0].mxu0
        %v2358 = vadd.f32 %v1813, %v2357
        %v2359 = vpop.f32.mrb[0].mxu0
        %v2360 = vpop.f32.mrb[0].mxu0
        %v2361 = vadd.f32 %v1816, %v2360
        %v2362 = vpop.f32.mrb[0].mxu0
        %2363 = vmatprep.mubr.bf16.mxu0 0
        %2364 = vmatmul.mubr.bf16.gmra.mrb[0].mxu0 %v1220
        %v2365 = vpop.f32.mrb[0].mxu0
        %v2366 = vadd.f32 %v1821, %v2365
        %v2367 = vpop.f32.mrb[0].mxu0
        %v2368 = vpop.f32.mrb[0].mxu0
        %v2369 = vadd.f32 %v1824, %v2368
        %v2370 = vpop.f32.mrb[0].mxu0
        %2371 = vmatprep.mubr.bf16.mxu0 0
        %2372 = vmatmul.mubr.bf16.gmra.mrb[0].mxu0 %v1223
        %v2373 = vpop.f32.mrb[0].mxu0
        %v2374 = vadd.f32 %v1829, %v2373
        %v2375 = vpop.f32.mrb[0].mxu0
        %v2376 = vpop.f32.mrb[0].mxu0
        %v2377 = vadd.f32 %v1832, %v2376
        %v2378 = vpop.f32.mrb[0].mxu0
        %2379 = vmatprep.mubr.bf16.mxu0 0
        %2380 = vmatmul.mubr.bf16.gmra.mrb[0].mxu0 %v1226
        %v2381 = vpop.f32.mrb[0].mxu0
        %v2382 = vadd.f32 %v1837, %v2381
        %v2383 = vpop.f32.mrb[0].mxu0
        %v2384 = vpop.f32.mrb[0].mxu0
        %v2385 = vadd.f32 %v1840, %v2384
        %v2386 = vpop.f32.mrb[0].mxu0
        %2387 = vmatprep.mubr.bf16.mxu0 0
        %2388 = vmatmul.mubr.bf16.gmra.mrb[0].mxu0 %v1229
        %v2389 = vpop.f32.mrb[0].mxu0
        %v2390 = vadd.f32 %v1845, %v2389
        %v2391 = vpop.f32.mrb[0].mxu0
        %v2392 = vpop.f32.mrb[0].mxu0
        %v2393 = vadd.f32 %v1848, %v2392
        %v2394 = vpop.f32.mrb[0].mxu0
        %2395 = vmatprep.mubr.bf16.mxu0 0
        %2396 = vmatmul.mubr.bf16.gmra.mrb[0].mxu0 %v1232
        %v2397 = vpop.f32.mrb[0].mxu0
        %v2398 = vadd.f32 %v1853, %v2397
        %v2399 = vpop.f32.mrb[0].mxu0
        %v2400 = vpop.f32.mrb[0].mxu0
        %v2401 = vadd.f32 %v1856, %v2400
        %v2402 = vpop.f32.mrb[0].mxu0
        %2403 = vmatprep.mubr.bf16.mxu0 0
        %2404 = vmatmul.mubr.bf16.gmra.mrb[0].mxu0 %v1235
        %v2405 = vpop.f32.mrb[0].mxu0
        %v2406 = vadd.f32 %v1861, %v2405
        %v2407 = vpop.f32.mrb[0].mxu0
        %v2408 = vpop.f32.mrb[0].mxu0
        %v2409 = vadd.f32 %v1864, %v2408
        %v2410 = vpop.f32.mrb[0].mxu0
        %2411 = vmatprep.mubr.bf16.mxu0 0
        %2412 = vmatmul.mubr.bf16.gmra.mrb[0].mxu0 %v1238
        %v2413 = vpop.f32.mrb[0].mxu0
        %v2414 = vadd.f32 %v1869, %v2413
        %v2415 = vpop.f32.mrb[0].mxu0
        %v2416 = vpop.f32.mrb[0].mxu0
        %v2417 = vadd.f32 %v1872, %v2416
        %v2418 = vpop.f32.mrb[0].mxu0
        %2419 = vmatprep.mubr.bf16.mxu0 0
        %2420 = vmatmul.mubr.bf16.gmra.mrb[0].mxu0 %v1241
        %v2421 = vpop.f32.mrb[0].mxu0
        %v2422 = vadd.f32 %v1877, %v2421
        %v2423 = vpop.f32.mrb[0].mxu0
        %v2424 = vpop.f32.mrb[0].mxu0
        %v2425 = vadd.f32 %v1880, %v2424
        %v2426 = vpop.f32.mrb[0].mxu0
        %2427 = vmatprep.mubr.bf16.mxu0 0
        %2428 = vmatmul.mubr.bf16.gmra.mrb[0].mxu0 %v1244
        %v2429 = vpop.f32.mrb[0].mxu0
        %v2430 = vadd.f32 %v1885, %v2429
        %v2431 = vpop.f32.mrb[0].mxu0
        %v2432 = vpop.f32.mrb[0].mxu0
        %v2433 = vadd.f32 %v1888, %v2432
        %v2434 = vpop.f32.mrb[0].mxu0
        %2435 = vmatprep.mubr.bf16.mxu0 0
        %2436 = vmatmul.mubr.bf16.gmra.mrb[0].mxu0 %v1247
        %v2437 = vpop.f32.mrb[0].mxu0
        %v2438 = vadd.f32 %v1893, %v2437
        %v2439 = vpop.f32.mrb[0].mxu0
        %v2440 = vpop.f32.mrb[0].mxu0
        %v2441 = vadd.f32 %v1896, %v2440
        %v2442 = vpop.f32.mrb[0].mxu0
        %2443 = vmatprep.mubr.bf16.mxu0 0
        %2444 = vmatmul.mubr.bf16.gmra.mrb[0].mxu0 %v1250
        %v2445 = vpop.f32.mrb[0].mxu0
        %v2446 = vadd.f32 %v1901, %v2445
        %v2447 = vpop.f32.mrb[0].mxu0
        %v2448 = vpop.f32.mrb[0].mxu0
        %v2449 = vadd.f32 %v1904, %v2448
        %v2450 = vpop.f32.mrb[0].mxu0
        %2451 = vmatprep.mubr.bf16.mxu0 0
        %2452 = vmatmul.mubr.bf16.gmra.mrb[0].mxu0 %v1253
        %v2453 = vpop.f32.mrb[0].mxu0
        %v2454 = vadd.f32 %v1909, %v2453
        %v2455 = vpop.f32.mrb[0].mxu0
        %v2456 = vpop.f32.mrb[0].mxu0
        %v2457 = vadd.f32 %v1912, %v2456
        %v2458 = vpop.f32.mrb[0].mxu0
        %2459 = vmatprep.mubr.bf16.mxu0 0
        %2460 = vmatmul.mubr.bf16.gmra.mrb[0].mxu0 %v1256
        %v2461 = vpop.f32.mrb[0].mxu0
        %v2462 = vadd.f32 %v1917, %v2461
        %v2463 = vpop.f32.mrb[0].mxu0
        %v2464 = vpop.f32.mrb[0].mxu0
        %v2465 = vadd.f32 %v1920, %v2464
        %v2466 = vpop.f32.mrb[0].mxu0
        %2467 = vmatprep.mubr.bf16.mxu0 0
        %2468 = vmatmul.mubr.bf16.gmra.mrb[0].mxu0 %v1259
        %v2469 = vpop.f32.mrb[0].mxu0
        %v2470 = vadd.f32 %v1925, %v2469
        %v2471 = vpop.f32.mrb[0].mxu0
        %v2472 = vpop.f32.mrb[0].mxu0
        %v2473 = vadd.f32 %v1928, %v2472
        %v2474 = vpop.f32.mrb[0].mxu0
        %2475 = vmatprep.mubr.bf16.mxu0 0
        %2476 = vmatmul.mubr.bf16.gmra.mrb[0].mxu0 %v1262
        %v2477 = vpop.f32.mrb[0].mxu0
        %v2478 = vadd.f32 %v1933, %v2477
        %v2479 = vpop.f32.mrb[0].mxu0
        %v2480 = vpop.f32.mrb[0].mxu0
        %v2481 = vadd.f32 %v1936, %v2480
        %v2482 = vpop.f32.mrb[0].mxu0
        %2483 = vmatprep.mubr.bf16.mxu0 0
        %2484 = vmatmul.mubr.bf16.gmra.mrb[0].mxu0 %v1265
        %v2485 = vpop.f32.mrb[0].mxu0
        %v2486 = vadd.f32 %v1941, %v2485
        %v2487 = vpop.f32.mrb[0].mxu0
        %v2488 = vpop.f32.mrb[0].mxu0
        %v2489 = vadd.f32 %v1944, %v2488
        %v2490 = vpop.f32.mrb[0].mxu0
        %2491 = vmatprep.mubr.bf16.mxu0 0
        %2492 = vmatmul.mubr.bf16.gmra.mrb[0].mxu0 %v1268
        %v2493 = vpop.f32.mrb[0].mxu0
        %v2494 = vadd.f32 %v1949, %v2493
        %v2495 = vpop.f32.mrb[0].mxu0
        %v2496 = vpop.f32.mrb[0].mxu0
        %v2497 = vadd.f32 %v1952, %v2496
        %v2498 = vpop.f32.mrb[0].mxu0
        %2499 = vmatprep.mubr.bf16.mxu0 0
        %2500 = vmatmul.mubr.bf16.gmra.mrb[0].mxu0 %v1271
        %v2501 = vpop.f32.mrb[0].mxu0
        %v2502 = vadd.f32 %v1957, %v2501
        %v2503 = vpop.f32.mrb[0].mxu0
        %v2504 = vpop.f32.mrb[0].mxu0
        %v2505 = vadd.f32 %v1960, %v2504
        %v2506 = vpop.f32.mrb[0].mxu0
        %2507 = vmatprep.mubr.bf16.mxu0 0
        %2508 = vmatmul.mubr.bf16.gmra.mrb[0].mxu0 %v1274
        %v2509 = vpop.f32.mrb[0].mxu0
        %v2510 = vadd.f32 %v1965, %v2509
        %v2511 = vpop.f32.mrb[0].mxu0
        %v2512 = vpop.f32.mrb[0].mxu0
        %v2513 = vadd.f32 %v1968, %v2512
        %v2514 = vpop.f32.mrb[0].mxu0
        %2515 = vmatprep.mubr.bf16.mxu0 0
        %2516 = vmatmul.mubr.bf16.gmra.mrb[0].mxu0 %v1277
        %v2517 = vpop.f32.mrb[0].mxu0
        %v2518 = vadd.f32 %v1973, %v2517
        %v2519 = vpop.f32.mrb[0].mxu0
        %v2520 = vpop.f32.mrb[0].mxu0
        %v2521 = vadd.f32 %v1976, %v2520
        %v2522 = vpop.f32.mrb[0].mxu0
        %2523 = vmatprep.mubr.bf16.mxu0 0
        %2524 = vmatmul.mubr.bf16.gmra.mrb[0].mxu0 %v1280
        %v2525 = vpop.f32.mrb[0].mxu0
        %v2526 = vadd.f32 %v1981, %v2525
        %v2527 = vpop.f32.mrb[0].mxu0
        %v2528 = vpop.f32.mrb[0].mxu0
        %v2529 = vadd.f32 %v1984, %v2528
        %v2530 = vpop.f32.mrb[0].mxu0
        %2531 = vmatprep.mubr.bf16.mxu0 0
        %2532 = vmatmul.mubr.bf16.gmra.mrb[0].mxu0 %v1283
        %v2533 = vpop.f32.mrb[0].mxu0
        %v2534 = vadd.f32 %v1989, %v2533
        %v2535 = vpop.f32.mrb[0].mxu0
        %v2536 = vpop.f32.mrb[0].mxu0
        %v2537 = vadd.f32 %v1992, %v2536
        %v2538 = vpop.f32.mrb[0].mxu0
        %2539 = vmatprep.mubr.bf16.mxu0 0
        %2540 = vmatmul.mubr.bf16.gmra.mrb[0].mxu0 %v1286
        %v2541 = vpop.f32.mrb[0].mxu0
        %v2542 = vadd.f32 %v1997, %v2541
        %v2543 = vpop.f32.mrb[0].mxu0
        %v2544 = vpop.f32.mrb[0].mxu0
        %v2545 = vadd.f32 %v2000, %v2544
        %v2546 = vpop.f32.mrb[0].mxu0
        %2547 = vmatprep.mubr.bf16.mxu0 0
        %2548 = vmatmul.mubr.bf16.gmra.mrb[0].mxu0 %v1289
        %v2549 = vpop.f32.mrb[0].mxu0
        %v2550 = vadd.f32 %v2005, %v2549
        %v2551 = vpop.f32.mrb[0].mxu0
        %v2552 = vpop.f32.mrb[0].mxu0
        %v2553 = vadd.f32 %v2008, %v2552
        %v2554 = vpop.f32.mrb[0].mxu0
        %2555 = vmatprep.mubr.bf16.mxu0 0
        %2556 = vmatmul.mubr.bf16.gmra.mrb[0].mxu0 %v1292
        %v2557 = vpop.f32.mrb[0].mxu0
        %v2558 = vadd.f32 %v2013, %v2557
        %v2559 = vpop.f32.mrb[0].mxu0
        %v2560 = vpop.f32.mrb[0].mxu0
        %v2561 = vadd.f32 %v2016, %v2560
        %v2562 = vpop.f32.mrb[0].mxu0
        %2563 = vmatprep.mubr.bf16.mxu0 0
        %2564 = vmatmul.mubr.bf16.gmra.mrb[0].mxu0 %v1295
        %v2565 = vpop.f32.mrb[0].mxu0
        %v2566 = vadd.f32 %v2021, %v2565
        %v2567 = vpop.f32.mrb[0].mxu0
        %v2568 = vpop.f32.mrb[0].mxu0
        %v2569 = vadd.f32 %v2024, %v2568
        %v2570 = vpop.f32.mrb[0].mxu0
        %2571 = vmatprep.mubr.bf16.mxu0 0
        %2572 = vmatmul.mubr.bf16.gmra.mrb[0].mxu0 %v1298
        %v2573 = vpop.f32.mrb[0].mxu0
        %v2574 = vadd.f32 %v2029, %v2573
        %v2575 = vpop.f32.mrb[0].mxu0
        %v2576 = vpop.f32.mrb[0].mxu0
        %v2577 = vadd.f32 %v2032, %v2576
        %v2578 = vpop.f32.mrb[0].mxu0
        %2579 = vmatprep.mubr.bf16.mxu0 0
        %2580 = vmatmul.mubr.bf16.gmra.mrb[0].mxu0 %v1301
        %v2581 = vpop.f32.mrb[0].mxu0
        %v2582 = vadd.f32 %v2037, %v2581
        %v2583 = vpop.f32.mrb[0].mxu0
        %v2584 = vpop.f32.mrb[0].mxu0
        %v2585 = vadd.f32 %v2040, %v2584
        %v2586 = vpop.f32.mrb[0].mxu0
        %2587 = vmatprep.mubr.bf16.mxu0 0
        %2588 = vmatmul.mubr.bf16.gmra.mrb[0].mxu0 %v1304
        %v2589 = vpop.f32.mrb[0].mxu0
        %v2590 = vadd.f32 %v2045, %v2589
        %v2591 = vpop.f32.mrb[0].mxu0
        %v2592 = vpop.f32.mrb[0].mxu0
        %v2593 = vadd.f32 %v2048, %v2592
        %v2594 = vpop.f32.mrb[0].mxu0
        %2595 = vmatprep.mubr.bf16.mxu0 0
        %2596 = vmatmul.mubr.bf16.gmra.mrb[0].mxu0 %v1307
        %v2597 = vpop.f32.mrb[0].mxu0
        %v2598 = vadd.f32 %v2053, %v2597
        %v2599 = vpop.f32.mrb[0].mxu0
        %v2600 = vpop.f32.mrb[0].mxu0
        %v2601 = vadd.f32 %v2056, %v2600
        %v2602 = vpop.f32.mrb[0].mxu0
        %2603 = vmatprep.mubr.bf16.mxu0 0
        %2604 = vmatmul.mubr.bf16.gmra.mrb[0].mxu0 %v1310
        %v2605 = vpop.f32.mrb[0].mxu0
        %v2606 = vadd.f32 %v2061, %v2605
        %v2607 = vpop.f32.mrb[0].mxu0
        %v2608 = vpop.f32.mrb[0].mxu0
        %v2609 = vadd.f32 %v2064, %v2608
        %v2610 = vpop.f32.mrb[0].mxu0
        %2611 = vmatprep.mubr.bf16.mxu0 0
        %2612 = vmatmul.mubr.bf16.gmra.mrb[0].mxu0 %v1313
        %v2613 = vpop.f32.mrb[0].mxu0
        %v2614 = vadd.f32 %v2069, %v2613
        %v2615 = vpop.f32.mrb[0].mxu0
        %v2616 = vpop.f32.mrb[0].mxu0
        %v2617 = vadd.f32 %v2072, %v2616
        %v2618 = vpop.f32.mrb[0].mxu0
        %2619 = vmatprep.mubr.bf16.mxu0 0
        %2620 = vmatmul.mubr.bf16.gmra.mrb[0].mxu0 %v1316
        %v2621 = vpop.f32.mrb[0].mxu0
        %v2622 = vadd.f32 %v2077, %v2621
        %v2623 = vpop.f32.mrb[0].mxu0
        %v2624 = vpop.f32.mrb[0].mxu0
        %v2625 = vadd.f32 %v2080, %v2624
        %v2626 = vpop.f32.mrb[0].mxu0
        %2627 = vmatprep.mubr.bf16.mxu0 0
        %2628 = vmatmul.mubr.bf16.gmra.mrb[0].mxu0 %v1319
        %v2629 = vpop.f32.mrb[0].mxu0
        %v2630 = vadd.f32 %v2085, %v2629
        %v2631 = vpop.f32.mrb[0].mxu0
        %v2632 = vpop.f32.mrb[0].mxu0
        %v2633 = vadd.f32 %v2088, %v2632
        %v2634 = vpop.f32.mrb[0].mxu0
        %2635 = vmatprep.mubr.bf16.mxu0 0
        %2636 = vmatmul.mubr.bf16.gmra.mrb[0].mxu0 %v1322
        %v2637 = vpop.f32.mrb[0].mxu0
        %v2638 = vadd.f32 %v2093, %v2637
        %v2639 = vpop.f32.mrb[0].mxu0
        %v2640 = vpop.f32.mrb[0].mxu0
        %v2641 = vadd.f32 %v2096, %v2640
        %v2642 = vpop.f32.mrb[0].mxu0
        %2643 = vmatprep.mubr.bf16.mxu0 0
        %2644 = vmatmul.mubr.bf16.gmra.mrb[0].mxu0 %v1325
        %v2645 = vpop.f32.mrb[0].mxu0
        %v2646 = vadd.f32 %v2101, %v2645
        %v2647 = vpop.f32.mrb[0].mxu0
        %v2648 = vpop.f32.mrb[0].mxu0
        %v2649 = vadd.f32 %v2104, %v2648
        %v2650 = vpop.f32.mrb[0].mxu0
        %2651 = vmatprep.mubr.bf16.mxu0 0
        %2652 = vmatmul.mubr.bf16.gmra.mrb[0].mxu0 %v1328
        %v2653 = vpop.f32.mrb[0].mxu0
        %v2654 = vadd.f32 %v2109, %v2653
        %v2655 = vpop.f32.mrb[0].mxu0
        %v2656 = vpop.f32.mrb[0].mxu0
        %v2657 = vadd.f32 %v2112, %v2656
        %v2658 = vpop.f32.mrb[0].mxu0
        %2659 = vmatprep.mubr.bf16.mxu0 0
        %2660 = vmatmul.mubr.bf16.gmra.mrb[0].mxu0 %v1331
        %v2661 = vpop.f32.mrb[0].mxu0
        %v2662 = vadd.f32 %v2117, %v2661
        %v2663 = vpop.f32.mrb[0].mxu0
        %v2664 = vpop.f32.mrb[0].mxu0
        %v2665 = vadd.f32 %v2120, %v2664
        %v2666 = vpop.f32.mrb[0].mxu0
        %2667 = vmatprep.mubr.bf16.mxu0 0
        %2668 = vmatmul.mubr.bf16.gmra.mrb[0].mxu0 %v1334
        %v2669 = vpop.f32.mrb[0].mxu0
        %v2670 = vadd.f32 %v2125, %v2669
        %v2671 = vpop.f32.mrb[0].mxu0
        %v2672 = vpop.f32.mrb[0].mxu0
        %v2673 = vadd.f32 %v2128, %v2672
        %v2674 = vpop.f32.mrb[0].mxu0
        %2675 = vmatprep.mubr.bf16.mxu0 0
        %2676 = vmatmul.mubr.bf16.gmra.mrb[0].mxu0 %v1337
        %v2677 = vpop.f32.mrb[0].mxu0
        %v2678 = vadd.f32 %v2133, %v2677
        %v2679 = vpop.f32.mrb[0].mxu0
        %v2680 = vpop.f32.mrb[0].mxu0
        %v2681 = vadd.f32 %v2136, %v2680
        %v2682 = vpop.f32.mrb[0].mxu0
        %2683 = vmatprep.mubr.bf16.mxu0 0
        %2684 = vmatmul.mubr.bf16.gmra.mrb[0].mxu0 %v1340
        %v2685 = vpop.f32.mrb[0].mxu0
        %v2686 = vadd.f32 %v2141, %v2685
        %v2687 = vpop.f32.mrb[0].mxu0
        %v2688 = vpop.f32.mrb[0].mxu0
        %v2689 = vadd.f32 %v2144, %v2688
        %v2690 = vpop.f32.mrb[0].mxu0
        %2691 = vmatprep.mubr.bf16.mxu0 0
        %2692 = vmatmul.mubr.bf16.gmra.mrb[0].mxu0 %v1343
        %v2693 = vpop.f32.mrb[0].mxu0
        %v2694 = vadd.f32 %v2149, %v2693
        %v2695 = vpop.f32.mrb[0].mxu0
        %v2696 = vpop.f32.mrb[0].mxu0
        %v2697 = vadd.f32 %v2152, %v2696
        %v2698 = vpop.f32.mrb[0].mxu0
        %2699 = vmatprep.mubr.bf16.mxu0 0
        %2700 = vmatmul.mubr.bf16.gmra.mrb[0].mxu0 %v1346
        %v2701 = vpop.f32.mrb[0].mxu0
        %v2702 = vadd.f32 %v2157, %v2701
        %v2703 = vpop.f32.mrb[0].mxu0
        %v2704 = vpop.f32.mrb[0].mxu0
        %v2705 = vadd.f32 %v2160, %v2704
        %v2706 = vpop.f32.mrb[0].mxu0
        %2707 = vmatprep.mubr.bf16.mxu0 0
        %2708 = vmatmul.mubr.bf16.gmra.mrb[0].mxu0 %v1349
        %v2709 = vpop.f32.mrb[0].mxu0
        %v2710 = vadd.f32 %v2165, %v2709
        %v2711 = vpop.f32.mrb[0].mxu0
        %v2712 = vpop.f32.mrb[0].mxu0
        %v2713 = vadd.f32 %v2168, %v2712
        %v2714 = vpop.f32.mrb[0].mxu0
        %2715 = vmatprep.mubr.bf16.mxu0 0
        %2716 = vmatmul.mubr.bf16.gmra.mrb[0].mxu0 %v1352
        %v2717 = vpop.f32.mrb[0].mxu0
        %v2718 = vadd.f32 %v2173, %v2717
        %v2719 = vpop.f32.mrb[0].mxu0
        %v2720 = vpop.f32.mrb[0].mxu0
        %v2721 = vadd.f32 %v2176, %v2720
        %v2722 = vpop.f32.mrb[0].mxu0
        %2723 = vmatprep.mubr.bf16.mxu0 0
        %2724 = vmatmul.mubr.bf16.gmra.mrb[0].mxu0 %v1355
        %v2725 = vpop.f32.mrb[0].mxu0
        %v2726 = vadd.f32 %v2181, %v2725
        %v2727 = vpop.f32.mrb[0].mxu0
        %v2728 = vpop.f32.mrb[0].mxu0
        %v2729 = vadd.f32 %v2184, %v2728
        %v2730 = vpop.f32.mrb[0].mxu0
        %2731 = vmatprep.mubr.bf16.mxu0 0
        %2732 = vmatmul.mubr.bf16.gmra.mrb[0].mxu0 %v1358
        %v2733 = vpop.f32.mrb[0].mxu0
        %v2734 = vadd.f32 %v2189, %v2733
        %v2735 = vpop.f32.mrb[0].mxu0
        %v2736 = vpop.f32.mrb[0].mxu0
        %v2737 = vadd.f32 %v2192, %v2736
        %v2738 = vpop.f32.mrb[0].mxu0
        %2739 = vmatprep.mubr.bf16.mxu0 0
        %2740 = vmatmul.mubr.bf16.gmra.mrb[0].mxu0 %v1361
        %v2741 = vpop.f32.mrb[0].mxu0
        %v2742 = vadd.f32 %v2197, %v2741
        %v2743 = vpop.f32.mrb[0].mxu0
        %v2744 = vpop.f32.mrb[0].mxu0
        %v2745 = vadd.f32 %v2200, %v2744
        %v2746 = vpop.f32.mrb[0].mxu0
        %2747 = vmatprep.mubr.bf16.mxu0 0
        %2748 = vmatmul.mubr.bf16.gmra.mrb[0].mxu0 %v1364
        %v2749 = vpop.f32.mrb[0].mxu0
        %v2750 = vadd.f32 %v2205, %v2749
        %v2751 = vpop.f32.mrb[0].mxu0
        %v2752 = vpop.f32.mrb[0].mxu0
        %v2753 = vadd.f32 %v2208, %v2752
        %v2754 = vpop.f32.mrb[0].mxu0
        %2755 = vmatprep.mubr.bf16.mxu0 0
        %2756 = vmatmul.mubr.bf16.gmra.mrb[0].mxu0 %v1367
        %v2757 = vpop.f32.mrb[0].mxu0
        %v2758 = vadd.f32 %v2213, %v2757
        %v2759 = vpop.f32.mrb[0].mxu0
        %v2760 = vpop.f32.mrb[0].mxu0
        %v2761 = vadd.f32 %v2216, %v2760
        %v2762 = vpop.f32.mrb[0].mxu0
        %2763 = vmatprep.mubr.bf16.mxu0 0
        %2764 = vmatmul.mubr.bf16.gmra.mrb[0].mxu0 %v1370
        %v2765 = vpop.f32.mrb[0].mxu0
        %v2766 = vadd.f32 %v2221, %v2765
        %v2767 = vpop.f32.mrb[0].mxu0
        %v2768 = vpop.f32.mrb[0].mxu0
        %v2769 = vadd.f32 %v2224, %v2768
        %v2770 = vpop.f32.mrb[0].mxu0
        %2771 = vmatprep.mubr.bf16.mxu0 0
        %2772 = vmatmul.mubr.bf16.gmra.mrb[0].mxu0 %v1373
        %v2773 = vpop.f32.mrb[0].mxu0
        %v2774 = vadd.f32 %v2229, %v2773
        %v2775 = vpop.f32.mrb[0].mxu0
        %v2776 = vpop.f32.mrb[0].mxu0
        %v2777 = vadd.f32 %v2232, %v2776
        %v2778 = vpop.f32.mrb[0].mxu0
        %2779 = vmatprep.mubr.bf16.mxu0 0
        %2780 = vmatmul.mubr.bf16.gmra.mrb[0].mxu0 %v1376
        %v2781 = vpop.f32.mrb[0].mxu0
        %v2782 = vadd.f32 %v2237, %v2781
        %v2783 = vpop.f32.mrb[0].mxu0
        %v2784 = vpop.f32.mrb[0].mxu0
        %v2785 = vadd.f32 %v2240, %v2784
        %v2786 = vpop.f32.mrb[0].mxu0
        %2787 = vmatprep.mubr.bf16.mxu0 0
        %2788 = vmatmul.mubr.bf16.gmra.mrb[0].mxu0 %v1379
        %v2789 = vpop.f32.mrb[0].mxu0
        %v2790 = vadd.f32 %v2245, %v2789
        %v2791 = vpop.f32.mrb[0].mxu0
        %v2792 = vpop.f32.mrb[0].mxu0
        %v2793 = vadd.f32 %v2248, %v2792
        %v2794 = vpop.f32.mrb[0].mxu0
        %2795 = vmatprep.mubr.bf16.mxu0 0
        %2796 = vmatmul.mubr.bf16.gmra.mrb[0].mxu0 %v1382
        %v2797 = vpop.f32.mrb[0].mxu0
        %v2798 = vadd.f32 %v2253, %v2797
        %v2799 = vpop.f32.mrb[0].mxu0
        %v2800 = vpop.f32.mrb[0].mxu0
        %v2801 = vadd.f32 %v2256, %v2800
        %v2802 = vpop.f32.mrb[0].mxu0
        %2803 = vmatprep.mubr.bf16.mxu0 0
        %2804 = vmatmul.mubr.bf16.gmra.mrb[0].mxu0 %v1385
        %v2805 = vpop.f32.mrb[0].mxu0
        %v2806 = vadd.f32 %v2261, %v2805
        %v2807 = vpop.f32.mrb[0].mxu0
        %v2808 = vpop.f32.mrb[0].mxu0
        %v2809 = vadd.f32 %v2264, %v2808
        %v2810 = vpop.f32.mrb[0].mxu0
        %2811 = vdwg.mxu0
        %v2812 = vpack.c.bf16 %v2305, %v2302
        %v2813 = vpack.c.bf16 %v2313, %v2310
        %v2814 = vpack.c.bf16 %v2321, %v2318
        %v2815 = vpack.c.bf16 %v2329, %v2326
        %v2816 = vpack.c.bf16 %v2337, %v2334
        %v2817 = vpack.c.bf16 %v2345, %v2342
        %v2818 = vpack.c.bf16 %v2353, %v2350
        %v2819 = vpack.c.bf16 %v2361, %v2358
        %v2820 = vpack.c.bf16 %v2369, %v2366
        %v2821 = vpack.c.bf16 %v2377, %v2374
        %v2822 = vpack.c.bf16 %v2385, %v2382
        %v2823 = vpack.c.bf16 %v2393, %v2390
        %v2824 = vpack.c.bf16 %v2401, %v2398
        %v2825 = vpack.c.bf16 %v2409, %v2406
        %v2826 = vpack.c.bf16 %v2417, %v2414
        %v2827 = vpack.c.bf16 %v2425, %v2422
        %v2828 = vpack.c.bf16 %v2433, %v2430
        %v2829 = vpack.c.bf16 %v2441, %v2438
        %v2830 = vpack.c.bf16 %v2449, %v2446
        %v2831 = vpack.c.bf16 %v2457, %v2454
        %v2832 = vpack.c.bf16 %v2465, %v2462
        %v2833 = vpack.c.bf16 %v2473, %v2470
        %v2834 = vpack.c.bf16 %v2481, %v2478
        %v2835 = vpack.c.bf16 %v2489, %v2486
        %v2836 = vpack.c.bf16 %v2497, %v2494
        %v2837 = vpack.c.bf16 %v2505, %v2502
        %v2838 = vpack.c.bf16 %v2513, %v2510
        %v2839 = vpack.c.bf16 %v2521, %v2518
        %v2840 = vpack.c.bf16 %v2529, %v2526
        %v2841 = vpack.c.bf16 %v2537, %v2534
        %v2842 = vpack.c.bf16 %v2545, %v2542
        %v2843 = vpack.c.bf16 %v2553, %v2550
        %v2844 = vpack.c.bf16 %v2561, %v2558
        %v2845 = vpack.c.bf16 %v2569, %v2566
        %v2846 = vpack.c.bf16 %v2577, %v2574
        %v2847 = vpack.c.bf16 %v2585, %v2582
        %v2848 = vpack.c.bf16 %v2593, %v2590
        %v2849 = vpack.c.bf16 %v2601, %v2598
        %v2850 = vpack.c.bf16 %v2609, %v2606
        %v2851 = vpack.c.bf16 %v2617, %v2614
        %v2852 = vpack.c.bf16 %v2625, %v2622
        %v2853 = vpack.c.bf16 %v2633, %v2630
        %v2854 = vpack.c.bf16 %v2641, %v2638
        %v2855 = vpack.c.bf16 %v2649, %v2646
        %v2856 = vpack.c.bf16 %v2657, %v2654
        %v2857 = vpack.c.bf16 %v2665, %v2662
        %v2858 = vpack.c.bf16 %v2673, %v2670
        %v2859 = vpack.c.bf16 %v2681, %v2678
        %v2860 = vpack.c.bf16 %v2689, %v2686
        %v2861 = vpack.c.bf16 %v2697, %v2694
        %v2862 = vpack.c.bf16 %v2705, %v2702
        %v2863 = vpack.c.bf16 %v2713, %v2710
        %v2864 = vpack.c.bf16 %v2721, %v2718
        %v2865 = vpack.c.bf16 %v2729, %v2726
        %v2866 = vpack.c.bf16 %v2737, %v2734
        %v2867 = vpack.c.bf16 %v2745, %v2742
        %v2868 = vpack.c.bf16 %v2753, %v2750
        %v2869 = vpack.c.bf16 %v2761, %v2758
        %v2870 = vpack.c.bf16 %v2769, %v2766
        %v2871 = vpack.c.bf16 %v2777, %v2774
        %v2872 = vpack.c.bf16 %v2785, %v2782
        %v2873 = vpack.c.bf16 %v2793, %v2790
        %v2874 = vpack.c.bf16 %v2801, %v2798
        %v2875 = vpack.c.bf16 %v2809, %v2806
        %v2940 = vunpack.c.l.b16 %v2812
        %v2941 = vunpack.c.h.b16 %v2812
        %v2942 = vunpack.c.l.b16 %v2813
        %v2943 = vunpack.c.h.b16 %v2813
        %v2944 = vunpack.c.l.b16 %v2814
        %v2945 = vunpack.c.h.b16 %v2814
        %v2946 = vunpack.c.l.b16 %v2815
        %v2947 = vunpack.c.h.b16 %v2815
        %v2948 = vunpack.c.l.b16 %v2816
        %v2949 = vunpack.c.h.b16 %v2816
        %v2950 = vunpack.c.l.b16 %v2817
        %v2951 = vunpack.c.h.b16 %v2817
        %v2952 = vunpack.c.l.b16 %v2818
        %v2953 = vunpack.c.h.b16 %v2818
        %v2954 = vunpack.c.l.b16 %v2819
        %v2955 = vunpack.c.h.b16 %v2819
        %v2956 = vunpack.c.l.b16 %v2820
        %v2957 = vunpack.c.h.b16 %v2820
        %v2958 = vunpack.c.l.b16 %v2821
        %v2959 = vunpack.c.h.b16 %v2821
        %v2960 = vunpack.c.l.b16 %v2822
        %v2961 = vunpack.c.h.b16 %v2822
        %v2962 = vunpack.c.l.b16 %v2823
        %v2963 = vunpack.c.h.b16 %v2823
        %v2964 = vunpack.c.l.b16 %v2824
        %v2965 = vunpack.c.h.b16 %v2824
        %v2966 = vunpack.c.l.b16 %v2825
        %v2967 = vunpack.c.h.b16 %v2825
        %v2968 = vunpack.c.l.b16 %v2826
        %v2969 = vunpack.c.h.b16 %v2826
        %v2970 = vunpack.c.l.b16 %v2827
        %v2971 = vunpack.c.h.b16 %v2827
        %v2972 = vunpack.c.l.b16 %v2828
        %v2973 = vunpack.c.h.b16 %v2828
        %v2974 = vunpack.c.l.b16 %v2829
        %v2975 = vunpack.c.h.b16 %v2829
        %v2976 = vunpack.c.l.b16 %v2830
        %v2977 = vunpack.c.h.b16 %v2830
        %v2978 = vunpack.c.l.b16 %v2831
        %v2979 = vunpack.c.h.b16 %v2831
        %v2980 = vunpack.c.l.b16 %v2832
        %v2981 = vunpack.c.h.b16 %v2832
        %v2982 = vunpack.c.l.b16 %v2833
        %v2983 = vunpack.c.h.b16 %v2833
        %v2984 = vunpack.c.l.b16 %v2834
        %v2985 = vunpack.c.h.b16 %v2834
        %v2986 = vunpack.c.l.b16 %v2835
        %v2987 = vunpack.c.h.b16 %v2835
        %v2988 = vunpack.c.l.b16 %v2836
        %v2989 = vunpack.c.h.b16 %v2836
        %v2990 = vunpack.c.l.b16 %v2837
        %v2991 = vunpack.c.h.b16 %v2837
        %v2992 = vunpack.c.l.b16 %v2838
        %v2993 = vunpack.c.h.b16 %v2838
        %v2994 = vunpack.c.l.b16 %v2839
        %v2995 = vunpack.c.h.b16 %v2839
        %v2996 = vunpack.c.l.b16 %v2840
        %v2997 = vunpack.c.h.b16 %v2840
        %v2998 = vunpack.c.l.b16 %v2841
        %v2999 = vunpack.c.h.b16 %v2841
        %v3000 = vunpack.c.l.b16 %v2842
        %v3001 = vunpack.c.h.b16 %v2842
        %v3002 = vunpack.c.l.b16 %v2843
        %v3003 = vunpack.c.h.b16 %v2843
        %v3004 = vunpack.c.l.b16 %v2844
        %v3005 = vunpack.c.h.b16 %v2844
        %v3006 = vunpack.c.l.b16 %v2845
        %v3007 = vunpack.c.h.b16 %v2845
        %v3008 = vunpack.c.l.b16 %v2846
        %v3009 = vunpack.c.h.b16 %v2846
        %v3010 = vunpack.c.l.b16 %v2847
        %v3011 = vunpack.c.h.b16 %v2847
        %v3012 = vunpack.c.l.b16 %v2848
        %v3013 = vunpack.c.h.b16 %v2848
        %v3014 = vunpack.c.l.b16 %v2849
        %v3015 = vunpack.c.h.b16 %v2849
        %v3016 = vunpack.c.l.b16 %v2850
        %v3017 = vunpack.c.h.b16 %v2850
        %v3018 = vunpack.c.l.b16 %v2851
        %v3019 = vunpack.c.h.b16 %v2851
        %v3020 = vunpack.c.l.b16 %v2852
        %v3021 = vunpack.c.h.b16 %v2852
        %v3022 = vunpack.c.l.b16 %v2853
        %v3023 = vunpack.c.h.b16 %v2853
        %v3024 = vunpack.c.l.b16 %v2854
        %v3025 = vunpack.c.h.b16 %v2854
        %v3026 = vunpack.c.l.b16 %v2855
        %v3027 = vunpack.c.h.b16 %v2855
        %v3028 = vunpack.c.l.b16 %v2856
        %v3029 = vunpack.c.h.b16 %v2856
        %v3030 = vunpack.c.l.b16 %v2857
        %v3031 = vunpack.c.h.b16 %v2857
        %v3032 = vunpack.c.l.b16 %v2858
        %v3033 = vunpack.c.h.b16 %v2858
        %v3034 = vunpack.c.l.b16 %v2859
        %v3035 = vunpack.c.h.b16 %v2859
        %v3036 = vunpack.c.l.b16 %v2860
        %v3037 = vunpack.c.h.b16 %v2860
        %v3038 = vunpack.c.l.b16 %v2861
        %v3039 = vunpack.c.h.b16 %v2861
        %v3040 = vunpack.c.l.b16 %v2862
        %v3041 = vunpack.c.h.b16 %v2862
        %v3042 = vunpack.c.l.b16 %v2863
        %v3043 = vunpack.c.h.b16 %v2863
        %v3044 = vunpack.c.l.b16 %v2864
        %v3045 = vunpack.c.h.b16 %v2864
        %v3046 = vunpack.c.l.b16 %v2865
        %v3047 = vunpack.c.h.b16 %v2865
        %v3048 = vunpack.c.l.b16 %v2866
        %v3049 = vunpack.c.h.b16 %v2866
        %v3050 = vunpack.c.l.b16 %v2867
        %v3051 = vunpack.c.h.b16 %v2867
        %v3052 = vunpack.c.l.b16 %v2868
        %v3053 = vunpack.c.h.b16 %v2868
        %v3054 = vunpack.c.l.b16 %v2869
        %v3055 = vunpack.c.h.b16 %v2869
        %v3056 = vunpack.c.l.b16 %v2870
        %v3057 = vunpack.c.h.b16 %v2870
        %v3058 = vunpack.c.l.b16 %v2871
        %v3059 = vunpack.c.h.b16 %v2871
        %v3060 = vunpack.c.l.b16 %v2872
        %v3061 = vunpack.c.h.b16 %v2872
        %v3062 = vunpack.c.l.b16 %v2873
        %v3063 = vunpack.c.h.b16 %v2873
        %v3064 = vunpack.c.l.b16 %v2874
        %v3065 = vunpack.c.h.b16 %v2874
        %v3066 = vunpack.c.l.b16 %v2875
        %v3067 = vunpack.c.h.b16 %v2875
        %v3068 = vpack.c.b16 %v2940, %v2940
        %v3069 = vpack.c.b16 %v2941, %v2941
        %v3070 = vpack.c.b16 %v2942, %v2942
        %v3071 = vpack.c.b16 %v2943, %v2943
        %v3072 = vpack.c.b16 %v2944, %v2944
        %v3073 = vpack.c.b16 %v2945, %v2945
        %v3074 = vpack.c.b16 %v2946, %v2946
        %v3075 = vpack.c.b16 %v2947, %v2947
        %v3076 = vpack.c.b16 %v2948, %v2948
        %v3077 = vpack.c.b16 %v2949, %v2949
        %v3078 = vpack.c.b16 %v2950, %v2950
        %v3079 = vpack.c.b16 %v2951, %v2951
        %v3080 = vpack.c.b16 %v2952, %v2952
        %v3081 = vpack.c.b16 %v2953, %v2953
        %v3082 = vpack.c.b16 %v2954, %v2954
        %v3083 = vpack.c.b16 %v2955, %v2955
        %v3084 = vpack.c.b16 %v2956, %v2956
        %v3085 = vpack.c.b16 %v2957, %v2957
        %v3086 = vpack.c.b16 %v2958, %v2958
        %v3087 = vpack.c.b16 %v2959, %v2959
        %v3088 = vpack.c.b16 %v2960, %v2960
        %v3089 = vpack.c.b16 %v2961, %v2961
        %v3090 = vpack.c.b16 %v2962, %v2962
        %v3091 = vpack.c.b16 %v2963, %v2963
        %v3092 = vpack.c.b16 %v2964, %v2964
        %v3093 = vpack.c.b16 %v2965, %v2965
        %v3094 = vpack.c.b16 %v2966, %v2966
        %v3095 = vpack.c.b16 %v2967, %v2967
        %v3096 = vpack.c.b16 %v2968, %v2968
        %v3097 = vpack.c.b16 %v2969, %v2969
        %v3098 = vpack.c.b16 %v2970, %v2970
        %v3099 = vpack.c.b16 %v2971, %v2971
        %v3100 = vpack.c.b16 %v2972, %v2972
        %v3101 = vpack.c.b16 %v2973, %v2973
        %v3102 = vpack.c.b16 %v2974, %v2974
        %v3103 = vpack.c.b16 %v2975, %v2975
        %v3104 = vpack.c.b16 %v2976, %v2976
        %v3105 = vpack.c.b16 %v2977, %v2977
        %v3106 = vpack.c.b16 %v2978, %v2978
        %v3107 = vpack.c.b16 %v2979, %v2979
        %v3108 = vpack.c.b16 %v2980, %v2980
        %v3109 = vpack.c.b16 %v2981, %v2981
        %v3110 = vpack.c.b16 %v2982, %v2982
        %v3111 = vpack.c.b16 %v2983, %v2983
        %v3112 = vpack.c.b16 %v2984, %v2984
        %v3113 = vpack.c.b16 %v2985, %v2985
        %v3114 = vpack.c.b16 %v2986, %v2986
        %v3115 = vpack.c.b16 %v2987, %v2987
        %v3116 = vpack.c.b16 %v2988, %v2988
        %v3117 = vpack.c.b16 %v2989, %v2989
        %v3118 = vpack.c.b16 %v2990, %v2990
        %v3119 = vpack.c.b16 %v2991, %v2991
        %v3120 = vpack.c.b16 %v2992, %v2992
        %v3121 = vpack.c.b16 %v2993, %v2993
        %v3122 = vpack.c.b16 %v2994, %v2994
        %v3123 = vpack.c.b16 %v2995, %v2995
        %v3124 = vpack.c.b16 %v2996, %v2996
        %v3125 = vpack.c.b16 %v2997, %v2997
        %v3126 = vpack.c.b16 %v2998, %v2998
        %v3127 = vpack.c.b16 %v2999, %v2999
        %v3128 = vpack.c.b16 %v3000, %v3000
        %v3129 = vpack.c.b16 %v3001, %v3001
        %v3130 = vpack.c.b16 %v3002, %v3002
        %v3131 = vpack.c.b16 %v3003, %v3003
        %v3132 = vpack.c.b16 %v3004, %v3004
        %v3133 = vpack.c.b16 %v3005, %v3005
        %v3134 = vpack.c.b16 %v3006, %v3006
        %v3135 = vpack.c.b16 %v3007, %v3007
        %v3136 = vpack.c.b16 %v3008, %v3008
        %v3137 = vpack.c.b16 %v3009, %v3009
        %v3138 = vpack.c.b16 %v3010, %v3010
        %v3139 = vpack.c.b16 %v3011, %v3011
        %v3140 = vpack.c.b16 %v3012, %v3012
        %v3141 = vpack.c.b16 %v3013, %v3013
        %v3142 = vpack.c.b16 %v3014, %v3014
        %v3143 = vpack.c.b16 %v3015, %v3015
        %v3144 = vpack.c.b16 %v3016, %v3016
        %v3145 = vpack.c.b16 %v3017, %v3017
        %v3146 = vpack.c.b16 %v3018, %v3018
        %v3147 = vpack.c.b16 %v3019, %v3019
        %v3148 = vpack.c.b16 %v3020, %v3020
        %v3149 = vpack.c.b16 %v3021, %v3021
        %v3150 = vpack.c.b16 %v3022, %v3022
        %v3151 = vpack.c.b16 %v3023, %v3023
        %v3152 = vpack.c.b16 %v3024, %v3024
        %v3153 = vpack.c.b16 %v3025, %v3025
        %v3154 = vpack.c.b16 %v3026, %v3026
        %v3155 = vpack.c.b16 %v3027, %v3027
        %v3156 = vpack.c.b16 %v3028, %v3028
        %v3157 = vpack.c.b16 %v3029, %v3029
        %v3158 = vpack.c.b16 %v3030, %v3030
        %v3159 = vpack.c.b16 %v3031, %v3031
        %v3160 = vpack.c.b16 %v3032, %v3032
        %v3161 = vpack.c.b16 %v3033, %v3033
        %v3162 = vpack.c.b16 %v3034, %v3034
        %v3163 = vpack.c.b16 %v3035, %v3035
        %v3164 = vpack.c.b16 %v3036, %v3036
        %v3165 = vpack.c.b16 %v3037, %v3037
        %v3166 = vpack.c.b16 %v3038, %v3038
        %v3167 = vpack.c.b16 %v3039, %v3039
        %v3168 = vpack.c.b16 %v3040, %v3040
        %v3169 = vpack.c.b16 %v3041, %v3041
        %v3170 = vpack.c.b16 %v3042, %v3042
        %v3171 = vpack.c.b16 %v3043, %v3043
        %v3172 = vpack.c.b16 %v3044, %v3044
        %v3173 = vpack.c.b16 %v3045, %v3045
        %v3174 = vpack.c.b16 %v3046, %v3046
        %v3175 = vpack.c.b16 %v3047, %v3047
        %v3176 = vpack.c.b16 %v3048, %v3048
        %v3177 = vpack.c.b16 %v3049, %v3049
        %v3178 = vpack.c.b16 %v3050, %v3050
        %v3179 = vpack.c.b16 %v3051, %v3051
        %v3180 = vpack.c.b16 %v3052, %v3052
        %v3181 = vpack.c.b16 %v3053, %v3053
        %v3182 = vpack.c.b16 %v3054, %v3054
        %v3183 = vpack.c.b16 %v3055, %v3055
        %v3184 = vpack.c.b16 %v3056, %v3056
        %v3185 = vpack.c.b16 %v3057, %v3057
        %v3186 = vpack.c.b16 %v3058, %v3058
        %v3187 = vpack.c.b16 %v3059, %v3059
        %v3188 = vpack.c.b16 %v3060, %v3060
        %v3189 = vpack.c.b16 %v3061, %v3061
        %v3190 = vpack.c.b16 %v3062, %v3062
        %v3191 = vpack.c.b16 %v3063, %v3063
        %v3192 = vpack.c.b16 %v3064, %v3064
        %v3193 = vpack.c.b16 %v3065, %v3065
        %v3194 = vpack.c.b16 %v3066, %v3066
        %v3195 = vpack.c.b16 %v3067, %v3067
        %3324 = vst [vmem:[%s230] sm:$0xf] %v3068
        %3325 = vst [vmem:[%s230 + $0x4] sm:$0xf] %v3069
        %3326 = vst [vmem:[%s230 + $0x8] sm:$0xf] %v3070
        %3327 = vst [vmem:[%s230 + $0xc] sm:$0xf] %v3071
        %3328 = vst [vmem:[%s230 + $0x10] sm:$0xf] %v3072
        %3329 = vst [vmem:[%s230 + $0x14] sm:$0xf] %v3073
        %3330 = vst [vmem:[%s230 + $0x18] sm:$0xf] %v3074
        %3331 = vst [vmem:[%s230 + $0x1c] sm:$0xf] %v3075
        %3332 = vst [vmem:[%s230 + $0x20] sm:$0xf] %v3076
        %3333 = vst [vmem:[%s230 + $0x24] sm:$0xf] %v3077
        %3334 = vst [vmem:[%s230 + $0x28] sm:$0xf] %v3078
        %3335 = vst [vmem:[%s230 + $0x2c] sm:$0xf] %v3079
        %3336 = vst [vmem:[%s230 + $0x30] sm:$0xf] %v3080
        %3337 = vst [vmem:[%s230 + $0x34] sm:$0xf] %v3081
        %3338 = vst [vmem:[%s230 + $0x38] sm:$0xf] %v3082
        %3339 = vst [vmem:[%s230 + $0x3c] sm:$0xf] %v3083
        %3340 = vst [vmem:[%s230 + $0x40] sm:$0xf] %v3084
        %3341 = vst [vmem:[%s230 + $0x44] sm:$0xf] %v3085
        %3342 = vst [vmem:[%s230 + $0x48] sm:$0xf] %v3086
        %3343 = vst [vmem:[%s230 + $0x4c] sm:$0xf] %v3087
        %3344 = vst [vmem:[%s230 + $0x50] sm:$0xf] %v3088
        %3345 = vst [vmem:[%s230 + $0x54] sm:$0xf] %v3089
        %3346 = vst [vmem:[%s230 + $0x58] sm:$0xf] %v3090
        %3347 = vst [vmem:[%s230 + $0x5c] sm:$0xf] %v3091
        %3348 = vst [vmem:[%s230 + $0x60] sm:$0xf] %v3092
        %3349 = vst [vmem:[%s230 + $0x64] sm:$0xf] %v3093
        %3350 = vst [vmem:[%s230 + $0x68] sm:$0xf] %v3094
        %3351 = vst [vmem:[%s230 + $0x6c] sm:$0xf] %v3095
        %3352 = vst [vmem:[%s230 + $0x70] sm:$0xf] %v3096
        %3353 = vst [vmem:[%s230 + $0x74] sm:$0xf] %v3097
        %3354 = vst [vmem:[%s230 + $0x78] sm:$0xf] %v3098
        %3355 = vst [vmem:[%s230 + $0x7c] sm:$0xf] %v3099
        %3356 = vst [vmem:[%s230 + $0x80] sm:$0xf] %v3100
        %3357 = vst [vmem:[%s230 + $0x84] sm:$0xf] %v3101
        %3358 = vst [vmem:[%s230 + $0x88] sm:$0xf] %v3102
        %3359 = vst [vmem:[%s230 + $0x8c] sm:$0xf] %v3103
        %3360 = vst [vmem:[%s230 + $0x90] sm:$0xf] %v3104
        %3361 = vst [vmem:[%s230 + $0x94] sm:$0xf] %v3105
        %3362 = vst [vmem:[%s230 + $0x98] sm:$0xf] %v3106
        %3363 = vst [vmem:[%s230 + $0x9c] sm:$0xf] %v3107
        %3364 = vst [vmem:[%s230 + $0xa0] sm:$0xf] %v3108
        %3365 = vst [vmem:[%s230 + $0xa4] sm:$0xf] %v3109
        %3366 = vst [vmem:[%s230 + $0xa8] sm:$0xf] %v3110
        %3367 = vst [vmem:[%s230 + $0xac] sm:$0xf] %v3111
        %3368 = vst [vmem:[%s230 + $0xb0] sm:$0xf] %v3112
        %3369 = vst [vmem:[%s230 + $0xb4] sm:$0xf] %v3113
        %3370 = vst [vmem:[%s230 + $0xb8] sm:$0xf] %v3114
        %3371 = vst [vmem:[%s230 + $0xbc] sm:$0xf] %v3115
        %3372 = vst [vmem:[%s230 + $0xc0] sm:$0xf] %v3116
        %3373 = vst [vmem:[%s230 + $0xc4] sm:$0xf] %v3117
        %3374 = vst [vmem:[%s230 + $0xc8] sm:$0xf] %v3118
        %3375 = vst [vmem:[%s230 + $0xcc] sm:$0xf] %v3119
        %3376 = vst [vmem:[%s230 + $0xd0] sm:$0xf] %v3120
        %3377 = vst [vmem:[%s230 + $0xd4] sm:$0xf] %v3121
        %3378 = vst [vmem:[%s230 + $0xd8] sm:$0xf] %v3122
        %3379 = vst [vmem:[%s230 + $0xdc] sm:$0xf] %v3123
        %3380 = vst [vmem:[%s230 + $0xe0] sm:$0xf] %v3124
        %3381 = vst [vmem:[%s230 + $0xe4] sm:$0xf] %v3125
        %3382 = vst [vmem:[%s230 + $0xe8] sm:$0xf] %v3126
        %3383 = vst [vmem:[%s230 + $0xec] sm:$0xf] %v3127
        %3384 = vst [vmem:[%s230 + $0xf0] sm:$0xf] %v3128
        %3385 = vst [vmem:[%s230 + $0xf4] sm:$0xf] %v3129
        %3386 = vst [vmem:[%s230 + $0xf8] sm:$0xf] %v3130
        %3387 = vst [vmem:[%s230 + $0xfc] sm:$0xf] %v3131
        %3388 = vst [vmem:[%s230 + $0x100] sm:$0xf] %v3132
        %3389 = vst [vmem:[%s230 + $0x104] sm:$0xf] %v3133
        %3390 = vst [vmem:[%s230 + $0x108] sm:$0xf] %v3134
        %3391 = vst [vmem:[%s230 + $0x10c] sm:$0xf] %v3135
        %3392 = vst [vmem:[%s230 + $0x110] sm:$0xf] %v3136
        %3393 = vst [vmem:[%s230 + $0x114] sm:$0xf] %v3137
        %3394 = vst [vmem:[%s230 + $0x118] sm:$0xf] %v3138
        %3395 = vst [vmem:[%s230 + $0x11c] sm:$0xf] %v3139
        %3396 = vst [vmem:[%s230 + $0x120] sm:$0xf] %v3140
        %3397 = vst [vmem:[%s230 + $0x124] sm:$0xf] %v3141
        %3398 = vst [vmem:[%s230 + $0x128] sm:$0xf] %v3142
        %3399 = vst [vmem:[%s230 + $0x12c] sm:$0xf] %v3143
        %3400 = vst [vmem:[%s230 + $0x130] sm:$0xf] %v3144
        %3401 = vst [vmem:[%s230 + $0x134] sm:$0xf] %v3145
        %3402 = vst [vmem:[%s230 + $0x138] sm:$0xf] %v3146
        %3403 = vst [vmem:[%s230 + $0x13c] sm:$0xf] %v3147
        %3404 = vst [vmem:[%s230 + $0x140] sm:$0xf] %v3148
        %3405 = vst [vmem:[%s230 + $0x144] sm:$0xf] %v3149
        %3406 = vst [vmem:[%s230 + $0x148] sm:$0xf] %v3150
        %3407 = vst [vmem:[%s230 + $0x14c] sm:$0xf] %v3151
        %3408 = vst [vmem:[%s230 + $0x150] sm:$0xf] %v3152
        %3409 = vst [vmem:[%s230 + $0x154] sm:$0xf] %v3153
        %3410 = vst [vmem:[%s230 + $0x158] sm:$0xf] %v3154
        %3411 = vst [vmem:[%s230 + $0x15c] sm:$0xf] %v3155
        %3412 = vst [vmem:[%s230 + $0x160] sm:$0xf] %v3156
        %3413 = vst [vmem:[%s230 + $0x164] sm:$0xf] %v3157
        %3414 = vst [vmem:[%s230 + $0x168] sm:$0xf] %v3158
        %3415 = vst [vmem:[%s230 + $0x16c] sm:$0xf] %v3159
        %3416 = vst [vmem:[%s230 + $0x170] sm:$0xf] %v3160
        %3417 = vst [vmem:[%s230 + $0x174] sm:$0xf] %v3161
        %3418 = vst [vmem:[%s230 + $0x178] sm:$0xf] %v3162
        %3419 = vst [vmem:[%s230 + $0x17c] sm:$0xf] %v3163
        %3420 = vst [vmem:[%s230 + $0x180] sm:$0xf] %v3164
        %3421 = vst [vmem:[%s230 + $0x184] sm:$0xf] %v3165
        %3422 = vst [vmem:[%s230 + $0x188] sm:$0xf] %v3166
        %3423 = vst [vmem:[%s230 + $0x18c] sm:$0xf] %v3167
        %3424 = vst [vmem:[%s230 + $0x190] sm:$0xf] %v3168
        %3425 = vst [vmem:[%s230 + $0x194] sm:$0xf] %v3169
        %3426 = vst [vmem:[%s230 + $0x198] sm:$0xf] %v3170
        %3427 = vst [vmem:[%s230 + $0x19c] sm:$0xf] %v3171
        %3428 = vst [vmem:[%s230 + $0x1a0] sm:$0xf] %v3172
        %3429 = vst [vmem:[%s230 + $0x1a4] sm:$0xf] %v3173
        %3430 = vst [vmem:[%s230 + $0x1a8] sm:$0xf] %v3174
        %3431 = vst [vmem:[%s230 + $0x1ac] sm:$0xf] %v3175
        %3432 = vst [vmem:[%s230 + $0x1b0] sm:$0xf] %v3176
        %3433 = vst [vmem:[%s230 + $0x1b4] sm:$0xf] %v3177
        %3434 = vst [vmem:[%s230 + $0x1b8] sm:$0xf] %v3178
        %3435 = vst [vmem:[%s230 + $0x1bc] sm:$0xf] %v3179
        %3436 = vst [vmem:[%s230 + $0x1c0] sm:$0xf] %v3180
        %3437 = vst [vmem:[%s230 + $0x1c4] sm:$0xf] %v3181
        %3438 = vst [vmem:[%s230 + $0x1c8] sm:$0xf] %v3182
        %3439 = vst [vmem:[%s230 + $0x1cc] sm:$0xf] %v3183
        %3440 = vst [vmem:[%s230 + $0x1d0] sm:$0xf] %v3184
        %3441 = vst [vmem:[%s230 + $0x1d4] sm:$0xf] %v3185
        %3442 = vst [vmem:[%s230 + $0x1d8] sm:$0xf] %v3186
        %3443 = vst [vmem:[%s230 + $0x1dc] sm:$0xf] %v3187
        %3444 = vst [vmem:[%s230 + $0x1e0] sm:$0xf] %v3188
        %3445 = vst [vmem:[%s230 + $0x1e4] sm:$0xf] %v3189
        %3446 = vst [vmem:[%s230 + $0x1e8] sm:$0xf] %v3190
        %3447 = vst [vmem:[%s230 + $0x1ec] sm:$0xf] %v3191
        %3448 = vst [vmem:[%s230 + $0x1f0] sm:$0xf] %v3192
        %3449 = vst [vmem:[%s230 + $0x1f4] sm:$0xf] %v3193
        %3450 = vst [vmem:[%s230 + $0x1f8] sm:$0xf] %v3194
        %3451 = vst [vmem:[%s230 + $0x1fc] sm:$0xf] %v3195
        %v3452 = vld [vmem:[%s237] sm:$0x1]
        %v3453 = vadd.f32 %v2302, %v2305
        %v3454 = vadd.f32 %v3453, %v2310
        %v3455 = vadd.f32 %v3454, %v2313
        %v3456 = vadd.f32 %v3455, %v2318
        %v3457 = vadd.f32 %v3456, %v2321
        %v3458 = vadd.f32 %v3457, %v2326
        %v3459 = vadd.f32 %v3458, %v2329
        %v3460 = vadd.f32 %v3459, %v2334
        %v3461 = vadd.f32 %v3460, %v2337
        %v3462 = vadd.f32 %v3461, %v2342
        %v3463 = vadd.f32 %v3462, %v2345
        %v3464 = vadd.f32 %v3463, %v2350
        %v3465 = vadd.f32 %v3464, %v2353
        %v3466 = vadd.f32 %v3465, %v2358
        %v3467 = vadd.f32 %v3466, %v2361
        %v3468 = vadd.f32 %v3467, %v2366
        %v3469 = vadd.f32 %v3468, %v2369
        %v3470 = vadd.f32 %v3469, %v2374
        %v3471 = vadd.f32 %v3470, %v2377
        %v3472 = vadd.f32 %v3471, %v2382
        %v3473 = vadd.f32 %v3472, %v2385
        %v3474 = vadd.f32 %v3473, %v2390
        %v3475 = vadd.f32 %v3474, %v2393
        %v3476 = vadd.f32 %v3475, %v2398
        %v3477 = vadd.f32 %v3476, %v2401
        %v3478 = vadd.f32 %v3477, %v2406
        %v3479 = vadd.f32 %v3478, %v2409
        %v3480 = vadd.f32 %v3479, %v2414
        %v3481 = vadd.f32 %v3480, %v2417
        %v3482 = vadd.f32 %v3481, %v2422
        %v3483 = vadd.f32 %v3482, %v2425
        %v3484 = vadd.f32 %v3483, %v2430
        %v3485 = vadd.f32 %v3484, %v2433
        %v3486 = vadd.f32 %v3485, %v2438
        %v3487 = vadd.f32 %v3486, %v2441
        %v3488 = vadd.f32 %v3487, %v2446
        %v3489 = vadd.f32 %v3488, %v2449
        %v3490 = vadd.f32 %v3489, %v2454
        %v3491 = vadd.f32 %v3490, %v2457
        %v3492 = vadd.f32 %v3491, %v2462
        %v3493 = vadd.f32 %v3492, %v2465
        %v3494 = vadd.f32 %v3493, %v2470
        %v3495 = vadd.f32 %v3494, %v2473
        %v3496 = vadd.f32 %v3495, %v2478
        %v3497 = vadd.f32 %v3496, %v2481
        %v3498 = vadd.f32 %v3497, %v2486
        %v3499 = vadd.f32 %v3498, %v2489
        %v3500 = vadd.f32 %v3499, %v2494
        %v3501 = vadd.f32 %v3500, %v2497
        %v3502 = vadd.f32 %v3501, %v2502
        %v3503 = vadd.f32 %v3502, %v2505
        %v3504 = vadd.f32 %v3503, %v2510
        %v3505 = vadd.f32 %v3504, %v2513
        %v3506 = vadd.f32 %v3505, %v2518
        %v3507 = vadd.f32 %v3506, %v2521
        %v3508 = vadd.f32 %v3507, %v2526
        %v3509 = vadd.f32 %v3508, %v2529
        %v3510 = vadd.f32 %v3509, %v2534
        %v3511 = vadd.f32 %v3510, %v2537
        %v3512 = vadd.f32 %v3511, %v2542
        %v3513 = vadd.f32 %v3512, %v2545
        %v3514 = vadd.f32 %v3513, %v2550
        %v3515 = vadd.f32 %v3514, %v2553
        %v3516 = vadd.f32 %v3515, %v2558
        %v3517 = vadd.f32 %v3516, %v2561
        %v3518 = vadd.f32 %v3517, %v2566
        %v3519 = vadd.f32 %v3518, %v2569
        %v3520 = vadd.f32 %v3519, %v2574
        %v3521 = vadd.f32 %v3520, %v2577
        %v3522 = vadd.f32 %v3521, %v2582
        %v3523 = vadd.f32 %v3522, %v2585
        %v3524 = vadd.f32 %v3523, %v2590
        %v3525 = vadd.f32 %v3524, %v2593
        %v3526 = vadd.f32 %v3525, %v2598
        %v3527 = vadd.f32 %v3526, %v2601
        %v3528 = vadd.f32 %v3527, %v2606
        %v3529 = vadd.f32 %v3528, %v2609
        %v3530 = vadd.f32 %v3529, %v2614
        %v3531 = vadd.f32 %v3530, %v2617
        %v3532 = vadd.f32 %v3531, %v2622
        %v3533 = vadd.f32 %v3532, %v2625
        %v3534 = vadd.f32 %v3533, %v2630
        %v3535 = vadd.f32 %v3534, %v2633
        %v3536 = vadd.f32 %v3535, %v2638
        %v3537 = vadd.f32 %v3536, %v2641
        %v3538 = vadd.f32 %v3537, %v2646
        %v3539 = vadd.f32 %v3538, %v2649
        %v3540 = vadd.f32 %v3539, %v2654
        %v3541 = vadd.f32 %v3540, %v2657
        %v3542 = vadd.f32 %v3541, %v2662
        %v3543 = vadd.f32 %v3542, %v2665
        %v3544 = vadd.f32 %v3543, %v2670
        %v3545 = vadd.f32 %v3544, %v2673
        %v3546 = vadd.f32 %v3545, %v2678
        %v3547 = vadd.f32 %v3546, %v2681
        %v3548 = vadd.f32 %v3547, %v2686
        %v3549 = vadd.f32 %v3548, %v2689
        %v3550 = vadd.f32 %v3549, %v2694
        %v3551 = vadd.f32 %v3550, %v2697
        %v3552 = vadd.f32 %v3551, %v2702
        %v3553 = vadd.f32 %v3552, %v2705
        %v3554 = vadd.f32 %v3553, %v2710
        %v3555 = vadd.f32 %v3554, %v2713
        %v3556 = vadd.f32 %v3555, %v2718
        %v3557 = vadd.f32 %v3556, %v2721
        %v3558 = vadd.f32 %v3557, %v2726
        %v3559 = vadd.f32 %v3558, %v2729
        %v3560 = vadd.f32 %v3559, %v2734
        %v3561 = vadd.f32 %v3560, %v2737
        %v3562 = vadd.f32 %v3561, %v2742
        %v3563 = vadd.f32 %v3562, %v2745
        %v3564 = vadd.f32 %v3563, %v2750
        %v3565 = vadd.f32 %v3564, %v2753
        %v3566 = vadd.f32 %v3565, %v2758
        %v3567 = vadd.f32 %v3566, %v2761
        %v3568 = vadd.f32 %v3567, %v2766
        %v3569 = vadd.f32 %v3568, %v2769
        %v3570 = vadd.f32 %v3569, %v2774
        %v3571 = vadd.f32 %v3570, %v2777
        %v3572 = vadd.f32 %v3571, %v2782
        %v3573 = vadd.f32 %v3572, %v2785
        %v3574 = vadd.f32 %v3573, %v2790
        %v3575 = vadd.f32 %v3574, %v2793
        %v3576 = vadd.f32 %v3575, %v2798
        %v3577 = vadd.f32 %v3576, %v2801
        %v3578 = vadd.f32 %v3577, %v2806
        %v3579 = vadd.f32 %v3578, %v2809
        %v3580 = vrot.slane %v3579, 4
        %v3581 = vadd.f32 %v3579, %v3580
        %v3582 = vrot.slane %v3581, 2
        %v3583 = vadd.f32 %v3581, %v3582
        %v3584 = vrot.slane %v3583, 1
        %v3585 = vadd.f32 %v3583, %v3584
        %v3586 = vadd.f32 %v3452, %v3585
        %3587 = vst [vmem:[%s237] sm:$0x1] %v3586
        %v3588 = vld [vmem:[%s237 + $0x1] sm:$0x1]
        %v3589 = vmul.f32 %v2302, %v2302
        %v3590 = vmul.f32 %v2305, %v2305
        %v3591 = vmul.f32 %v2310, %v2310
        %v3592 = vmul.f32 %v2313, %v2313
        %v3593 = vmul.f32 %v2318, %v2318
        %v3594 = vmul.f32 %v2321, %v2321
        %v3595 = vmul.f32 %v2326, %v2326
        %v3596 = vmul.f32 %v2329, %v2329
        %v3597 = vmul.f32 %v2334, %v2334
        %v3598 = vmul.f32 %v2337, %v2337
        %v3599 = vmul.f32 %v2342, %v2342
        %v3600 = vmul.f32 %v2345, %v2345
        %v3601 = vmul.f32 %v2350, %v2350
        %v3602 = vmul.f32 %v2353, %v2353
        %v3603 = vmul.f32 %v2358, %v2358
        %v3604 = vmul.f32 %v2361, %v2361
        %v3605 = vmul.f32 %v2366, %v2366
        %v3606 = vmul.f32 %v2369, %v2369
        %v3607 = vmul.f32 %v2374, %v2374
        %v3608 = vmul.f32 %v2377, %v2377
        %v3609 = vmul.f32 %v2382, %v2382
        %v3610 = vmul.f32 %v2385, %v2385
        %v3611 = vmul.f32 %v2390, %v2390
        %v3612 = vmul.f32 %v2393, %v2393
        %v3613 = vmul.f32 %v2398, %v2398
        %v3614 = vmul.f32 %v2401, %v2401
        %v3615 = vmul.f32 %v2406, %v2406
        %v3616 = vmul.f32 %v2409, %v2409
        %v3617 = vmul.f32 %v2414, %v2414
        %v3618 = vmul.f32 %v2417, %v2417
        %v3619 = vmul.f32 %v2422, %v2422
        %v3620 = vmul.f32 %v2425, %v2425
        %v3621 = vmul.f32 %v2430, %v2430
        %v3622 = vmul.f32 %v2433, %v2433
        %v3623 = vmul.f32 %v2438, %v2438
        %v3624 = vmul.f32 %v2441, %v2441
        %v3625 = vmul.f32 %v2446, %v2446
        %v3626 = vmul.f32 %v2449, %v2449
        %v3627 = vmul.f32 %v2454, %v2454
        %v3628 = vmul.f32 %v2457, %v2457
        %v3629 = vmul.f32 %v2462, %v2462
        %v3630 = vmul.f32 %v2465, %v2465
        %v3631 = vmul.f32 %v2470, %v2470
        %v3632 = vmul.f32 %v2473, %v2473
        %v3633 = vmul.f32 %v2478, %v2478
        %v3634 = vmul.f32 %v2481, %v2481
        %v3635 = vmul.f32 %v2486, %v2486
        %v3636 = vmul.f32 %v2489, %v2489
        %v3637 = vmul.f32 %v2494, %v2494
        %v3638 = vmul.f32 %v2497, %v2497
        %v3639 = vmul.f32 %v2502, %v2502
        %v3640 = vmul.f32 %v2505, %v2505
        %v3641 = vmul.f32 %v2510, %v2510
        %v3642 = vmul.f32 %v2513, %v2513
        %v3643 = vmul.f32 %v2518, %v2518
        %v3644 = vmul.f32 %v2521, %v2521
        %v3645 = vmul.f32 %v2526, %v2526
        %v3646 = vmul.f32 %v2529, %v2529
        %v3647 = vmul.f32 %v2534, %v2534
        %v3648 = vmul.f32 %v2537, %v2537
        %v3649 = vmul.f32 %v2542, %v2542
        %v3650 = vmul.f32 %v2545, %v2545
        %v3651 = vmul.f32 %v2550, %v2550
        %v3652 = vmul.f32 %v2553, %v2553
        %v3653 = vmul.f32 %v2558, %v2558
        %v3654 = vmul.f32 %v2561, %v2561
        %v3655 = vmul.f32 %v2566, %v2566
        %v3656 = vmul.f32 %v2569, %v2569
        %v3657 = vmul.f32 %v2574, %v2574
        %v3658 = vmul.f32 %v2577, %v2577
        %v3659 = vmul.f32 %v2582, %v2582
        %v3660 = vmul.f32 %v2585, %v2585
        %v3661 = vmul.f32 %v2590, %v2590
        %v3662 = vmul.f32 %v2593, %v2593
        %v3663 = vmul.f32 %v2598, %v2598
        %v3664 = vmul.f32 %v2601, %v2601
        %v3665 = vmul.f32 %v2606, %v2606
        %v3666 = vmul.f32 %v2609, %v2609
        %v3667 = vmul.f32 %v2614, %v2614
        %v3668 = vmul.f32 %v2617, %v2617
        %v3669 = vmul.f32 %v2622, %v2622
        %v3670 = vmul.f32 %v2625, %v2625
        %v3671 = vmul.f32 %v2630, %v2630
        %v3672 = vmul.f32 %v2633, %v2633
        %v3673 = vmul.f32 %v2638, %v2638
        %v3674 = vmul.f32 %v2641, %v2641
        %v3675 = vmul.f32 %v2646, %v2646
        %v3676 = vmul.f32 %v2649, %v2649
        %v3677 = vmul.f32 %v2654, %v2654
        %v3678 = vmul.f32 %v2657, %v2657
        %v3679 = vmul.f32 %v2662, %v2662
        %v3680 = vmul.f32 %v2665, %v2665
        %v3681 = vmul.f32 %v2670, %v2670
        %v3682 = vmul.f32 %v2673, %v2673
        %v3683 = vmul.f32 %v2678, %v2678
        %v3684 = vmul.f32 %v2681, %v2681
        %v3685 = vmul.f32 %v2686, %v2686
        %v3686 = vmul.f32 %v2689, %v2689
        %v3687 = vmul.f32 %v2694, %v2694
        %v3688 = vmul.f32 %v2697, %v2697
        %v3689 = vmul.f32 %v2702, %v2702
        %v3690 = vmul.f32 %v2705, %v2705
        %v3691 = vmul.f32 %v2710, %v2710
        %v3692 = vmul.f32 %v2713, %v2713
        %v3693 = vmul.f32 %v2718, %v2718
        %v3694 = vmul.f32 %v2721, %v2721
        %v3695 = vmul.f32 %v2726, %v2726
        %v3696 = vmul.f32 %v2729, %v2729
        %v3697 = vmul.f32 %v2734, %v2734
        %v3698 = vmul.f32 %v2737, %v2737
        %v3699 = vmul.f32 %v2742, %v2742
        %v3700 = vmul.f32 %v2745, %v2745
        %v3701 = vmul.f32 %v2750, %v2750
        %v3702 = vmul.f32 %v2753, %v2753
        %v3703 = vmul.f32 %v2758, %v2758
        %v3704 = vmul.f32 %v2761, %v2761
        %v3705 = vmul.f32 %v2766, %v2766
        %v3706 = vmul.f32 %v2769, %v2769
        %v3707 = vmul.f32 %v2774, %v2774
        %v3708 = vmul.f32 %v2777, %v2777
        %v3709 = vmul.f32 %v2782, %v2782
        %v3710 = vmul.f32 %v2785, %v2785
        %v3711 = vmul.f32 %v2790, %v2790
        %v3712 = vmul.f32 %v2793, %v2793
        %v3713 = vmul.f32 %v2798, %v2798
        %v3714 = vmul.f32 %v2801, %v2801
        %v3715 = vmul.f32 %v2806, %v2806
        %v3716 = vmul.f32 %v2809, %v2809
        %v3717 = vadd.f32 %v3589, %v3590
        %v3718 = vadd.f32 %v3717, %v3591
        %v3719 = vadd.f32 %v3718, %v3592
        %v3720 = vadd.f32 %v3719, %v3593
        %v3721 = vadd.f32 %v3720, %v3594
        %v3722 = vadd.f32 %v3721, %v3595
        %v3723 = vadd.f32 %v3722, %v3596
        %v3724 = vadd.f32 %v3723, %v3597
        %v3725 = vadd.f32 %v3724, %v3598
        %v3726 = vadd.f32 %v3725, %v3599
        %v3727 = vadd.f32 %v3726, %v3600
        %v3728 = vadd.f32 %v3727, %v3601
        %v3729 = vadd.f32 %v3728, %v3602
        %v3730 = vadd.f32 %v3729, %v3603
        %v3731 = vadd.f32 %v3730, %v3604
        %v3732 = vadd.f32 %v3731, %v3605
        %v3733 = vadd.f32 %v3732, %v3606
        %v3734 = vadd.f32 %v3733, %v3607
        %v3735 = vadd.f32 %v3734, %v3608
        %v3736 = vadd.f32 %v3735, %v3609
        %v3737 = vadd.f32 %v3736, %v3610
        %v3738 = vadd.f32 %v3737, %v3611
        %v3739 = vadd.f32 %v3738, %v3612
        %v3740 = vadd.f32 %v3739, %v3613
        %v3741 = vadd.f32 %v3740, %v3614
        %v3742 = vadd.f32 %v3741, %v3615
        %v3743 = vadd.f32 %v3742, %v3616
        %v3744 = vadd.f32 %v3743, %v3617
        %v3745 = vadd.f32 %v3744, %v3618
        %v3746 = vadd.f32 %v3745, %v3619
        %v3747 = vadd.f32 %v3746, %v3620
        %v3748 = vadd.f32 %v3747, %v3621
        %v3749 = vadd.f32 %v3748, %v3622
        %v3750 = vadd.f32 %v3749, %v3623
        %v3751 = vadd.f32 %v3750, %v3624
        %v3752 = vadd.f32 %v3751, %v3625
        %v3753 = vadd.f32 %v3752, %v3626
        %v3754 = vadd.f32 %v3753, %v3627
        %v3755 = vadd.f32 %v3754, %v3628
        %v3756 = vadd.f32 %v3755, %v3629
        %v3757 = vadd.f32 %v3756, %v3630
        %v3758 = vadd.f32 %v3757, %v3631
        %v3759 = vadd.f32 %v3758, %v3632
        %v3760 = vadd.f32 %v3759, %v3633
        %v3761 = vadd.f32 %v3760, %v3634
        %v3762 = vadd.f32 %v3761, %v3635
        %v3763 = vadd.f32 %v3762, %v3636
        %v3764 = vadd.f32 %v3763, %v3637
        %v3765 = vadd.f32 %v3764, %v3638
        %v3766 = vadd.f32 %v3765, %v3639
        %v3767 = vadd.f32 %v3766, %v3640
        %v3768 = vadd.f32 %v3767, %v3641
        %v3769 = vadd.f32 %v3768, %v3642
        %v3770 = vadd.f32 %v3769, %v3643
        %v3771 = vadd.f32 %v3770, %v3644
        %v3772 = vadd.f32 %v3771, %v3645
        %v3773 = vadd.f32 %v3772, %v3646
        %v3774 = vadd.f32 %v3773, %v3647
        %v3775 = vadd.f32 %v3774, %v3648
        %v3776 = vadd.f32 %v3775, %v3649
        %v3777 = vadd.f32 %v3776, %v3650
        %v3778 = vadd.f32 %v3777, %v3651
        %v3779 = vadd.f32 %v3778, %v3652
        %v3780 = vadd.f32 %v3779, %v3653
        %v3781 = vadd.f32 %v3780, %v3654
        %v3782 = vadd.f32 %v3781, %v3655
        %v3783 = vadd.f32 %v3782, %v3656
        %v3784 = vadd.f32 %v3783, %v3657
        %v3785 = vadd.f32 %v3784, %v3658
        %v3786 = vadd.f32 %v3785, %v3659
        %v3787 = vadd.f32 %v3786, %v3660
        %v3788 = vadd.f32 %v3787, %v3661
        %v3789 = vadd.f32 %v3788, %v3662
        %v3790 = vadd.f32 %v3789, %v3663
        %v3791 = vadd.f32 %v3790, %v3664
        %v3792 = vadd.f32 %v3791, %v3665
        %v3793 = vadd.f32 %v3792, %v3666
        %v3794 = vadd.f32 %v3793, %v3667
        %v3795 = vadd.f32 %v3794, %v3668
        %v3796 = vadd.f32 %v3795, %v3669
        %v3797 = vadd.f32 %v3796, %v3670
        %v3798 = vadd.f32 %v3797, %v3671
        %v3799 = vadd.f32 %v3798, %v3672
        %v3800 = vadd.f32 %v3799, %v3673
        %v3801 = vadd.f32 %v3800, %v3674
        %v3802 = vadd.f32 %v3801, %v3675
        %v3803 = vadd.f32 %v3802, %v3676
        %v3804 = vadd.f32 %v3803, %v3677
        %v3805 = vadd.f32 %v3804, %v3678
        %v3806 = vadd.f32 %v3805, %v3679
        %v3807 = vadd.f32 %v3806, %v3680
        %v3808 = vadd.f32 %v3807, %v3681
        %v3809 = vadd.f32 %v3808, %v3682
        %v3810 = vadd.f32 %v3809, %v3683
        %v3811 = vadd.f32 %v3810, %v3684
        %v3812 = vadd.f32 %v3811, %v3685
        %v3813 = vadd.f32 %v3812, %v3686
        %v3814 = vadd.f32 %v3813, %v3687
        %v3815 = vadd.f32 %v3814, %v3688
        %v3816 = vadd.f32 %v3815, %v3689
        %v3817 = vadd.f32 %v3816, %v3690
        %v3818 = vadd.f32 %v3817, %v3691
        %v3819 = vadd.f32 %v3818, %v3692
        %v3820 = vadd.f32 %v3819, %v3693
        %v3821 = vadd.f32 %v3820, %v3694
        %v3822 = vadd.f32 %v3821, %v3695
        %v3823 = vadd.f32 %v3822, %v3696
        %v3824 = vadd.f32 %v3823, %v3697
        %v3825 = vadd.f32 %v3824, %v3698
        %v3826 = vadd.f32 %v3825, %v3699
        %v3827 = vadd.f32 %v3826, %v3700
        %v3828 = vadd.f32 %v3827, %v3701
        %v3829 = vadd.f32 %v3828, %v3702
        %v3830 = vadd.f32 %v3829, %v3703
        %v3831 = vadd.f32 %v3830, %v3704
        %v3832 = vadd.f32 %v3831, %v3705
        %v3833 = vadd.f32 %v3832, %v3706
        %v3834 = vadd.f32 %v3833, %v3707
        %v3835 = vadd.f32 %v3834, %v3708
        %v3836 = vadd.f32 %v3835, %v3709
        %v3837 = vadd.f32 %v3836, %v3710
        %v3838 = vadd.f32 %v3837, %v3711
        %v3839 = vadd.f32 %v3838, %v3712
        %v3840 = vadd.f32 %v3839, %v3713
        %v3841 = vadd.f32 %v3840, %v3714
        %v3842 = vadd.f32 %v3841, %v3715
        %v3843 = vadd.f32 %v3842, %v3716
        %v3844 = vrot.slane %v3843, 4
        %v3845 = vadd.f32 %v3843, %v3844
        %v3846 = vrot.slane %v3845, 2
        %v3847 = vadd.f32 %v3845, %v3846
        %v3848 = vrot.slane %v3847, 1
        %v3849 = vadd.f32 %v3847, %v3848
        %v3850 = vadd.f32 %v3588, %v3849
        %3851 = vst [vmem:[%s237 + $0x1] sm:$0x1] %v3850
        %s3852 = sand.u32 %s100, 1
        %s3853 = scalar_lea.sflag [#allocation4], %s3852
        %s3854 = sand.u32 %s100, 1
        %s3855 = smul.addr %s3854, 512
        %s3856 = scalar_lea.vmem [#allocation7], %s3855
        %s3857 = sand.u32 %s126, 1
        %s3858 = scalar_lea.sflag [#allocation9], %s3857
        %s3859 = sand.u32 %s126, 1
        %s3860 = smul.addr %s3859, 8
        %s3861 = scalar_lea.vmem [#allocation8], %s3860
        // Predicated region
        $region41: #{tpu_custom_call.1} parent=27 // pred_check
          %p3862 = pneg %p110
        $region42: #{tpu_custom_call.1} parent=27 // pred_check_branch
          %3864 = sbr.rel (%p3862) target = $region44
        $region43: #{tpu_custom_call.1} parent=27 // pred_region
          %s3865 = smul.u32 %s29, 2
          %s3866 = sadd.s32 %s3865, %s30
          %s3867 = smul.u32 128, %s3866
          %s3869 = ssub.s32 8192, 8192
          %3870 = vsyncadd %s3853, %s3869
          %s3871 = smul.addr %s3867, 64
          %s3872 = scalar_lea.hbm %s2, %s3871
          %s3873 = sshll.u32 %s3856, 4
          %s3874 = int_to_ptr.vmem [resolvable:$true] %s3873
          %3879 = dma.vmem_to_hbm [thread:$0]  %s3874, 8192, %s3872, %s3853, 64, 64, 4
        $region44: #{tpu_custom_call.1} parent=27 // pred_fallthru
          _
        // Predicated region
        $region45: #{tpu_custom_call.1} parent=27 // pred_check
          %p3880 = pneg %p136
        $region46: #{tpu_custom_call.1} parent=27 // pred_check_branch
          %3882 = sbr.rel (%p3880) target = $region48
        $region47: #{tpu_custom_call.1} parent=27 // pred_region
          %s3884 = ssub.s32 128, 128
          %3885 = vsyncadd %s3858, %s3884
          %s3886 = smul.addr %s29, 128
          %s3887 = scalar_lea.hbm %s3, %s3886
          %s3889 = sshll.u32 %s3861, 4
          %s3890 = int_to_ptr.vmem [resolvable:$true] %s3889
          %3892 = dma.vmem_to_hbm [thread:$0]  %s3890, 128, %s3887, %s3858
        $region48: #{tpu_custom_call.1} parent=27 // pred_fallthru
          _
      $region28: #{tpu_custom_call.1} parent=5 // pred_fallthru
        _
      %p3893 = scmp.le.s32.totalorder 2, %s20
      // Predicated region
      $region49: #{tpu_custom_call.1} parent=5 // pred_check
        %p3894 = pneg %p3893
      $region50: #{tpu_custom_call.1} parent=5 // pred_check_branch
        %3896 = sbr.rel (%p3894) target = $region52
      $region51: #{tpu_custom_call.1} parent=5 // pred_region
        %s3897 = ssub.s32 %s20, 2
        // Predicated region
        $region53: #{tpu_custom_call.1} parent=51 // pred_check
          %p3898 = pneg %p116
        $region54: #{tpu_custom_call.1} parent=51 // pred_check_branch
          %3900 = sbr.rel (%p3898) target = $region56
        $region55: #{tpu_custom_call.1} parent=51 // pred_region
          %s3901 = sand.u32 %s101, 1
          %s3902 = scalar_lea.sflag [#allocation4], %s3901
          %s3903 = sand.u32 %s101, 1
          %s3904 = smul.addr %s3903, 512
          %s3905 = scalar_lea.vmem [#allocation7], %s3904
          %3906 = dma.done %s3902, 8192
        $region56: #{tpu_custom_call.1} parent=51 // pred_fallthru
          _
        // Predicated region
        $region57: #{tpu_custom_call.1} parent=51 // pred_check
          %p3907 = pneg %p142
        $region58: #{tpu_custom_call.1} parent=51 // pred_check_branch
          %3909 = sbr.rel (%p3907) target = $region60
        $region59: #{tpu_custom_call.1} parent=51 // pred_region
          %s3910 = sand.u32 %s127, 1
          %s3911 = scalar_lea.sflag [#allocation9], %s3910
          %s3912 = sand.u32 %s127, 1
          %s3913 = smul.addr %s3912, 8
          %s3914 = scalar_lea.vmem [#allocation8], %s3913
          %3915 = dma.done %s3911, 128
        $region60: #{tpu_custom_call.1} parent=51 // pred_fallthru
          _
      $region52: #{tpu_custom_call.1} parent=5 // pred_fallthru
        _
    $region6: #{tpu_custom_call.1} parent=1 // loop_footer
      %s24 = sadd.s32 1, %s20
    $region7: #{tpu_custom_call.1} parent=1 // loop_footer_branch
      %19 = sbr.rel target = $region3
    $region8: #{tpu_custom_call.1} parent=1 // loop_exit
      _
    %3916 = vsyncpa [#allocation3], 1
    %s3917 = scalar_lea.sflag [#allocation3], 1
    %3918 = vsyncpa %s3917, 1
    %3919 = vsyncpa [#allocation6], 1
    %3920 = vsyncpa [#allocation4], 1
    %s3921 = scalar_lea.sflag [#allocation4], 1
    %3922 = vsyncpa %s3921, 1
    %3923 = vsyncpa [#allocation9], 1
    %s3924 = scalar_lea.sflag [#allocation9], 1
    %3925 = vsyncpa %s3924, 1

</llo_original>
